<compile_context>
chip_gen: v7x
topology: tpu7x:2x2x1
jax: 0.10.0
libtpu: 0.0.40
codegen_flags: <defaults>
</compile_context>

<pallas_src>
import functools

import jax
import jax.numpy as jnp
from jax.experimental import pallas as pl
from jax.experimental.pallas import tpu as pltpu

NUM_POS = 3  # the torch code hardcodes ones(batch, 3)


def _asm2vec_kernel(idx_ref, ctx_ref, wcat_ref, wr_ref, loss_ref, *,
                    k_pad, k_true, num_pos, batch):
    bk = ctx_ref.shape[0]                        # = B * k_pad
    w_tot = wcat_ref.shape[0]                    # 2*Vp + Fp
    v_pad = wr_ref.shape[0]                      # Vp

    idx = idx_ref[...]                           # (BK, 8) int32, cols 0..6 valid

    # ---- v_rep = 3 * v[b(bk)] via ONE stacked one-hot matmul ---------------
    # col layout of W_cat rows: [0,Vp)   -> W_e into cols [:d]   (tok 0, tok 3)
    #                           [Vp,2Vp) -> W_e into cols [d:]   (tok 1,2,4,5, x0.5)
    #                           [2Vp,..) -> W_f full 2d width    (function id)
    c = jax.lax.broadcasted_iota(jnp.int32, (bk, w_tot), 1)

    def oh(j):
        return (c == idx[:, j:j + 1]).astype(jnp.bfloat16)

    a = (oh(0) + oh(1)) + (oh(2) + oh(3) + oh(4) + oh(5)) * 0.5 + oh(6)
    v_rep = jnp.dot(a, wcat_ref[...], preferred_element_type=jnp.float32)   # (BK, 2d)

    # ---- r = W_r[ctx] via one one-hot matmul over the flattened BK axis ----
    cv = jax.lax.broadcasted_iota(jnp.int32, (bk, v_pad), 1)
    oh_ctx = (cv == ctx_ref[...]).astype(jnp.bfloat16)                       # (BK, Vp)
    r = jnp.dot(oh_ctx, wr_ref[...], preferred_element_type=jnp.float32)     # (BK, 2d)

    # pred[bk] = r[bk] . v[b(bk)]   (fold the /3 from v's definition in here)
    pred = jnp.sum(r * v_rep, axis=-1, keepdims=True) * (1.0 / 3.0)          # (BK, 1)

    # Labels / validity from the flattened-K index: first num_pos per block are
    # positives; rows k >= k_true are K-padding and masked out of the mean.
    k_idx = jax.lax.broadcasted_iota(jnp.int32, (bk, 1), 0) % k_pad
    label = (k_idx < num_pos).astype(jnp.float32)
    valid = (k_idx < k_true).astype(jnp.float32)

    sig = jax.nn.sigmoid(pred)
    log_p = jnp.maximum(jnp.log(sig), -100.0)          # torch BCELoss clamps logs at -100
    log_1mp = jnp.maximum(jnp.log(1.0 - sig), -100.0)
    terms = label * log_p + (1.0 - label) * log_1mp
    loss_ref[0, 0] = -jnp.sum(valid * terms) / (batch * k_true)


@jax.jit
def asm2vec_forward(inp, pos, neg, W_e, W_f, W_r):
    """inp: (B,7) int32, pos: (B,3) int32, neg: (B,NEG) int32 -> scalar BCE loss."""
    V, d = W_e.shape
    F_ = W_f.shape[0]
    B = inp.shape[0]
    num_pos = pos.shape[1]
    k_true = num_pos + neg.shape[1]                      # 3 + 25 = 28
    k_pad = max(pl.next_power_of_2(k_true), 8)           # 28 -> 32
    v_pad = ((V + 127) // 128) * 128                     # lane-dense vocab axis
    f_pad = ((F_ + 127) // 128) * 128
    w_tot = 2 * v_pad + f_pad

    # Tiny int32 index inputs; offsets select the right block of W_cat rows.
    fn = inp[:, 0:1].astype(jnp.int32)
    t = inp[:, 1:7].astype(jnp.int32)
    idx = jnp.concatenate(
        [t[:, 0:1], t[:, 3:4],
         t[:, 1:2] + v_pad, t[:, 2:3] + v_pad, t[:, 4:5] + v_pad, t[:, 5:6] + v_pad,
         fn + 2 * v_pad,
         jnp.zeros((B, 1), jnp.int32)],                  # unused pad column
        axis=1)                                          # (B, 8)
    idx_rep = jnp.repeat(idx, k_pad, axis=0)             # (B*Kp, 8)

    ctx = jnp.concatenate([pos, neg], axis=1).astype(jnp.int32)            # (B, k_true)
    ctx = jnp.pad(ctx, ((0, 0), (0, k_pad - k_true)), constant_values=v_pad)  # sentinel -> zero row
    ctx_flat = ctx.reshape(B * k_pad, 1)                                   # (B*Kp, 1)

    # Stacked bf16 weights (MXU-native); vocab rows zero-padded to lane-dense size.
    wcat = jnp.zeros((w_tot, 2 * d), jnp.bfloat16)
    wcat = wcat.at[:V, :d].set(W_e.astype(jnp.bfloat16))
    wcat = wcat.at[v_pad:v_pad + V, d:].set(W_e.astype(jnp.bfloat16))
    wcat = wcat.at[2 * v_pad:2 * v_pad + F_, :].set(W_f.astype(jnp.bfloat16))
    wr_p = jnp.zeros((v_pad, 2 * d), jnp.bfloat16).at[:V].set(W_r.astype(jnp.bfloat16))

    kernel = functools.partial(_asm2vec_kernel, k_pad=k_pad, k_true=k_true,
                               num_pos=num_pos, batch=B)
    vmem = pl.BlockSpec(memory_space=pltpu.MemorySpace.VMEM)
    out = pl.pallas_call(
        kernel,
        out_shape=jax.ShapeDtypeStruct((1, 1), jnp.float32),
        in_specs=[vmem] * 4,
        out_specs=pl.BlockSpec(memory_space=pltpu.MemorySpace.SMEM),
    )(idx_rep, ctx_flat, wcat, wr_p)
    return out[0, 0]


def reference_forward(inp, pos, neg, W_e, W_f, W_r):
    """Plain-JAX transcription of the PyTorch forward (for validation)."""
    e = W_e[inp[:, 1:]]                                          # (B, 6, d)
    v_f = W_f[inp[:, 0]]                                         # (B, 2d)
    v_prev = jnp.concatenate([e[:, 0], (e[:, 1] + e[:, 2]) / 2], axis=1)
    v_next = jnp.concatenate([e[:, 3], (e[:, 4] + e[:, 5]) / 2], axis=1)
    v = ((v_f + v_prev + v_next) / 3)[:, :, None]                # (B, 2d, 1)
    ctx = jnp.concatenate([pos, neg], axis=1)
    r = W_r[ctx]                                                 # (B, K, 2d)
    pred = jnp.squeeze(jnp.matmul(r, v), -1)                     # (B, K)
    B = inp.shape[0]
    label = jnp.concatenate(
        [jnp.ones((B, NUM_POS), jnp.float32),
         jnp.zeros((B, neg.shape[1]), jnp.float32)], axis=1)
    sig = jax.nn.sigmoid(pred)
    log_p = jnp.maximum(jnp.log(sig), -100.0)                    # torch BCE clamp parity
    log_1mp = jnp.maximum(jnp.log(1.0 - sig), -100.0)
    return -jnp.mean(label * log_p + (1.0 - label) * log_1mp)


if __name__ == "__main__":
    key = jax.random.PRNGKey(0)
    V, F_, d = 64, 16, 16        # vocab_size, function_size, embedding_size
    B, NEG = 8, 25               # batch, neg_sample_num

    k1, k2, k3, k4, k5, k6, k7 = jax.random.split(key, 7)
    W_e = jax.random.normal(k1, (V, d), jnp.float32)
    W_f = jax.random.normal(k2, (F_, 2 * d), jnp.float32)
    W_r = jax.random.normal(k3, (V, 2 * d), jnp.float32)

    fn_idx = jax.random.randint(k4, (B, 1), 0, F_, jnp.int32)
    tok_idx = jax.random.randint(k5, (B, 6), 0, V, jnp.int32)
    inp = jnp.concatenate([fn_idx, tok_idx], axis=1)             # (B, 7)
    pos = jax.random.randint(k6, (B, NUM_POS), 0, V, jnp.int32)  # (B, 3)
    neg = jax.random.randint(k7, (B, NEG), 0, V, jnp.int32)      # (B, 25)

    loss = asm2vec_forward(inp, pos, neg, W_e, W_f, W_r)
    jax.block_until_ready(loss)

    # Tight check: kernel algebra vs. the same math with bf16-rounded weights.
    ref_bf16 = reference_forward(
        inp, pos, neg,
        W_e.astype(jnp.bfloat16).astype(jnp.float32),
        W_f.astype(jnp.bfloat16).astype(jnp.float32),
        W_r.astype(jnp.bfloat16).astype(jnp.float32))
    assert jnp.allclose(loss, ref_bf16, rtol=1e-3, atol=1e-3), (loss, ref_bf16)

    # Semantics check: full-f32 reference (difference = bf16 weight quantization only).
    ref_f32 = reference_forward(inp, pos, neg, W_e, W_f, W_r)
    assert jnp.allclose(loss, ref_f32, rtol=5e-2, atol=5e-2), (loss, ref_f32)

    print("KERNEL_OK")
</pallas_src>

<mosaic_0001>
module attributes {stable_mosaic.version = 11 : i64} {
  func.func @_asm2vec_kernel(%arg0: memref<256x8xi32, #tpu.memory_space<vmem>>, %arg1: memref<256x1xi32, #tpu.memory_space<vmem>>, %arg2: memref<384x32xbf16, #tpu.memory_space<vmem>>, %arg3: memref<128x32xbf16, #tpu.memory_space<vmem>>, %arg4: memref<1x1xf32, #tpu.memory_space<smem>>) attributes {dimension_semantics = [], scalar_prefetch = 0 : i64, scratch_operands = 0 : i64, tpu.core_type = #tpu.core_type<tc>} {
    %c0 = arith.constant 0 : index
    %c0_0 = arith.constant 0 : index
    %0 = vector.load %arg0[%c0, %c0_0] : memref<256x8xi32, #tpu.memory_space<vmem>>, vector<256x8xi32>
    %1 = tpu.iota {dimensions = array<i32: 1>} : vector<256x384xi32>
    %2 = vector.extract_strided_slice %0 {offsets = [0, 0], sizes = [256, 1], strides = [1, 1]} : vector<256x8xi32> to vector<256x1xi32>
    %3 = vector.broadcast %2 : vector<256x1xi32> to vector<256x384xi32>
    %4 = arith.cmpi eq, %1, %3 : vector<256x384xi32>
    %5 = arith.extui %4 : vector<256x384xi1> to vector<256x384xi32>
    %6 = arith.sitofp %5 : vector<256x384xi32> to vector<256x384xf32>
    %7 = arith.truncf %6 : vector<256x384xf32> to vector<256x384xbf16>
    %8 = vector.extract_strided_slice %0 {offsets = [0, 1], sizes = [256, 1], strides = [1, 1]} : vector<256x8xi32> to vector<256x1xi32>
    %9 = vector.broadcast %8 : vector<256x1xi32> to vector<256x384xi32>
    %10 = arith.cmpi eq, %1, %9 : vector<256x384xi32>
    %11 = arith.extui %10 : vector<256x384xi1> to vector<256x384xi32>
    %12 = arith.sitofp %11 : vector<256x384xi32> to vector<256x384xf32>
    %13 = arith.truncf %12 : vector<256x384xf32> to vector<256x384xbf16>
    %14 = arith.addf %7, %13 : vector<256x384xbf16>
    %15 = vector.extract_strided_slice %0 {offsets = [0, 2], sizes = [256, 1], strides = [1, 1]} : vector<256x8xi32> to vector<256x1xi32>
    %16 = vector.broadcast %15 : vector<256x1xi32> to vector<256x384xi32>
    %17 = arith.cmpi eq, %1, %16 : vector<256x384xi32>
    %18 = arith.extui %17 : vector<256x384xi1> to vector<256x384xi32>
    %19 = arith.sitofp %18 : vector<256x384xi32> to vector<256x384xf32>
    %20 = arith.truncf %19 : vector<256x384xf32> to vector<256x384xbf16>
    %21 = vector.extract_strided_slice %0 {offsets = [0, 3], sizes = [256, 1], strides = [1, 1]} : vector<256x8xi32> to vector<256x1xi32>
    %22 = vector.broadcast %21 : vector<256x1xi32> to vector<256x384xi32>
    %23 = arith.cmpi eq, %1, %22 : vector<256x384xi32>
    %24 = arith.extui %23 : vector<256x384xi1> to vector<256x384xi32>
    %25 = arith.sitofp %24 : vector<256x384xi32> to vector<256x384xf32>
    %26 = arith.truncf %25 : vector<256x384xf32> to vector<256x384xbf16>
    %27 = arith.addf %20, %26 : vector<256x384xbf16>
    %28 = vector.extract_strided_slice %0 {offsets = [0, 4], sizes = [256, 1], strides = [1, 1]} : vector<256x8xi32> to vector<256x1xi32>
    %29 = vector.broadcast %28 : vector<256x1xi32> to vector<256x384xi32>
    %30 = arith.cmpi eq, %1, %29 : vector<256x384xi32>
    %31 = arith.extui %30 : vector<256x384xi1> to vector<256x384xi32>
    %32 = arith.sitofp %31 : vector<256x384xi32> to vector<256x384xf32>
    %33 = arith.truncf %32 : vector<256x384xf32> to vector<256x384xbf16>
    %34 = arith.addf %27, %33 : vector<256x384xbf16>
    %35 = vector.extract_strided_slice %0 {offsets = [0, 5], sizes = [256, 1], strides = [1, 1]} : vector<256x8xi32> to vector<256x1xi32>
    %36 = vector.broadcast %35 : vector<256x1xi32> to vector<256x384xi32>
    %37 = arith.cmpi eq, %1, %36 : vector<256x384xi32>
    %38 = arith.extui %37 : vector<256x384xi1> to vector<256x384xi32>
    %39 = arith.sitofp %38 : vector<256x384xi32> to vector<256x384xf32>
    %40 = arith.truncf %39 : vector<256x384xf32> to vector<256x384xbf16>
    %41 = arith.addf %34, %40 : vector<256x384xbf16>
    %cst = arith.constant 5.000000e-01 : bf16
    %42 = vector.broadcast %cst : bf16 to vector<256x384xbf16>
    %43 = arith.mulf %41, %42 : vector<256x384xbf16>
    %44 = arith.addf %14, %43 : vector<256x384xbf16>
    %45 = vector.extract_strided_slice %0 {offsets = [0, 6], sizes = [256, 1], strides = [1, 1]} : vector<256x8xi32> to vector<256x1xi32>
    %46 = vector.broadcast %45 : vector<256x1xi32> to vector<256x384xi32>
    %47 = arith.cmpi eq, %1, %46 : vector<256x384xi32>
    %48 = arith.extui %47 : vector<256x384xi1> to vector<256x384xi32>
    %49 = arith.sitofp %48 : vector<256x384xi32> to vector<256x384xf32>
    %50 = arith.truncf %49 : vector<256x384xf32> to vector<256x384xbf16>
    %51 = arith.addf %44, %50 : vector<256x384xbf16>
    %c0_1 = arith.constant 0 : index
    %c0_2 = arith.constant 0 : index
    %52 = vector.load %arg2[%c0_1, %c0_2] : memref<384x32xbf16, #tpu.memory_space<vmem>>, vector<384x32xbf16>
    %cst_3 = arith.constant dense<0.000000e+00> : vector<256x32xf32>
    %53 = tpu.matmul %51, %52, %cst_3 {dimension_numbers = #tpu.dot_dimension_numbers<[1], [0], [0], [1], [0, 0, 1, 1], [], []>} : vector<256x384xbf16>, vector<384x32xbf16>, vector<256x32xf32> -> vector<256x32xf32>
    %54 = tpu.iota {dimensions = array<i32: 1>} : vector<256x128xi32>
    %c0_4 = arith.constant 0 : index
    %c0_5 = arith.constant 0 : index
    %55 = vector.load %arg1[%c0_4, %c0_5] : memref<256x1xi32, #tpu.memory_space<vmem>>, vector<256x1xi32>
    %56 = vector.broadcast %55 : vector<256x1xi32> to vector<256x128xi32>
    %57 = arith.cmpi eq, %54, %56 : vector<256x128xi32>
    %58 = arith.extui %57 : vector<256x128xi1> to vector<256x128xi32>
    %59 = arith.sitofp %58 : vector<256x128xi32> to vector<256x128xf32>
    %60 = arith.truncf %59 : vector<256x128xf32> to vector<256x128xbf16>
    %c0_6 = arith.constant 0 : index
    %c0_7 = arith.constant 0 : index
    %61 = vector.load %arg3[%c0_6, %c0_7] : memref<128x32xbf16, #tpu.memory_space<vmem>>, vector<128x32xbf16>
    %cst_8 = arith.constant dense<0.000000e+00> : vector<256x32xf32>
    %62 = tpu.matmul %60, %61, %cst_8 {dimension_numbers = #tpu.dot_dimension_numbers<[1], [0], [0], [1], [0, 0, 1, 1], [], []>} : vector<256x128xbf16>, vector<128x32xbf16>, vector<256x32xf32> -> vector<256x32xf32>
    %63 = arith.mulf %62, %53 : vector<256x32xf32>
    %cst_9 = arith.constant dense<0.000000e+00> : vector<256xf32>
    %64 = vector.multi_reduction <add>, %63, %cst_9 [1] : vector<256x32xf32> to vector<256xf32>
    %65 = vector.shape_cast %64 : vector<256xf32> to vector<256x1xf32>
    %cst_10 = arith.constant 0.333333343 : f32
    %66 = vector.broadcast %cst_10 : f32 to vector<256x1xf32>
    %67 = arith.mulf %65, %66 : vector<256x1xf32>
    %68 = tpu.iota {dimensions = array<i32: 0>} : vector<256x1xi32>
    %c32_i32 = arith.constant 32 : i32
    %c0_i32 = arith.constant 0 : i32
    %69 = arith.cmpi eq, %c32_i32, %c0_i32 : i32
    %c1_i32 = arith.constant 1 : i32
    %70 = arith.select %69, %c1_i32, %c32_i32 : i32
    %71 = vector.broadcast %70 : i32 to vector<256x1xi32>
    %72 = arith.remsi %68, %71 : vector<256x1xi32>
    %c0_i32_11 = arith.constant 0 : i32
    %73 = vector.broadcast %c0_i32_11 : i32 to vector<256x1xi32>
    %74 = arith.cmpi ne, %72, %73 : vector<256x1xi32>
    %c0_i32_12 = arith.constant 0 : i32
    %75 = vector.broadcast %c0_i32_12 : i32 to vector<256x1xi32>
    %76 = arith.cmpi slt, %72, %75 : vector<256x1xi32>
    %c0_i32_13 = arith.constant 0 : i32
    %77 = arith.cmpi slt, %70, %c0_i32_13 : i32
    %78 = vector.broadcast %77 : i1 to vector<256x1xi1>
    %79 = vector.broadcast %78 : vector<256x1xi1> to vector<256x1xi1>
    %80 = arith.xori %76, %79 : vector<256x1xi1>
    %81 = arith.andi %80, %74 : vector<256x1xi1>
    %82 = vector.broadcast %70 : i32 to vector<256x1xi32>
    %83 = arith.addi %72, %82 : vector<256x1xi32>
    %84 = arith.select %81, %83, %72 : vector<256x1xi1>, vector<256x1xi32>
    %c3_i32 = arith.constant 3 : i32
    %85 = vector.broadcast %c3_i32 : i32 to vector<256x1xi32>
    %86 = arith.cmpi slt, %84, %85 : vector<256x1xi32>
    %87 = arith.extui %86 : vector<256x1xi1> to vector<256x1xi32>
    %88 = arith.sitofp %87 : vector<256x1xi32> to vector<256x1xf32>
    %c28_i32 = arith.constant 28 : i32
    %89 = vector.broadcast %c28_i32 : i32 to vector<256x1xi32>
    %90 = arith.cmpi slt, %84, %89 : vector<256x1xi32>
    %91 = arith.extui %90 : vector<256x1xi1> to vector<256x1xi32>
    %92 = arith.sitofp %91 : vector<256x1xi32> to vector<256x1xf32>
    %93 = arith.negf %67 : vector<256x1xf32>
    %94 = math.exp %93 : vector<256x1xf32>
    %cst_14 = arith.constant 1.000000e+00 : f32
    %95 = vector.broadcast %cst_14 : f32 to vector<256x1xf32>
    %96 = arith.addf %95, %94 : vector<256x1xf32>
    %97 = arith.divf %95, %96 : vector<256x1xf32>
    %98 = math.log %97 : vector<256x1xf32>
    %cst_15 = arith.constant -1.000000e+02 : f32
    %99 = vector.broadcast %cst_15 : f32 to vector<256x1xf32>
    %100 = arith.maximumf %98, %99 : vector<256x1xf32>
    %cst_16 = arith.constant 1.000000e+00 : f32
    %101 = vector.broadcast %cst_16 : f32 to vector<256x1xf32>
    %102 = arith.subf %101, %97 : vector<256x1xf32>
    %103 = math.log %102 : vector<256x1xf32>
    %cst_17 = arith.constant -1.000000e+02 : f32
    %104 = vector.broadcast %cst_17 : f32 to vector<256x1xf32>
    %105 = arith.maximumf %103, %104 : vector<256x1xf32>
    %106 = arith.mulf %88, %100 : vector<256x1xf32>
    %cst_18 = arith.constant 1.000000e+00 : f32
    %107 = vector.broadcast %cst_18 : f32 to vector<256x1xf32>
    %108 = arith.subf %107, %88 : vector<256x1xf32>
    %109 = arith.mulf %108, %105 : vector<256x1xf32>
    %110 = arith.addf %106, %109 : vector<256x1xf32>
    %111 = arith.mulf %92, %110 : vector<256x1xf32>
    %112 = vector.shape_cast %111 : vector<256x1xf32> to vector<1x256x1xf32>
    %cst_19 = arith.constant dense<0.000000e+00> : vector<1xf32>
    %113 = vector.multi_reduction <add>, %112, %cst_19 [1, 2] : vector<1x256x1xf32> to vector<1xf32>
    %114 = vector.shape_cast %113 : vector<1xf32> to vector<1x1x1xf32>
    %115 = vector.extract %114[0, 0, 0] : f32 from vector<1x1x1xf32>
    %cst_20 = arith.constant 0.000000e+00 : f32
    %116 = arith.subf %cst_20, %115 : f32
    %cst_21 = arith.constant 2.240000e+02 : f32
    %117 = arith.divf %116, %cst_21 : f32
    %c0_22 = arith.constant 0 : index
    %c0_23 = arith.constant 0 : index
    %118 = memref.load %arg4[%c0_22, %c0_23] : memref<1x1xf32, #tpu.memory_space<smem>>
    memref.store %117, %arg4[%c0_22, %c0_23] : memref<1x1xf32, #tpu.memory_space<smem>>
    return
  }
}

</mosaic_0001>

<llo_original>
// kernel: asm2vec_forward.1
$region0: #{asm2vec_forward.1}
  #allocation0 [shape = 'u32[]', space=smem, size = 0x4, offset = 0x4, fixed_abs, tag = 'smem constant byte address 0x4 - core index']
  #allocation1 [shape = 'u32[144,128]{1,0:T(1,128)}', space=vmem, size = 0x12000, scoped, tag = 'internal scratch']
  %s0 = inlined_call_operand.vmem [shape: s32[256,8], index: 0, kind: input, shape index: {}]
  %s1 = inlined_call_operand.vmem [shape: s32[256,1], index: 1, kind: input, shape index: {}]
  %s2 = inlined_call_operand.vmem [shape: bf16[384,32], index: 2, kind: input, shape index: {}]
  %s3 = inlined_call_operand.vmem [shape: bf16[128,32], index: 3, kind: input, shape index: {}]
  %s4 = inlined_call_operand.hbm [shape: f32[1,1], index: 4, kind: output, shape index: {}]
  %s5 = sld [smem:[#allocation0]]
  $region26: #{asm2vec_forward.1} parent=0
    _
  %s7 = ssub.s32 1, %s5
  %s8 = scalar_select 0, %s7, %s5
  $region1: #{asm2vec_forward.1} parent=0
    #allocation2 [shape = 'u8[512]{0}', space=smem, size = 0x200, scoped, tag = 'output window, operand 0, single buffered']
    #allocation3 [shape = 's32[1]{0}', space=sflag, size = 0x4, scoped, tag = 'scoped memory for asm2vec_forward.1']
    %9 = vsyncpa [#allocation3], 0
    // Predicated region
    $region2: #{asm2vec_forward.1} parent=1 // pred_check
      _
    $region3: #{asm2vec_forward.1} parent=1 // pred_check_branch
      %11 = sbr.rel (0) target = $region5
    $region4: #{asm2vec_forward.1} parent=1 // pred_region
      _
    $region5: #{asm2vec_forward.1} parent=1 // pred_fallthru
      _
    // Predicated region
    $region6: #{asm2vec_forward.1} parent=1 // pred_check
      _
    $region7: #{asm2vec_forward.1} parent=1 // pred_check_branch
      %13 = sbr.rel (0) target = $region9
    $region8: #{asm2vec_forward.1} parent=1 // pred_region
      _
    $region9: #{asm2vec_forward.1} parent=1 // pred_fallthru
      _
    // Predicated region
    $region10: #{asm2vec_forward.1} parent=1 // pred_check
      _
    $region11: #{asm2vec_forward.1} parent=1 // pred_check_branch
      %15 = sbr.rel (0) target = $region13
    $region12: #{asm2vec_forward.1} parent=1 // pred_region
      _
    $region13: #{asm2vec_forward.1} parent=1 // pred_fallthru
      _
    // Predicated region
    $region14: #{asm2vec_forward.1} parent=1 // pred_check
      _
    $region15: #{asm2vec_forward.1} parent=1 // pred_check_branch
      %17 = sbr.rel (0) target = $region17
    $region16: #{asm2vec_forward.1} parent=1 // pred_region
      _
    $region17: #{asm2vec_forward.1} parent=1 // pred_fallthru
      _
    %v20 = vld [vmem:[%s0] sm:$0xff]
    %v21 = vld [vmem:[%s0 + $0x8] sm:$0xff]
    %v22 = vld [vmem:[%s0 + $0x10] sm:$0xff]
    %v23 = vld [vmem:[%s0 + $0x18] sm:$0xff]
    %v24 = vld [vmem:[%s0 + $0x20] sm:$0xff]
    %v25 = vld [vmem:[%s0 + $0x28] sm:$0xff]
    %v26 = vld [vmem:[%s0 + $0x30] sm:$0xff]
    %v27 = vld [vmem:[%s0 + $0x38] sm:$0xff]
    %v28 = vld [vmem:[%s0 + $0x40] sm:$0xff]
    %v29 = vld [vmem:[%s0 + $0x48] sm:$0xff]
    %v30 = vld [vmem:[%s0 + $0x50] sm:$0xff]
    %v31 = vld [vmem:[%s0 + $0x58] sm:$0xff]
    %v32 = vld [vmem:[%s0 + $0x60] sm:$0xff]
    %v33 = vld [vmem:[%s0 + $0x68] sm:$0xff]
    %v34 = vld [vmem:[%s0 + $0x70] sm:$0xff]
    %v35 = vld [vmem:[%s0 + $0x78] sm:$0xff]
    %v36 = vld [vmem:[%s0 + $0x80] sm:$0xff]
    %v37 = vld [vmem:[%s0 + $0x88] sm:$0xff]
    %v38 = vld [vmem:[%s0 + $0x90] sm:$0xff]
    %v39 = vld [vmem:[%s0 + $0x98] sm:$0xff]
    %v40 = vld [vmem:[%s0 + $0xa0] sm:$0xff]
    %v41 = vld [vmem:[%s0 + $0xa8] sm:$0xff]
    %v42 = vld [vmem:[%s0 + $0xb0] sm:$0xff]
    %v43 = vld [vmem:[%s0 + $0xb8] sm:$0xff]
    %v44 = vld [vmem:[%s0 + $0xc0] sm:$0xff]
    %v45 = vld [vmem:[%s0 + $0xc8] sm:$0xff]
    %v46 = vld [vmem:[%s0 + $0xd0] sm:$0xff]
    %v47 = vld [vmem:[%s0 + $0xd8] sm:$0xff]
    %v48 = vld [vmem:[%s0 + $0xe0] sm:$0xff]
    %v49 = vld [vmem:[%s0 + $0xe8] sm:$0xff]
    %v50 = vld [vmem:[%s0 + $0xf0] sm:$0xff]
    %v51 = vld [vmem:[%s0 + $0xf8] sm:$0xff]
    %v52 = vlaneseq
    %v53 = vand.u32 %v52, 127
    %v54 = vadd.s32 %v53, 128
    %v55 = vadd.s32 %v53, 256
    %56 = vset.pattern.permute.xlu0 0
    %57 = vperm.xlu0 %56, %v20
    %v58 = vpop.permute.xlu0 %57
    %59 = vset.pattern.permute.xlu0 0
    %60 = vperm.xlu0 %59, %v21
    %v61 = vpop.permute.xlu0 %60
    %62 = vset.pattern.permute.xlu0 0
    %63 = vperm.xlu0 %62, %v22
    %v64 = vpop.permute.xlu0 %63
    %65 = vset.pattern.permute.xlu0 0
    %66 = vperm.xlu0 %65, %v23
    %v67 = vpop.permute.xlu0 %66
    %68 = vset.pattern.permute.xlu0 0
    %69 = vperm.xlu0 %68, %v24
    %v70 = vpop.permute.xlu0 %69
    %71 = vset.pattern.permute.xlu0 0
    %72 = vperm.xlu0 %71, %v25
    %v73 = vpop.permute.xlu0 %72
    %74 = vset.pattern.permute.xlu0 0
    %75 = vperm.xlu0 %74, %v26
    %v76 = vpop.permute.xlu0 %75
    %77 = vset.pattern.permute.xlu0 0
    %78 = vperm.xlu0 %77, %v27
    %v79 = vpop.permute.xlu0 %78
    %80 = vset.pattern.permute.xlu0 0
    %81 = vperm.xlu0 %80, %v28
    %v82 = vpop.permute.xlu0 %81
    %83 = vset.pattern.permute.xlu0 0
    %84 = vperm.xlu0 %83, %v29
    %v85 = vpop.permute.xlu0 %84
    %86 = vset.pattern.permute.xlu0 0
    %87 = vperm.xlu0 %86, %v30
    %v88 = vpop.permute.xlu0 %87
    %89 = vset.pattern.permute.xlu0 0
    %90 = vperm.xlu0 %89, %v31
    %v91 = vpop.permute.xlu0 %90
    %92 = vset.pattern.permute.xlu0 0
    %93 = vperm.xlu0 %92, %v32
    %v94 = vpop.permute.xlu0 %93
    %95 = vset.pattern.permute.xlu0 0
    %96 = vperm.xlu0 %95, %v33
    %v97 = vpop.permute.xlu0 %96
    %98 = vset.pattern.permute.xlu0 0
    %99 = vperm.xlu0 %98, %v34
    %v100 = vpop.permute.xlu0 %99
    %101 = vset.pattern.permute.xlu0 0
    %102 = vperm.xlu0 %101, %v35
    %v103 = vpop.permute.xlu0 %102
    %104 = vset.pattern.permute.xlu0 0
    %105 = vperm.xlu0 %104, %v36
    %v106 = vpop.permute.xlu0 %105
    %107 = vset.pattern.permute.xlu0 0
    %108 = vperm.xlu0 %107, %v37
    %v109 = vpop.permute.xlu0 %108
    %110 = vset.pattern.permute.xlu0 0
    %111 = vperm.xlu0 %110, %v38
    %v112 = vpop.permute.xlu0 %111
    %113 = vset.pattern.permute.xlu0 0
    %114 = vperm.xlu0 %113, %v39
    %v115 = vpop.permute.xlu0 %114
    %116 = vset.pattern.permute.xlu0 0
    %117 = vperm.xlu0 %116, %v40
    %v118 = vpop.permute.xlu0 %117
    %119 = vset.pattern.permute.xlu0 0
    %120 = vperm.xlu0 %119, %v41
    %v121 = vpop.permute.xlu0 %120
    %122 = vset.pattern.permute.xlu0 0
    %123 = vperm.xlu0 %122, %v42
    %v124 = vpop.permute.xlu0 %123
    %125 = vset.pattern.permute.xlu0 0
    %126 = vperm.xlu0 %125, %v43
    %v127 = vpop.permute.xlu0 %126
    %128 = vset.pattern.permute.xlu0 0
    %129 = vperm.xlu0 %128, %v44
    %v130 = vpop.permute.xlu0 %129
    %131 = vset.pattern.permute.xlu0 0
    %132 = vperm.xlu0 %131, %v45
    %v133 = vpop.permute.xlu0 %132
    %134 = vset.pattern.permute.xlu0 0
    %135 = vperm.xlu0 %134, %v46
    %v136 = vpop.permute.xlu0 %135
    %137 = vset.pattern.permute.xlu0 0
    %138 = vperm.xlu0 %137, %v47
    %v139 = vpop.permute.xlu0 %138
    %140 = vset.pattern.permute.xlu0 0
    %141 = vperm.xlu0 %140, %v48
    %v142 = vpop.permute.xlu0 %141
    %143 = vset.pattern.permute.xlu0 0
    %144 = vperm.xlu0 %143, %v49
    %v145 = vpop.permute.xlu0 %144
    %146 = vset.pattern.permute.xlu0 0
    %147 = vperm.xlu0 %146, %v50
    %v148 = vpop.permute.xlu0 %147
    %149 = vset.pattern.permute.xlu0 0
    %150 = vperm.xlu0 %149, %v51
    %v151 = vpop.permute.xlu0 %150
    %vm152 = vcmp.eq.s32.totalorder %v53, %v58
    %vm153 = vcmp.eq.s32.totalorder %v54, %v58
    %vm154 = vcmp.eq.s32.totalorder %v55, %v58
    %vm155 = vcmp.eq.s32.totalorder %v53, %v61
    %vm156 = vcmp.eq.s32.totalorder %v54, %v61
    %vm157 = vcmp.eq.s32.totalorder %v55, %v61
    %vm158 = vcmp.eq.s32.totalorder %v53, %v64
    %vm159 = vcmp.eq.s32.totalorder %v54, %v64
    %vm160 = vcmp.eq.s32.totalorder %v55, %v64
    %vm161 = vcmp.eq.s32.totalorder %v53, %v67
    %vm162 = vcmp.eq.s32.totalorder %v54, %v67
    %vm163 = vcmp.eq.s32.totalorder %v55, %v67
    %vm164 = vcmp.eq.s32.totalorder %v53, %v70
    %vm165 = vcmp.eq.s32.totalorder %v54, %v70
    %vm166 = vcmp.eq.s32.totalorder %v55, %v70
    %vm167 = vcmp.eq.s32.totalorder %v53, %v73
    %vm168 = vcmp.eq.s32.totalorder %v54, %v73
    %vm169 = vcmp.eq.s32.totalorder %v55, %v73
    %vm170 = vcmp.eq.s32.totalorder %v53, %v76
    %vm171 = vcmp.eq.s32.totalorder %v54, %v76
    %vm172 = vcmp.eq.s32.totalorder %v55, %v76
    %vm173 = vcmp.eq.s32.totalorder %v53, %v79
    %vm174 = vcmp.eq.s32.totalorder %v54, %v79
    %vm175 = vcmp.eq.s32.totalorder %v55, %v79
    %vm176 = vcmp.eq.s32.totalorder %v53, %v82
    %vm177 = vcmp.eq.s32.totalorder %v54, %v82
    %vm178 = vcmp.eq.s32.totalorder %v55, %v82
    %vm179 = vcmp.eq.s32.totalorder %v53, %v85
    %vm180 = vcmp.eq.s32.totalorder %v54, %v85
    %vm181 = vcmp.eq.s32.totalorder %v55, %v85
    %vm182 = vcmp.eq.s32.totalorder %v53, %v88
    %vm183 = vcmp.eq.s32.totalorder %v54, %v88
    %vm184 = vcmp.eq.s32.totalorder %v55, %v88
    %vm185 = vcmp.eq.s32.totalorder %v53, %v91
    %vm186 = vcmp.eq.s32.totalorder %v54, %v91
    %vm187 = vcmp.eq.s32.totalorder %v55, %v91
    %vm188 = vcmp.eq.s32.totalorder %v53, %v94
    %vm189 = vcmp.eq.s32.totalorder %v54, %v94
    %vm190 = vcmp.eq.s32.totalorder %v55, %v94
    %vm191 = vcmp.eq.s32.totalorder %v53, %v97
    %vm192 = vcmp.eq.s32.totalorder %v54, %v97
    %vm193 = vcmp.eq.s32.totalorder %v55, %v97
    %vm194 = vcmp.eq.s32.totalorder %v53, %v100
    %vm195 = vcmp.eq.s32.totalorder %v54, %v100
    %vm196 = vcmp.eq.s32.totalorder %v55, %v100
    %vm197 = vcmp.eq.s32.totalorder %v53, %v103
    %vm198 = vcmp.eq.s32.totalorder %v54, %v103
    %vm199 = vcmp.eq.s32.totalorder %v55, %v103
    %vm200 = vcmp.eq.s32.totalorder %v53, %v106
    %vm201 = vcmp.eq.s32.totalorder %v54, %v106
    %vm202 = vcmp.eq.s32.totalorder %v55, %v106
    %vm203 = vcmp.eq.s32.totalorder %v53, %v109
    %vm204 = vcmp.eq.s32.totalorder %v54, %v109
    %vm205 = vcmp.eq.s32.totalorder %v55, %v109
    %vm206 = vcmp.eq.s32.totalorder %v53, %v112
    %vm207 = vcmp.eq.s32.totalorder %v54, %v112
    %vm208 = vcmp.eq.s32.totalorder %v55, %v112
    %vm209 = vcmp.eq.s32.totalorder %v53, %v115
    %vm210 = vcmp.eq.s32.totalorder %v54, %v115
    %vm211 = vcmp.eq.s32.totalorder %v55, %v115
    %vm212 = vcmp.eq.s32.totalorder %v53, %v118
    %vm213 = vcmp.eq.s32.totalorder %v54, %v118
    %vm214 = vcmp.eq.s32.totalorder %v55, %v118
    %vm215 = vcmp.eq.s32.totalorder %v53, %v121
    %vm216 = vcmp.eq.s32.totalorder %v54, %v121
    %vm217 = vcmp.eq.s32.totalorder %v55, %v121
    %vm218 = vcmp.eq.s32.totalorder %v53, %v124
    %vm219 = vcmp.eq.s32.totalorder %v54, %v124
    %vm220 = vcmp.eq.s32.totalorder %v55, %v124
    %vm221 = vcmp.eq.s32.totalorder %v53, %v127
    %vm222 = vcmp.eq.s32.totalorder %v54, %v127
    %vm223 = vcmp.eq.s32.totalorder %v55, %v127
    %vm224 = vcmp.eq.s32.totalorder %v53, %v130
    %vm225 = vcmp.eq.s32.totalorder %v54, %v130
    %vm226 = vcmp.eq.s32.totalorder %v55, %v130
    %vm227 = vcmp.eq.s32.totalorder %v53, %v133
    %vm228 = vcmp.eq.s32.totalorder %v54, %v133
    %vm229 = vcmp.eq.s32.totalorder %v55, %v133
    %vm230 = vcmp.eq.s32.totalorder %v53, %v136
    %vm231 = vcmp.eq.s32.totalorder %v54, %v136
    %vm232 = vcmp.eq.s32.totalorder %v55, %v136
    %vm233 = vcmp.eq.s32.totalorder %v53, %v139
    %vm234 = vcmp.eq.s32.totalorder %v54, %v139
    %vm235 = vcmp.eq.s32.totalorder %v55, %v139
    %vm236 = vcmp.eq.s32.totalorder %v53, %v142
    %vm237 = vcmp.eq.s32.totalorder %v54, %v142
    %vm238 = vcmp.eq.s32.totalorder %v55, %v142
    %vm239 = vcmp.eq.s32.totalorder %v53, %v145
    %vm240 = vcmp.eq.s32.totalorder %v54, %v145
    %vm241 = vcmp.eq.s32.totalorder %v55, %v145
    %vm242 = vcmp.eq.s32.totalorder %v53, %v148
    %vm243 = vcmp.eq.s32.totalorder %v54, %v148
    %vm244 = vcmp.eq.s32.totalorder %v55, %v148
    %vm245 = vcmp.eq.s32.totalorder %v53, %v151
    %vm246 = vcmp.eq.s32.totalorder %v54, %v151
    %vm247 = vcmp.eq.s32.totalorder %v55, %v151
    %v248 = vsel %vm152, 1, 0
    %v249 = vsel %vm153, 1, 0
    %v250 = vsel %vm154, 1, 0
    %v251 = vsel %vm155, 1, 0
    %v252 = vsel %vm156, 1, 0
    %v253 = vsel %vm157, 1, 0
    %v254 = vsel %vm158, 1, 0
    %v255 = vsel %vm159, 1, 0
    %v256 = vsel %vm160, 1, 0
    %v257 = vsel %vm161, 1, 0
    %v258 = vsel %vm162, 1, 0
    %v259 = vsel %vm163, 1, 0
    %v260 = vsel %vm164, 1, 0
    %v261 = vsel %vm165, 1, 0
    %v262 = vsel %vm166, 1, 0
    %v263 = vsel %vm167, 1, 0
    %v264 = vsel %vm168, 1, 0
    %v265 = vsel %vm169, 1, 0
    %v266 = vsel %vm170, 1, 0
    %v267 = vsel %vm171, 1, 0
    %v268 = vsel %vm172, 1, 0
    %v269 = vsel %vm173, 1, 0
    %v270 = vsel %vm174, 1, 0
    %v271 = vsel %vm175, 1, 0
    %v272 = vsel %vm176, 1, 0
    %v273 = vsel %vm177, 1, 0
    %v274 = vsel %vm178, 1, 0
    %v275 = vsel %vm179, 1, 0
    %v276 = vsel %vm180, 1, 0
    %v277 = vsel %vm181, 1, 0
    %v278 = vsel %vm182, 1, 0
    %v279 = vsel %vm183, 1, 0
    %v280 = vsel %vm184, 1, 0
    %v281 = vsel %vm185, 1, 0
    %v282 = vsel %vm186, 1, 0
    %v283 = vsel %vm187, 1, 0
    %v284 = vsel %vm188, 1, 0
    %v285 = vsel %vm189, 1, 0
    %v286 = vsel %vm190, 1, 0
    %v287 = vsel %vm191, 1, 0
    %v288 = vsel %vm192, 1, 0
    %v289 = vsel %vm193, 1, 0
    %v290 = vsel %vm194, 1, 0
    %v291 = vsel %vm195, 1, 0
    %v292 = vsel %vm196, 1, 0
    %v293 = vsel %vm197, 1, 0
    %v294 = vsel %vm198, 1, 0
    %v295 = vsel %vm199, 1, 0
    %v296 = vsel %vm200, 1, 0
    %v297 = vsel %vm201, 1, 0
    %v298 = vsel %vm202, 1, 0
    %v299 = vsel %vm203, 1, 0
    %v300 = vsel %vm204, 1, 0
    %v301 = vsel %vm205, 1, 0
    %v302 = vsel %vm206, 1, 0
    %v303 = vsel %vm207, 1, 0
    %v304 = vsel %vm208, 1, 0
    %v305 = vsel %vm209, 1, 0
    %v306 = vsel %vm210, 1, 0
    %v307 = vsel %vm211, 1, 0
    %v308 = vsel %vm212, 1, 0
    %v309 = vsel %vm213, 1, 0
    %v310 = vsel %vm214, 1, 0
    %v311 = vsel %vm215, 1, 0
    %v312 = vsel %vm216, 1, 0
    %v313 = vsel %vm217, 1, 0
    %v314 = vsel %vm218, 1, 0
    %v315 = vsel %vm219, 1, 0
    %v316 = vsel %vm220, 1, 0
    %v317 = vsel %vm221, 1, 0
    %v318 = vsel %vm222, 1, 0
    %v319 = vsel %vm223, 1, 0
    %v320 = vsel %vm224, 1, 0
    %v321 = vsel %vm225, 1, 0
    %v322 = vsel %vm226, 1, 0
    %v323 = vsel %vm227, 1, 0
    %v324 = vsel %vm228, 1, 0
    %v325 = vsel %vm229, 1, 0
    %v326 = vsel %vm230, 1, 0
    %v327 = vsel %vm231, 1, 0
    %v328 = vsel %vm232, 1, 0
    %v329 = vsel %vm233, 1, 0
    %v330 = vsel %vm234, 1, 0
    %v331 = vsel %vm235, 1, 0
    %v332 = vsel %vm236, 1, 0
    %v333 = vsel %vm237, 1, 0
    %v334 = vsel %vm238, 1, 0
    %v335 = vsel %vm239, 1, 0
    %v336 = vsel %vm240, 1, 0
    %v337 = vsel %vm241, 1, 0
    %v338 = vsel %vm242, 1, 0
    %v339 = vsel %vm243, 1, 0
    %v340 = vsel %vm244, 1, 0
    %v341 = vsel %vm245, 1, 0
    %v342 = vsel %vm246, 1, 0
    %v343 = vsel %vm247, 1, 0
    %v344 = vcvt.s32.f32 %v248
    %v345 = vcvt.s32.f32 %v249
    %v346 = vcvt.s32.f32 %v250
    %v347 = vcvt.s32.f32 %v251
    %v348 = vcvt.s32.f32 %v252
    %v349 = vcvt.s32.f32 %v253
    %v350 = vcvt.s32.f32 %v254
    %v351 = vcvt.s32.f32 %v255
    %v352 = vcvt.s32.f32 %v256
    %v353 = vcvt.s32.f32 %v257
    %v354 = vcvt.s32.f32 %v258
    %v355 = vcvt.s32.f32 %v259
    %v356 = vcvt.s32.f32 %v260
    %v357 = vcvt.s32.f32 %v261
    %v358 = vcvt.s32.f32 %v262
    %v359 = vcvt.s32.f32 %v263
    %v360 = vcvt.s32.f32 %v264
    %v361 = vcvt.s32.f32 %v265
    %v362 = vcvt.s32.f32 %v266
    %v363 = vcvt.s32.f32 %v267
    %v364 = vcvt.s32.f32 %v268
    %v365 = vcvt.s32.f32 %v269
    %v366 = vcvt.s32.f32 %v270
    %v367 = vcvt.s32.f32 %v271
    %v368 = vcvt.s32.f32 %v272
    %v369 = vcvt.s32.f32 %v273
    %v370 = vcvt.s32.f32 %v274
    %v371 = vcvt.s32.f32 %v275
    %v372 = vcvt.s32.f32 %v276
    %v373 = vcvt.s32.f32 %v277
    %v374 = vcvt.s32.f32 %v278
    %v375 = vcvt.s32.f32 %v279
    %v376 = vcvt.s32.f32 %v280
    %v377 = vcvt.s32.f32 %v281
    %v378 = vcvt.s32.f32 %v282
    %v379 = vcvt.s32.f32 %v283
    %v380 = vcvt.s32.f32 %v284
    %v381 = vcvt.s32.f32 %v285
    %v382 = vcvt.s32.f32 %v286
    %v383 = vcvt.s32.f32 %v287
    %v384 = vcvt.s32.f32 %v288
    %v385 = vcvt.s32.f32 %v289
    %v386 = vcvt.s32.f32 %v290
    %v387 = vcvt.s32.f32 %v291
    %v388 = vcvt.s32.f32 %v292
    %v389 = vcvt.s32.f32 %v293
    %v390 = vcvt.s32.f32 %v294
    %v391 = vcvt.s32.f32 %v295
    %v392 = vcvt.s32.f32 %v296
    %v393 = vcvt.s32.f32 %v297
    %v394 = vcvt.s32.f32 %v298
    %v395 = vcvt.s32.f32 %v299
    %v396 = vcvt.s32.f32 %v300
    %v397 = vcvt.s32.f32 %v301
    %v398 = vcvt.s32.f32 %v302
    %v399 = vcvt.s32.f32 %v303
    %v400 = vcvt.s32.f32 %v304
    %v401 = vcvt.s32.f32 %v305
    %v402 = vcvt.s32.f32 %v306
    %v403 = vcvt.s32.f32 %v307
    %v404 = vcvt.s32.f32 %v308
    %v405 = vcvt.s32.f32 %v309
    %v406 = vcvt.s32.f32 %v310
    %v407 = vcvt.s32.f32 %v311
    %v408 = vcvt.s32.f32 %v312
    %v409 = vcvt.s32.f32 %v313
    %v410 = vcvt.s32.f32 %v314
    %v411 = vcvt.s32.f32 %v315
    %v412 = vcvt.s32.f32 %v316
    %v413 = vcvt.s32.f32 %v317
    %v414 = vcvt.s32.f32 %v318
    %v415 = vcvt.s32.f32 %v319
    %v416 = vcvt.s32.f32 %v320
    %v417 = vcvt.s32.f32 %v321
    %v418 = vcvt.s32.f32 %v322
    %v419 = vcvt.s32.f32 %v323
    %v420 = vcvt.s32.f32 %v324
    %v421 = vcvt.s32.f32 %v325
    %v422 = vcvt.s32.f32 %v326
    %v423 = vcvt.s32.f32 %v327
    %v424 = vcvt.s32.f32 %v328
    %v425 = vcvt.s32.f32 %v329
    %v426 = vcvt.s32.f32 %v330
    %v427 = vcvt.s32.f32 %v331
    %v428 = vcvt.s32.f32 %v332
    %v429 = vcvt.s32.f32 %v333
    %v430 = vcvt.s32.f32 %v334
    %v431 = vcvt.s32.f32 %v335
    %v432 = vcvt.s32.f32 %v336
    %v433 = vcvt.s32.f32 %v337
    %v434 = vcvt.s32.f32 %v338
    %v435 = vcvt.s32.f32 %v339
    %v436 = vcvt.s32.f32 %v340
    %v437 = vcvt.s32.f32 %v341
    %v438 = vcvt.s32.f32 %v342
    %v439 = vcvt.s32.f32 %v343
    %v440 = vpack.c.bf16 %v347, %v344
    %v441 = vpack.c.bf16 %v348, %v345
    %v442 = vpack.c.bf16 %v349, %v346
    %v443 = vpack.c.bf16 %v353, %v350
    %v444 = vpack.c.bf16 %v354, %v351
    %v445 = vpack.c.bf16 %v355, %v352
    %v446 = vpack.c.bf16 %v359, %v356
    %v447 = vpack.c.bf16 %v360, %v357
    %v448 = vpack.c.bf16 %v361, %v358
    %v449 = vpack.c.bf16 %v365, %v362
    %v450 = vpack.c.bf16 %v366, %v363
    %v451 = vpack.c.bf16 %v367, %v364
    %v452 = vpack.c.bf16 %v371, %v368
    %v453 = vpack.c.bf16 %v372, %v369
    %v454 = vpack.c.bf16 %v373, %v370
    %v455 = vpack.c.bf16 %v377, %v374
    %v456 = vpack.c.bf16 %v378, %v375
    %v457 = vpack.c.bf16 %v379, %v376
    %v458 = vpack.c.bf16 %v383, %v380
    %v459 = vpack.c.bf16 %v384, %v381
    %v460 = vpack.c.bf16 %v385, %v382
    %v461 = vpack.c.bf16 %v389, %v386
    %v462 = vpack.c.bf16 %v390, %v387
    %v463 = vpack.c.bf16 %v391, %v388
    %v464 = vpack.c.bf16 %v395, %v392
    %v465 = vpack.c.bf16 %v396, %v393
    %v466 = vpack.c.bf16 %v397, %v394
    %v467 = vpack.c.bf16 %v401, %v398
    %v468 = vpack.c.bf16 %v402, %v399
    %v469 = vpack.c.bf16 %v403, %v400
    %v470 = vpack.c.bf16 %v407, %v404
    %v471 = vpack.c.bf16 %v408, %v405
    %v472 = vpack.c.bf16 %v409, %v406
    %v473 = vpack.c.bf16 %v413, %v410
    %v474 = vpack.c.bf16 %v414, %v411
    %v475 = vpack.c.bf16 %v415, %v412
    %v476 = vpack.c.bf16 %v419, %v416
    %v477 = vpack.c.bf16 %v420, %v417
    %v478 = vpack.c.bf16 %v421, %v418
    %v479 = vpack.c.bf16 %v425, %v422
    %v480 = vpack.c.bf16 %v426, %v423
    %v481 = vpack.c.bf16 %v427, %v424
    %v482 = vpack.c.bf16 %v431, %v428
    %v483 = vpack.c.bf16 %v432, %v429
    %v484 = vpack.c.bf16 %v433, %v430
    %v485 = vpack.c.bf16 %v437, %v434
    %v486 = vpack.c.bf16 %v438, %v435
    %v487 = vpack.c.bf16 %v439, %v436
    %488 = vset.pattern.permute.xlu0 1
    %489 = vperm.xlu0 %488, %v20
    %v490 = vpop.permute.xlu0 %489
    %491 = vset.pattern.permute.xlu0 1
    %492 = vperm.xlu0 %491, %v21
    %v493 = vpop.permute.xlu0 %492
    %494 = vset.pattern.permute.xlu0 1
    %495 = vperm.xlu0 %494, %v22
    %v496 = vpop.permute.xlu0 %495
    %497 = vset.pattern.permute.xlu0 1
    %498 = vperm.xlu0 %497, %v23
    %v499 = vpop.permute.xlu0 %498
    %500 = vset.pattern.permute.xlu0 1
    %501 = vperm.xlu0 %500, %v24
    %v502 = vpop.permute.xlu0 %501
    %503 = vset.pattern.permute.xlu0 1
    %504 = vperm.xlu0 %503, %v25
    %v505 = vpop.permute.xlu0 %504
    %506 = vset.pattern.permute.xlu0 1
    %507 = vperm.xlu0 %506, %v26
    %v508 = vpop.permute.xlu0 %507
    %509 = vset.pattern.permute.xlu0 1
    %510 = vperm.xlu0 %509, %v27
    %v511 = vpop.permute.xlu0 %510
    %512 = vset.pattern.permute.xlu0 1
    %513 = vperm.xlu0 %512, %v28
    %v514 = vpop.permute.xlu0 %513
    %515 = vset.pattern.permute.xlu0 1
    %516 = vperm.xlu0 %515, %v29
    %v517 = vpop.permute.xlu0 %516
    %518 = vset.pattern.permute.xlu0 1
    %519 = vperm.xlu0 %518, %v30
    %v520 = vpop.permute.xlu0 %519
    %521 = vset.pattern.permute.xlu0 1
    %522 = vperm.xlu0 %521, %v31
    %v523 = vpop.permute.xlu0 %522
    %524 = vset.pattern.permute.xlu0 1
    %525 = vperm.xlu0 %524, %v32
    %v526 = vpop.permute.xlu0 %525
    %527 = vset.pattern.permute.xlu0 1
    %528 = vperm.xlu0 %527, %v33
    %v529 = vpop.permute.xlu0 %528
    %530 = vset.pattern.permute.xlu0 1
    %531 = vperm.xlu0 %530, %v34
    %v532 = vpop.permute.xlu0 %531
    %533 = vset.pattern.permute.xlu0 1
    %534 = vperm.xlu0 %533, %v35
    %v535 = vpop.permute.xlu0 %534
    %536 = vset.pattern.permute.xlu0 1
    %537 = vperm.xlu0 %536, %v36
    %v538 = vpop.permute.xlu0 %537
    %539 = vset.pattern.permute.xlu0 1
    %540 = vperm.xlu0 %539, %v37
    %v541 = vpop.permute.xlu0 %540
    %542 = vset.pattern.permute.xlu0 1
    %543 = vperm.xlu0 %542, %v38
    %v544 = vpop.permute.xlu0 %543
    %545 = vset.pattern.permute.xlu0 1
    %546 = vperm.xlu0 %545, %v39
    %v547 = vpop.permute.xlu0 %546
    %548 = vset.pattern.permute.xlu0 1
    %549 = vperm.xlu0 %548, %v40
    %v550 = vpop.permute.xlu0 %549
    %551 = vset.pattern.permute.xlu0 1
    %552 = vperm.xlu0 %551, %v41
    %v553 = vpop.permute.xlu0 %552
    %554 = vset.pattern.permute.xlu0 1
    %555 = vperm.xlu0 %554, %v42
    %v556 = vpop.permute.xlu0 %555
    %557 = vset.pattern.permute.xlu0 1
    %558 = vperm.xlu0 %557, %v43
    %v559 = vpop.permute.xlu0 %558
    %560 = vset.pattern.permute.xlu0 1
    %561 = vperm.xlu0 %560, %v44
    %v562 = vpop.permute.xlu0 %561
    %563 = vset.pattern.permute.xlu0 1
    %564 = vperm.xlu0 %563, %v45
    %v565 = vpop.permute.xlu0 %564
    %566 = vset.pattern.permute.xlu0 1
    %567 = vperm.xlu0 %566, %v46
    %v568 = vpop.permute.xlu0 %567
    %569 = vset.pattern.permute.xlu0 1
    %570 = vperm.xlu0 %569, %v47
    %v571 = vpop.permute.xlu0 %570
    %572 = vset.pattern.permute.xlu0 1
    %573 = vperm.xlu0 %572, %v48
    %v574 = vpop.permute.xlu0 %573
    %575 = vset.pattern.permute.xlu0 1
    %576 = vperm.xlu0 %575, %v49
    %v577 = vpop.permute.xlu0 %576
    %578 = vset.pattern.permute.xlu0 1
    %579 = vperm.xlu0 %578, %v50
    %v580 = vpop.permute.xlu0 %579
    %581 = vset.pattern.permute.xlu0 1
    %582 = vperm.xlu0 %581, %v51
    %v583 = vpop.permute.xlu0 %582
    %vm584 = vcmp.eq.s32.totalorder %v53, %v490
    %vm585 = vcmp.eq.s32.totalorder %v54, %v490
    %vm586 = vcmp.eq.s32.totalorder %v55, %v490
    %vm587 = vcmp.eq.s32.totalorder %v53, %v493
    %vm588 = vcmp.eq.s32.totalorder %v54, %v493
    %vm589 = vcmp.eq.s32.totalorder %v55, %v493
    %vm590 = vcmp.eq.s32.totalorder %v53, %v496
    %vm591 = vcmp.eq.s32.totalorder %v54, %v496
    %vm592 = vcmp.eq.s32.totalorder %v55, %v496
    %vm593 = vcmp.eq.s32.totalorder %v53, %v499
    %vm594 = vcmp.eq.s32.totalorder %v54, %v499
    %vm595 = vcmp.eq.s32.totalorder %v55, %v499
    %vm596 = vcmp.eq.s32.totalorder %v53, %v502
    %vm597 = vcmp.eq.s32.totalorder %v54, %v502
    %vm598 = vcmp.eq.s32.totalorder %v55, %v502
    %vm599 = vcmp.eq.s32.totalorder %v53, %v505
    %vm600 = vcmp.eq.s32.totalorder %v54, %v505
    %vm601 = vcmp.eq.s32.totalorder %v55, %v505
    %vm602 = vcmp.eq.s32.totalorder %v53, %v508
    %vm603 = vcmp.eq.s32.totalorder %v54, %v508
    %vm604 = vcmp.eq.s32.totalorder %v55, %v508
    %vm605 = vcmp.eq.s32.totalorder %v53, %v511
    %vm606 = vcmp.eq.s32.totalorder %v54, %v511
    %vm607 = vcmp.eq.s32.totalorder %v55, %v511
    %vm608 = vcmp.eq.s32.totalorder %v53, %v514
    %vm609 = vcmp.eq.s32.totalorder %v54, %v514
    %vm610 = vcmp.eq.s32.totalorder %v55, %v514
    %vm611 = vcmp.eq.s32.totalorder %v53, %v517
    %vm612 = vcmp.eq.s32.totalorder %v54, %v517
    %vm613 = vcmp.eq.s32.totalorder %v55, %v517
    %vm614 = vcmp.eq.s32.totalorder %v53, %v520
    %vm615 = vcmp.eq.s32.totalorder %v54, %v520
    %vm616 = vcmp.eq.s32.totalorder %v55, %v520
    %vm617 = vcmp.eq.s32.totalorder %v53, %v523
    %vm618 = vcmp.eq.s32.totalorder %v54, %v523
    %vm619 = vcmp.eq.s32.totalorder %v55, %v523
    %vm620 = vcmp.eq.s32.totalorder %v53, %v526
    %vm621 = vcmp.eq.s32.totalorder %v54, %v526
    %vm622 = vcmp.eq.s32.totalorder %v55, %v526
    %vm623 = vcmp.eq.s32.totalorder %v53, %v529
    %vm624 = vcmp.eq.s32.totalorder %v54, %v529
    %vm625 = vcmp.eq.s32.totalorder %v55, %v529
    %vm626 = vcmp.eq.s32.totalorder %v53, %v532
    %vm627 = vcmp.eq.s32.totalorder %v54, %v532
    %vm628 = vcmp.eq.s32.totalorder %v55, %v532
    %vm629 = vcmp.eq.s32.totalorder %v53, %v535
    %vm630 = vcmp.eq.s32.totalorder %v54, %v535
    %vm631 = vcmp.eq.s32.totalorder %v55, %v535
    %vm632 = vcmp.eq.s32.totalorder %v53, %v538
    %vm633 = vcmp.eq.s32.totalorder %v54, %v538
    %vm634 = vcmp.eq.s32.totalorder %v55, %v538
    %vm635 = vcmp.eq.s32.totalorder %v53, %v541
    %vm636 = vcmp.eq.s32.totalorder %v54, %v541
    %vm637 = vcmp.eq.s32.totalorder %v55, %v541
    %vm638 = vcmp.eq.s32.totalorder %v53, %v544
    %vm639 = vcmp.eq.s32.totalorder %v54, %v544
    %vm640 = vcmp.eq.s32.totalorder %v55, %v544
    %vm641 = vcmp.eq.s32.totalorder %v53, %v547
    %vm642 = vcmp.eq.s32.totalorder %v54, %v547
    %vm643 = vcmp.eq.s32.totalorder %v55, %v547
    %vm644 = vcmp.eq.s32.totalorder %v53, %v550
    %vm645 = vcmp.eq.s32.totalorder %v54, %v550
    %vm646 = vcmp.eq.s32.totalorder %v55, %v550
    %vm647 = vcmp.eq.s32.totalorder %v53, %v553
    %vm648 = vcmp.eq.s32.totalorder %v54, %v553
    %vm649 = vcmp.eq.s32.totalorder %v55, %v553
    %vm650 = vcmp.eq.s32.totalorder %v53, %v556
    %vm651 = vcmp.eq.s32.totalorder %v54, %v556
    %vm652 = vcmp.eq.s32.totalorder %v55, %v556
    %vm653 = vcmp.eq.s32.totalorder %v53, %v559
    %vm654 = vcmp.eq.s32.totalorder %v54, %v559
    %vm655 = vcmp.eq.s32.totalorder %v55, %v559
    %vm656 = vcmp.eq.s32.totalorder %v53, %v562
    %vm657 = vcmp.eq.s32.totalorder %v54, %v562
    %vm658 = vcmp.eq.s32.totalorder %v55, %v562
    %vm659 = vcmp.eq.s32.totalorder %v53, %v565
    %vm660 = vcmp.eq.s32.totalorder %v54, %v565
    %vm661 = vcmp.eq.s32.totalorder %v55, %v565
    %vm662 = vcmp.eq.s32.totalorder %v53, %v568
    %vm663 = vcmp.eq.s32.totalorder %v54, %v568
    %vm664 = vcmp.eq.s32.totalorder %v55, %v568
    %vm665 = vcmp.eq.s32.totalorder %v53, %v571
    %vm666 = vcmp.eq.s32.totalorder %v54, %v571
    %vm667 = vcmp.eq.s32.totalorder %v55, %v571
    %vm668 = vcmp.eq.s32.totalorder %v53, %v574
    %vm669 = vcmp.eq.s32.totalorder %v54, %v574
    %vm670 = vcmp.eq.s32.totalorder %v55, %v574
    %vm671 = vcmp.eq.s32.totalorder %v53, %v577
    %vm672 = vcmp.eq.s32.totalorder %v54, %v577
    %vm673 = vcmp.eq.s32.totalorder %v55, %v577
    %vm674 = vcmp.eq.s32.totalorder %v53, %v580
    %vm675 = vcmp.eq.s32.totalorder %v54, %v580
    %vm676 = vcmp.eq.s32.totalorder %v55, %v580
    %vm677 = vcmp.eq.s32.totalorder %v53, %v583
    %vm678 = vcmp.eq.s32.totalorder %v54, %v583
    %vm679 = vcmp.eq.s32.totalorder %v55, %v583
    %v680 = vsel %vm584, 1, 0
    %v681 = vsel %vm585, 1, 0
    %v682 = vsel %vm586, 1, 0
    %v683 = vsel %vm587, 1, 0
    %v684 = vsel %vm588, 1, 0
    %v685 = vsel %vm589, 1, 0
    %v686 = vsel %vm590, 1, 0
    %v687 = vsel %vm591, 1, 0
    %v688 = vsel %vm592, 1, 0
    %v689 = vsel %vm593, 1, 0
    %v690 = vsel %vm594, 1, 0
    %v691 = vsel %vm595, 1, 0
    %v692 = vsel %vm596, 1, 0
    %v693 = vsel %vm597, 1, 0
    %v694 = vsel %vm598, 1, 0
    %v695 = vsel %vm599, 1, 0
    %v696 = vsel %vm600, 1, 0
    %v697 = vsel %vm601, 1, 0
    %v698 = vsel %vm602, 1, 0
    %v699 = vsel %vm603, 1, 0
    %v700 = vsel %vm604, 1, 0
    %v701 = vsel %vm605, 1, 0
    %v702 = vsel %vm606, 1, 0
    %v703 = vsel %vm607, 1, 0
    %v704 = vsel %vm608, 1, 0
    %v705 = vsel %vm609, 1, 0
    %v706 = vsel %vm610, 1, 0
    %v707 = vsel %vm611, 1, 0
    %v708 = vsel %vm612, 1, 0
    %v709 = vsel %vm613, 1, 0
    %v710 = vsel %vm614, 1, 0
    %v711 = vsel %vm615, 1, 0
    %v712 = vsel %vm616, 1, 0
    %v713 = vsel %vm617, 1, 0
    %v714 = vsel %vm618, 1, 0
    %v715 = vsel %vm619, 1, 0
    %v716 = vsel %vm620, 1, 0
    %v717 = vsel %vm621, 1, 0
    %v718 = vsel %vm622, 1, 0
    %v719 = vsel %vm623, 1, 0
    %v720 = vsel %vm624, 1, 0
    %v721 = vsel %vm625, 1, 0
    %v722 = vsel %vm626, 1, 0
    %v723 = vsel %vm627, 1, 0
    %v724 = vsel %vm628, 1, 0
    %v725 = vsel %vm629, 1, 0
    %v726 = vsel %vm630, 1, 0
    %v727 = vsel %vm631, 1, 0
    %v728 = vsel %vm632, 1, 0
    %v729 = vsel %vm633, 1, 0
    %v730 = vsel %vm634, 1, 0
    %v731 = vsel %vm635, 1, 0
    %v732 = vsel %vm636, 1, 0
    %v733 = vsel %vm637, 1, 0
    %v734 = vsel %vm638, 1, 0
    %v735 = vsel %vm639, 1, 0
    %v736 = vsel %vm640, 1, 0
    %v737 = vsel %vm641, 1, 0
    %v738 = vsel %vm642, 1, 0
    %v739 = vsel %vm643, 1, 0
    %v740 = vsel %vm644, 1, 0
    %v741 = vsel %vm645, 1, 0
    %v742 = vsel %vm646, 1, 0
    %v743 = vsel %vm647, 1, 0
    %v744 = vsel %vm648, 1, 0
    %v745 = vsel %vm649, 1, 0
    %v746 = vsel %vm650, 1, 0
    %v747 = vsel %vm651, 1, 0
    %v748 = vsel %vm652, 1, 0
    %v749 = vsel %vm653, 1, 0
    %v750 = vsel %vm654, 1, 0
    %v751 = vsel %vm655, 1, 0
    %v752 = vsel %vm656, 1, 0
    %v753 = vsel %vm657, 1, 0
    %v754 = vsel %vm658, 1, 0
    %v755 = vsel %vm659, 1, 0
    %v756 = vsel %vm660, 1, 0
    %v757 = vsel %vm661, 1, 0
    %v758 = vsel %vm662, 1, 0
    %v759 = vsel %vm663, 1, 0
    %v760 = vsel %vm664, 1, 0
    %v761 = vsel %vm665, 1, 0
    %v762 = vsel %vm666, 1, 0
    %v763 = vsel %vm667, 1, 0
    %v764 = vsel %vm668, 1, 0
    %v765 = vsel %vm669, 1, 0
    %v766 = vsel %vm670, 1, 0
    %v767 = vsel %vm671, 1, 0
    %v768 = vsel %vm672, 1, 0
    %v769 = vsel %vm673, 1, 0
    %v770 = vsel %vm674, 1, 0
    %v771 = vsel %vm675, 1, 0
    %v772 = vsel %vm676, 1, 0
    %v773 = vsel %vm677, 1, 0
    %v774 = vsel %vm678, 1, 0
    %v775 = vsel %vm679, 1, 0
    %v776 = vcvt.s32.f32 %v680
    %v777 = vcvt.s32.f32 %v681
    %v778 = vcvt.s32.f32 %v682
    %v779 = vcvt.s32.f32 %v683
    %v780 = vcvt.s32.f32 %v684
    %v781 = vcvt.s32.f32 %v685
    %v782 = vcvt.s32.f32 %v686
    %v783 = vcvt.s32.f32 %v687
    %v784 = vcvt.s32.f32 %v688
    %v785 = vcvt.s32.f32 %v689
    %v786 = vcvt.s32.f32 %v690
    %v787 = vcvt.s32.f32 %v691
    %v788 = vcvt.s32.f32 %v692
    %v789 = vcvt.s32.f32 %v693
    %v790 = vcvt.s32.f32 %v694
    %v791 = vcvt.s32.f32 %v695
    %v792 = vcvt.s32.f32 %v696
    %v793 = vcvt.s32.f32 %v697
    %v794 = vcvt.s32.f32 %v698
    %v795 = vcvt.s32.f32 %v699
    %v796 = vcvt.s32.f32 %v700
    %v797 = vcvt.s32.f32 %v701
    %v798 = vcvt.s32.f32 %v702
    %v799 = vcvt.s32.f32 %v703
    %v800 = vcvt.s32.f32 %v704
    %v801 = vcvt.s32.f32 %v705
    %v802 = vcvt.s32.f32 %v706
    %v803 = vcvt.s32.f32 %v707
    %v804 = vcvt.s32.f32 %v708
    %v805 = vcvt.s32.f32 %v709
    %v806 = vcvt.s32.f32 %v710
    %v807 = vcvt.s32.f32 %v711
    %v808 = vcvt.s32.f32 %v712
    %v809 = vcvt.s32.f32 %v713
    %v810 = vcvt.s32.f32 %v714
    %v811 = vcvt.s32.f32 %v715
    %v812 = vcvt.s32.f32 %v716
    %v813 = vcvt.s32.f32 %v717
    %v814 = vcvt.s32.f32 %v718
    %v815 = vcvt.s32.f32 %v719
    %v816 = vcvt.s32.f32 %v720
    %v817 = vcvt.s32.f32 %v721
    %v818 = vcvt.s32.f32 %v722
    %v819 = vcvt.s32.f32 %v723
    %v820 = vcvt.s32.f32 %v724
    %v821 = vcvt.s32.f32 %v725
    %v822 = vcvt.s32.f32 %v726
    %v823 = vcvt.s32.f32 %v727
    %v824 = vcvt.s32.f32 %v728
    %v825 = vcvt.s32.f32 %v729
    %v826 = vcvt.s32.f32 %v730
    %v827 = vcvt.s32.f32 %v731
    %v828 = vcvt.s32.f32 %v732
    %v829 = vcvt.s32.f32 %v733
    %v830 = vcvt.s32.f32 %v734
    %v831 = vcvt.s32.f32 %v735
    %v832 = vcvt.s32.f32 %v736
    %v833 = vcvt.s32.f32 %v737
    %v834 = vcvt.s32.f32 %v738
    %v835 = vcvt.s32.f32 %v739
    %v836 = vcvt.s32.f32 %v740
    %v837 = vcvt.s32.f32 %v741
    %v838 = vcvt.s32.f32 %v742
    %v839 = vcvt.s32.f32 %v743
    %v840 = vcvt.s32.f32 %v744
    %v841 = vcvt.s32.f32 %v745
    %v842 = vcvt.s32.f32 %v746
    %v843 = vcvt.s32.f32 %v747
    %v844 = vcvt.s32.f32 %v748
    %v845 = vcvt.s32.f32 %v749
    %v846 = vcvt.s32.f32 %v750
    %v847 = vcvt.s32.f32 %v751
    %v848 = vcvt.s32.f32 %v752
    %v849 = vcvt.s32.f32 %v753
    %v850 = vcvt.s32.f32 %v754
    %v851 = vcvt.s32.f32 %v755
    %v852 = vcvt.s32.f32 %v756
    %v853 = vcvt.s32.f32 %v757
    %v854 = vcvt.s32.f32 %v758
    %v855 = vcvt.s32.f32 %v759
    %v856 = vcvt.s32.f32 %v760
    %v857 = vcvt.s32.f32 %v761
    %v858 = vcvt.s32.f32 %v762
    %v859 = vcvt.s32.f32 %v763
    %v860 = vcvt.s32.f32 %v764
    %v861 = vcvt.s32.f32 %v765
    %v862 = vcvt.s32.f32 %v766
    %v863 = vcvt.s32.f32 %v767
    %v864 = vcvt.s32.f32 %v768
    %v865 = vcvt.s32.f32 %v769
    %v866 = vcvt.s32.f32 %v770
    %v867 = vcvt.s32.f32 %v771
    %v868 = vcvt.s32.f32 %v772
    %v869 = vcvt.s32.f32 %v773
    %v870 = vcvt.s32.f32 %v774
    %v871 = vcvt.s32.f32 %v775
    %v872 = vpack.c.bf16 %v779, %v776
    %v873 = vpack.c.bf16 %v780, %v777
    %v874 = vpack.c.bf16 %v781, %v778
    %v875 = vpack.c.bf16 %v785, %v782
    %v876 = vpack.c.bf16 %v786, %v783
    %v877 = vpack.c.bf16 %v787, %v784
    %v878 = vpack.c.bf16 %v791, %v788
    %v879 = vpack.c.bf16 %v792, %v789
    %v880 = vpack.c.bf16 %v793, %v790
    %v881 = vpack.c.bf16 %v797, %v794
    %v882 = vpack.c.bf16 %v798, %v795
    %v883 = vpack.c.bf16 %v799, %v796
    %v884 = vpack.c.bf16 %v803, %v800
    %v885 = vpack.c.bf16 %v804, %v801
    %v886 = vpack.c.bf16 %v805, %v802
    %v887 = vpack.c.bf16 %v809, %v806
    %v888 = vpack.c.bf16 %v810, %v807
    %v889 = vpack.c.bf16 %v811, %v808
    %v890 = vpack.c.bf16 %v815, %v812
    %v891 = vpack.c.bf16 %v816, %v813
    %v892 = vpack.c.bf16 %v817, %v814
    %v893 = vpack.c.bf16 %v821, %v818
    %v894 = vpack.c.bf16 %v822, %v819
    %v895 = vpack.c.bf16 %v823, %v820
    %v896 = vpack.c.bf16 %v827, %v824
    %v897 = vpack.c.bf16 %v828, %v825
    %v898 = vpack.c.bf16 %v829, %v826
    %v899 = vpack.c.bf16 %v833, %v830
    %v900 = vpack.c.bf16 %v834, %v831
    %v901 = vpack.c.bf16 %v835, %v832
    %v902 = vpack.c.bf16 %v839, %v836
    %v903 = vpack.c.bf16 %v840, %v837
    %v904 = vpack.c.bf16 %v841, %v838
    %v905 = vpack.c.bf16 %v845, %v842
    %v906 = vpack.c.bf16 %v846, %v843
    %v907 = vpack.c.bf16 %v847, %v844
    %v908 = vpack.c.bf16 %v851, %v848
    %v909 = vpack.c.bf16 %v852, %v849
    %v910 = vpack.c.bf16 %v853, %v850
    %v911 = vpack.c.bf16 %v857, %v854
    %v912 = vpack.c.bf16 %v858, %v855
    %v913 = vpack.c.bf16 %v859, %v856
    %v914 = vpack.c.bf16 %v863, %v860
    %v915 = vpack.c.bf16 %v864, %v861
    %v916 = vpack.c.bf16 %v865, %v862
    %v917 = vpack.c.bf16 %v869, %v866
    %v918 = vpack.c.bf16 %v870, %v867
    %v919 = vpack.c.bf16 %v871, %v868
    %v920 = vadd.bf16 %v440, %v872
    %v921 = vadd.bf16 %v441, %v873
    %v922 = vadd.bf16 %v442, %v874
    %v923 = vadd.bf16 %v443, %v875
    %v924 = vadd.bf16 %v444, %v876
    %v925 = vadd.bf16 %v445, %v877
    %v926 = vadd.bf16 %v446, %v878
    %v927 = vadd.bf16 %v447, %v879
    %v928 = vadd.bf16 %v448, %v880
    %v929 = vadd.bf16 %v449, %v881
    %v930 = vadd.bf16 %v450, %v882
    %v931 = vadd.bf16 %v451, %v883
    %v932 = vadd.bf16 %v452, %v884
    %v933 = vadd.bf16 %v453, %v885
    %v934 = vadd.bf16 %v454, %v886
    %v935 = vadd.bf16 %v455, %v887
    %v936 = vadd.bf16 %v456, %v888
    %v937 = vadd.bf16 %v457, %v889
    %v938 = vadd.bf16 %v458, %v890
    %v939 = vadd.bf16 %v459, %v891
    %v940 = vadd.bf16 %v460, %v892
    %v941 = vadd.bf16 %v461, %v893
    %v942 = vadd.bf16 %v462, %v894
    %v943 = vadd.bf16 %v463, %v895
    %v944 = vadd.bf16 %v464, %v896
    %v945 = vadd.bf16 %v465, %v897
    %v946 = vadd.bf16 %v466, %v898
    %v947 = vadd.bf16 %v467, %v899
    %v948 = vadd.bf16 %v468, %v900
    %v949 = vadd.bf16 %v469, %v901
    %v950 = vadd.bf16 %v470, %v902
    %v951 = vadd.bf16 %v471, %v903
    %v952 = vadd.bf16 %v472, %v904
    %v953 = vadd.bf16 %v473, %v905
    %v954 = vadd.bf16 %v474, %v906
    %v955 = vadd.bf16 %v475, %v907
    %v956 = vadd.bf16 %v476, %v908
    %v957 = vadd.bf16 %v477, %v909
    %v958 = vadd.bf16 %v478, %v910
    %v959 = vadd.bf16 %v479, %v911
    %v960 = vadd.bf16 %v480, %v912
    %v961 = vadd.bf16 %v481, %v913
    %v962 = vadd.bf16 %v482, %v914
    %v963 = vadd.bf16 %v483, %v915
    %v964 = vadd.bf16 %v484, %v916
    %v965 = vadd.bf16 %v485, %v917
    %v966 = vadd.bf16 %v486, %v918
    %v967 = vadd.bf16 %v487, %v919
    %968 = vset.pattern.permute.xlu0 2
    %969 = vperm.xlu0 %968, %v20
    %v970 = vpop.permute.xlu0 %969
    %971 = vset.pattern.permute.xlu0 2
    %972 = vperm.xlu0 %971, %v21
    %v973 = vpop.permute.xlu0 %972
    %974 = vset.pattern.permute.xlu0 2
    %975 = vperm.xlu0 %974, %v22
    %v976 = vpop.permute.xlu0 %975
    %977 = vset.pattern.permute.xlu0 2
    %978 = vperm.xlu0 %977, %v23
    %v979 = vpop.permute.xlu0 %978
    %980 = vset.pattern.permute.xlu0 2
    %981 = vperm.xlu0 %980, %v24
    %v982 = vpop.permute.xlu0 %981
    %983 = vset.pattern.permute.xlu0 2
    %984 = vperm.xlu0 %983, %v25
    %v985 = vpop.permute.xlu0 %984
    %986 = vset.pattern.permute.xlu0 2
    %987 = vperm.xlu0 %986, %v26
    %v988 = vpop.permute.xlu0 %987
    %989 = vset.pattern.permute.xlu0 2
    %990 = vperm.xlu0 %989, %v27
    %v991 = vpop.permute.xlu0 %990
    %992 = vset.pattern.permute.xlu0 2
    %993 = vperm.xlu0 %992, %v28
    %v994 = vpop.permute.xlu0 %993
    %995 = vset.pattern.permute.xlu0 2
    %996 = vperm.xlu0 %995, %v29
    %v997 = vpop.permute.xlu0 %996
    %998 = vset.pattern.permute.xlu0 2
    %999 = vperm.xlu0 %998, %v30
    %v1000 = vpop.permute.xlu0 %999
    %1001 = vset.pattern.permute.xlu0 2
    %1002 = vperm.xlu0 %1001, %v31
    %v1003 = vpop.permute.xlu0 %1002
    %1004 = vset.pattern.permute.xlu0 2
    %1005 = vperm.xlu0 %1004, %v32
    %v1006 = vpop.permute.xlu0 %1005
    %1007 = vset.pattern.permute.xlu0 2
    %1008 = vperm.xlu0 %1007, %v33
    %v1009 = vpop.permute.xlu0 %1008
    %1010 = vset.pattern.permute.xlu0 2
    %1011 = vperm.xlu0 %1010, %v34
    %v1012 = vpop.permute.xlu0 %1011
    %1013 = vset.pattern.permute.xlu0 2
    %1014 = vperm.xlu0 %1013, %v35
    %v1015 = vpop.permute.xlu0 %1014
    %1016 = vset.pattern.permute.xlu0 2
    %1017 = vperm.xlu0 %1016, %v36
    %v1018 = vpop.permute.xlu0 %1017
    %1019 = vset.pattern.permute.xlu0 2
    %1020 = vperm.xlu0 %1019, %v37
    %v1021 = vpop.permute.xlu0 %1020
    %1022 = vset.pattern.permute.xlu0 2
    %1023 = vperm.xlu0 %1022, %v38
    %v1024 = vpop.permute.xlu0 %1023
    %1025 = vset.pattern.permute.xlu0 2
    %1026 = vperm.xlu0 %1025, %v39
    %v1027 = vpop.permute.xlu0 %1026
    %1028 = vset.pattern.permute.xlu0 2
    %1029 = vperm.xlu0 %1028, %v40
    %v1030 = vpop.permute.xlu0 %1029
    %1031 = vset.pattern.permute.xlu0 2
    %1032 = vperm.xlu0 %1031, %v41
    %v1033 = vpop.permute.xlu0 %1032
    %1034 = vset.pattern.permute.xlu0 2
    %1035 = vperm.xlu0 %1034, %v42
    %v1036 = vpop.permute.xlu0 %1035
    %1037 = vset.pattern.permute.xlu0 2
    %1038 = vperm.xlu0 %1037, %v43
    %v1039 = vpop.permute.xlu0 %1038
    %1040 = vset.pattern.permute.xlu0 2
    %1041 = vperm.xlu0 %1040, %v44
    %v1042 = vpop.permute.xlu0 %1041
    %1043 = vset.pattern.permute.xlu0 2
    %1044 = vperm.xlu0 %1043, %v45
    %v1045 = vpop.permute.xlu0 %1044
    %1046 = vset.pattern.permute.xlu0 2
    %1047 = vperm.xlu0 %1046, %v46
    %v1048 = vpop.permute.xlu0 %1047
    %1049 = vset.pattern.permute.xlu0 2
    %1050 = vperm.xlu0 %1049, %v47
    %v1051 = vpop.permute.xlu0 %1050
    %1052 = vset.pattern.permute.xlu0 2
    %1053 = vperm.xlu0 %1052, %v48
    %v1054 = vpop.permute.xlu0 %1053
    %1055 = vset.pattern.permute.xlu0 2
    %1056 = vperm.xlu0 %1055, %v49
    %v1057 = vpop.permute.xlu0 %1056
    %1058 = vset.pattern.permute.xlu0 2
    %1059 = vperm.xlu0 %1058, %v50
    %v1060 = vpop.permute.xlu0 %1059
    %1061 = vset.pattern.permute.xlu0 2
    %1062 = vperm.xlu0 %1061, %v51
    %v1063 = vpop.permute.xlu0 %1062
    %vm1064 = vcmp.eq.s32.totalorder %v53, %v970
    %vm1065 = vcmp.eq.s32.totalorder %v54, %v970
    %vm1066 = vcmp.eq.s32.totalorder %v55, %v970
    %vm1067 = vcmp.eq.s32.totalorder %v53, %v973
    %vm1068 = vcmp.eq.s32.totalorder %v54, %v973
    %vm1069 = vcmp.eq.s32.totalorder %v55, %v973
    %vm1070 = vcmp.eq.s32.totalorder %v53, %v976
    %vm1071 = vcmp.eq.s32.totalorder %v54, %v976
    %vm1072 = vcmp.eq.s32.totalorder %v55, %v976
    %vm1073 = vcmp.eq.s32.totalorder %v53, %v979
    %vm1074 = vcmp.eq.s32.totalorder %v54, %v979
    %vm1075 = vcmp.eq.s32.totalorder %v55, %v979
    %vm1076 = vcmp.eq.s32.totalorder %v53, %v982
    %vm1077 = vcmp.eq.s32.totalorder %v54, %v982
    %vm1078 = vcmp.eq.s32.totalorder %v55, %v982
    %vm1079 = vcmp.eq.s32.totalorder %v53, %v985
    %vm1080 = vcmp.eq.s32.totalorder %v54, %v985
    %vm1081 = vcmp.eq.s32.totalorder %v55, %v985
    %vm1082 = vcmp.eq.s32.totalorder %v53, %v988
    %vm1083 = vcmp.eq.s32.totalorder %v54, %v988
    %vm1084 = vcmp.eq.s32.totalorder %v55, %v988
    %vm1085 = vcmp.eq.s32.totalorder %v53, %v991
    %vm1086 = vcmp.eq.s32.totalorder %v54, %v991
    %vm1087 = vcmp.eq.s32.totalorder %v55, %v991
    %vm1088 = vcmp.eq.s32.totalorder %v53, %v994
    %vm1089 = vcmp.eq.s32.totalorder %v54, %v994
    %vm1090 = vcmp.eq.s32.totalorder %v55, %v994
    %vm1091 = vcmp.eq.s32.totalorder %v53, %v997
    %vm1092 = vcmp.eq.s32.totalorder %v54, %v997
    %vm1093 = vcmp.eq.s32.totalorder %v55, %v997
    %vm1094 = vcmp.eq.s32.totalorder %v53, %v1000
    %vm1095 = vcmp.eq.s32.totalorder %v54, %v1000
    %vm1096 = vcmp.eq.s32.totalorder %v55, %v1000
    %vm1097 = vcmp.eq.s32.totalorder %v53, %v1003
    %vm1098 = vcmp.eq.s32.totalorder %v54, %v1003
    %vm1099 = vcmp.eq.s32.totalorder %v55, %v1003
    %vm1100 = vcmp.eq.s32.totalorder %v53, %v1006
    %vm1101 = vcmp.eq.s32.totalorder %v54, %v1006
    %vm1102 = vcmp.eq.s32.totalorder %v55, %v1006
    %vm1103 = vcmp.eq.s32.totalorder %v53, %v1009
    %vm1104 = vcmp.eq.s32.totalorder %v54, %v1009
    %vm1105 = vcmp.eq.s32.totalorder %v55, %v1009
    %vm1106 = vcmp.eq.s32.totalorder %v53, %v1012
    %vm1107 = vcmp.eq.s32.totalorder %v54, %v1012
    %vm1108 = vcmp.eq.s32.totalorder %v55, %v1012
    %vm1109 = vcmp.eq.s32.totalorder %v53, %v1015
    %vm1110 = vcmp.eq.s32.totalorder %v54, %v1015
    %vm1111 = vcmp.eq.s32.totalorder %v55, %v1015
    %vm1112 = vcmp.eq.s32.totalorder %v53, %v1018
    %vm1113 = vcmp.eq.s32.totalorder %v54, %v1018
    %vm1114 = vcmp.eq.s32.totalorder %v55, %v1018
    %vm1115 = vcmp.eq.s32.totalorder %v53, %v1021
    %vm1116 = vcmp.eq.s32.totalorder %v54, %v1021
    %vm1117 = vcmp.eq.s32.totalorder %v55, %v1021
    %vm1118 = vcmp.eq.s32.totalorder %v53, %v1024
    %vm1119 = vcmp.eq.s32.totalorder %v54, %v1024
    %vm1120 = vcmp.eq.s32.totalorder %v55, %v1024
    %vm1121 = vcmp.eq.s32.totalorder %v53, %v1027
    %vm1122 = vcmp.eq.s32.totalorder %v54, %v1027
    %vm1123 = vcmp.eq.s32.totalorder %v55, %v1027
    %vm1124 = vcmp.eq.s32.totalorder %v53, %v1030
    %vm1125 = vcmp.eq.s32.totalorder %v54, %v1030
    %vm1126 = vcmp.eq.s32.totalorder %v55, %v1030
    %vm1127 = vcmp.eq.s32.totalorder %v53, %v1033
    %vm1128 = vcmp.eq.s32.totalorder %v54, %v1033
    %vm1129 = vcmp.eq.s32.totalorder %v55, %v1033
    %vm1130 = vcmp.eq.s32.totalorder %v53, %v1036
    %vm1131 = vcmp.eq.s32.totalorder %v54, %v1036
    %vm1132 = vcmp.eq.s32.totalorder %v55, %v1036
    %vm1133 = vcmp.eq.s32.totalorder %v53, %v1039
    %vm1134 = vcmp.eq.s32.totalorder %v54, %v1039
    %vm1135 = vcmp.eq.s32.totalorder %v55, %v1039
    %vm1136 = vcmp.eq.s32.totalorder %v53, %v1042
    %vm1137 = vcmp.eq.s32.totalorder %v54, %v1042
    %vm1138 = vcmp.eq.s32.totalorder %v55, %v1042
    %vm1139 = vcmp.eq.s32.totalorder %v53, %v1045
    %vm1140 = vcmp.eq.s32.totalorder %v54, %v1045
    %vm1141 = vcmp.eq.s32.totalorder %v55, %v1045
    %vm1142 = vcmp.eq.s32.totalorder %v53, %v1048
    %vm1143 = vcmp.eq.s32.totalorder %v54, %v1048
    %vm1144 = vcmp.eq.s32.totalorder %v55, %v1048
    %vm1145 = vcmp.eq.s32.totalorder %v53, %v1051
    %vm1146 = vcmp.eq.s32.totalorder %v54, %v1051
    %vm1147 = vcmp.eq.s32.totalorder %v55, %v1051
    %vm1148 = vcmp.eq.s32.totalorder %v53, %v1054
    %vm1149 = vcmp.eq.s32.totalorder %v54, %v1054
    %vm1150 = vcmp.eq.s32.totalorder %v55, %v1054
    %vm1151 = vcmp.eq.s32.totalorder %v53, %v1057
    %vm1152 = vcmp.eq.s32.totalorder %v54, %v1057
    %vm1153 = vcmp.eq.s32.totalorder %v55, %v1057
    %vm1154 = vcmp.eq.s32.totalorder %v53, %v1060
    %vm1155 = vcmp.eq.s32.totalorder %v54, %v1060
    %vm1156 = vcmp.eq.s32.totalorder %v55, %v1060
    %vm1157 = vcmp.eq.s32.totalorder %v53, %v1063
    %vm1158 = vcmp.eq.s32.totalorder %v54, %v1063
    %vm1159 = vcmp.eq.s32.totalorder %v55, %v1063
    %v1160 = vsel %vm1064, 1, 0
    %v1161 = vsel %vm1065, 1, 0
    %v1162 = vsel %vm1066, 1, 0
    %v1163 = vsel %vm1067, 1, 0
    %v1164 = vsel %vm1068, 1, 0
    %v1165 = vsel %vm1069, 1, 0
    %v1166 = vsel %vm1070, 1, 0
    %v1167 = vsel %vm1071, 1, 0
    %v1168 = vsel %vm1072, 1, 0
    %v1169 = vsel %vm1073, 1, 0
    %v1170 = vsel %vm1074, 1, 0
    %v1171 = vsel %vm1075, 1, 0
    %v1172 = vsel %vm1076, 1, 0
    %v1173 = vsel %vm1077, 1, 0
    %v1174 = vsel %vm1078, 1, 0
    %v1175 = vsel %vm1079, 1, 0
    %v1176 = vsel %vm1080, 1, 0
    %v1177 = vsel %vm1081, 1, 0
    %v1178 = vsel %vm1082, 1, 0
    %v1179 = vsel %vm1083, 1, 0
    %v1180 = vsel %vm1084, 1, 0
    %v1181 = vsel %vm1085, 1, 0
    %v1182 = vsel %vm1086, 1, 0
    %v1183 = vsel %vm1087, 1, 0
    %v1184 = vsel %vm1088, 1, 0
    %v1185 = vsel %vm1089, 1, 0
    %v1186 = vsel %vm1090, 1, 0
    %v1187 = vsel %vm1091, 1, 0
    %v1188 = vsel %vm1092, 1, 0
    %v1189 = vsel %vm1093, 1, 0
    %v1190 = vsel %vm1094, 1, 0
    %v1191 = vsel %vm1095, 1, 0
    %v1192 = vsel %vm1096, 1, 0
    %v1193 = vsel %vm1097, 1, 0
    %v1194 = vsel %vm1098, 1, 0
    %v1195 = vsel %vm1099, 1, 0
    %v1196 = vsel %vm1100, 1, 0
    %v1197 = vsel %vm1101, 1, 0
    %v1198 = vsel %vm1102, 1, 0
    %v1199 = vsel %vm1103, 1, 0
    %v1200 = vsel %vm1104, 1, 0
    %v1201 = vsel %vm1105, 1, 0
    %v1202 = vsel %vm1106, 1, 0
    %v1203 = vsel %vm1107, 1, 0
    %v1204 = vsel %vm1108, 1, 0
    %v1205 = vsel %vm1109, 1, 0
    %v1206 = vsel %vm1110, 1, 0
    %v1207 = vsel %vm1111, 1, 0
    %v1208 = vsel %vm1112, 1, 0
    %v1209 = vsel %vm1113, 1, 0
    %v1210 = vsel %vm1114, 1, 0
    %v1211 = vsel %vm1115, 1, 0
    %v1212 = vsel %vm1116, 1, 0
    %v1213 = vsel %vm1117, 1, 0
    %v1214 = vsel %vm1118, 1, 0
    %v1215 = vsel %vm1119, 1, 0
    %v1216 = vsel %vm1120, 1, 0
    %v1217 = vsel %vm1121, 1, 0
    %v1218 = vsel %vm1122, 1, 0
    %v1219 = vsel %vm1123, 1, 0
    %v1220 = vsel %vm1124, 1, 0
    %v1221 = vsel %vm1125, 1, 0
    %v1222 = vsel %vm1126, 1, 0
    %v1223 = vsel %vm1127, 1, 0
    %v1224 = vsel %vm1128, 1, 0
    %v1225 = vsel %vm1129, 1, 0
    %v1226 = vsel %vm1130, 1, 0
    %v1227 = vsel %vm1131, 1, 0
    %v1228 = vsel %vm1132, 1, 0
    %v1229 = vsel %vm1133, 1, 0
    %v1230 = vsel %vm1134, 1, 0
    %v1231 = vsel %vm1135, 1, 0
    %v1232 = vsel %vm1136, 1, 0
    %v1233 = vsel %vm1137, 1, 0
    %v1234 = vsel %vm1138, 1, 0
    %v1235 = vsel %vm1139, 1, 0
    %v1236 = vsel %vm1140, 1, 0
    %v1237 = vsel %vm1141, 1, 0
    %v1238 = vsel %vm1142, 1, 0
    %v1239 = vsel %vm1143, 1, 0
    %v1240 = vsel %vm1144, 1, 0
    %v1241 = vsel %vm1145, 1, 0
    %v1242 = vsel %vm1146, 1, 0
    %v1243 = vsel %vm1147, 1, 0
    %v1244 = vsel %vm1148, 1, 0
    %v1245 = vsel %vm1149, 1, 0
    %v1246 = vsel %vm1150, 1, 0
    %v1247 = vsel %vm1151, 1, 0
    %v1248 = vsel %vm1152, 1, 0
    %v1249 = vsel %vm1153, 1, 0
    %v1250 = vsel %vm1154, 1, 0
    %v1251 = vsel %vm1155, 1, 0
    %v1252 = vsel %vm1156, 1, 0
    %v1253 = vsel %vm1157, 1, 0
    %v1254 = vsel %vm1158, 1, 0
    %v1255 = vsel %vm1159, 1, 0
    %v1256 = vcvt.s32.f32 %v1160
    %v1257 = vcvt.s32.f32 %v1161
    %v1258 = vcvt.s32.f32 %v1162
    %v1259 = vcvt.s32.f32 %v1163
    %v1260 = vcvt.s32.f32 %v1164
    %v1261 = vcvt.s32.f32 %v1165
    %v1262 = vcvt.s32.f32 %v1166
    %v1263 = vcvt.s32.f32 %v1167
    %v1264 = vcvt.s32.f32 %v1168
    %v1265 = vcvt.s32.f32 %v1169
    %v1266 = vcvt.s32.f32 %v1170
    %v1267 = vcvt.s32.f32 %v1171
    %v1268 = vcvt.s32.f32 %v1172
    %v1269 = vcvt.s32.f32 %v1173
    %v1270 = vcvt.s32.f32 %v1174
    %v1271 = vcvt.s32.f32 %v1175
    %v1272 = vcvt.s32.f32 %v1176
    %v1273 = vcvt.s32.f32 %v1177
    %v1274 = vcvt.s32.f32 %v1178
    %v1275 = vcvt.s32.f32 %v1179
    %v1276 = vcvt.s32.f32 %v1180
    %v1277 = vcvt.s32.f32 %v1181
    %v1278 = vcvt.s32.f32 %v1182
    %v1279 = vcvt.s32.f32 %v1183
    %v1280 = vcvt.s32.f32 %v1184
    %v1281 = vcvt.s32.f32 %v1185
    %v1282 = vcvt.s32.f32 %v1186
    %v1283 = vcvt.s32.f32 %v1187
    %v1284 = vcvt.s32.f32 %v1188
    %v1285 = vcvt.s32.f32 %v1189
    %v1286 = vcvt.s32.f32 %v1190
    %v1287 = vcvt.s32.f32 %v1191
    %v1288 = vcvt.s32.f32 %v1192
    %v1289 = vcvt.s32.f32 %v1193
    %v1290 = vcvt.s32.f32 %v1194
    %v1291 = vcvt.s32.f32 %v1195
    %v1292 = vcvt.s32.f32 %v1196
    %v1293 = vcvt.s32.f32 %v1197
    %v1294 = vcvt.s32.f32 %v1198
    %v1295 = vcvt.s32.f32 %v1199
    %v1296 = vcvt.s32.f32 %v1200
    %v1297 = vcvt.s32.f32 %v1201
    %v1298 = vcvt.s32.f32 %v1202
    %v1299 = vcvt.s32.f32 %v1203
    %v1300 = vcvt.s32.f32 %v1204
    %v1301 = vcvt.s32.f32 %v1205
    %v1302 = vcvt.s32.f32 %v1206
    %v1303 = vcvt.s32.f32 %v1207
    %v1304 = vcvt.s32.f32 %v1208
    %v1305 = vcvt.s32.f32 %v1209
    %v1306 = vcvt.s32.f32 %v1210
    %v1307 = vcvt.s32.f32 %v1211
    %v1308 = vcvt.s32.f32 %v1212
    %v1309 = vcvt.s32.f32 %v1213
    %v1310 = vcvt.s32.f32 %v1214
    %v1311 = vcvt.s32.f32 %v1215
    %v1312 = vcvt.s32.f32 %v1216
    %v1313 = vcvt.s32.f32 %v1217
    %v1314 = vcvt.s32.f32 %v1218
    %v1315 = vcvt.s32.f32 %v1219
    %v1316 = vcvt.s32.f32 %v1220
    %v1317 = vcvt.s32.f32 %v1221
    %v1318 = vcvt.s32.f32 %v1222
    %v1319 = vcvt.s32.f32 %v1223
    %v1320 = vcvt.s32.f32 %v1224
    %v1321 = vcvt.s32.f32 %v1225
    %v1322 = vcvt.s32.f32 %v1226
    %v1323 = vcvt.s32.f32 %v1227
    %v1324 = vcvt.s32.f32 %v1228
    %v1325 = vcvt.s32.f32 %v1229
    %v1326 = vcvt.s32.f32 %v1230
    %v1327 = vcvt.s32.f32 %v1231
    %v1328 = vcvt.s32.f32 %v1232
    %v1329 = vcvt.s32.f32 %v1233
    %v1330 = vcvt.s32.f32 %v1234
    %v1331 = vcvt.s32.f32 %v1235
    %v1332 = vcvt.s32.f32 %v1236
    %v1333 = vcvt.s32.f32 %v1237
    %v1334 = vcvt.s32.f32 %v1238
    %v1335 = vcvt.s32.f32 %v1239
    %v1336 = vcvt.s32.f32 %v1240
    %v1337 = vcvt.s32.f32 %v1241
    %v1338 = vcvt.s32.f32 %v1242
    %v1339 = vcvt.s32.f32 %v1243
    %v1340 = vcvt.s32.f32 %v1244
    %v1341 = vcvt.s32.f32 %v1245
    %v1342 = vcvt.s32.f32 %v1246
    %v1343 = vcvt.s32.f32 %v1247
    %v1344 = vcvt.s32.f32 %v1248
    %v1345 = vcvt.s32.f32 %v1249
    %v1346 = vcvt.s32.f32 %v1250
    %v1347 = vcvt.s32.f32 %v1251
    %v1348 = vcvt.s32.f32 %v1252
    %v1349 = vcvt.s32.f32 %v1253
    %v1350 = vcvt.s32.f32 %v1254
    %v1351 = vcvt.s32.f32 %v1255
    %v1352 = vpack.c.bf16 %v1259, %v1256
    %v1353 = vpack.c.bf16 %v1260, %v1257
    %v1354 = vpack.c.bf16 %v1261, %v1258
    %v1355 = vpack.c.bf16 %v1265, %v1262
    %v1356 = vpack.c.bf16 %v1266, %v1263
    %v1357 = vpack.c.bf16 %v1267, %v1264
    %v1358 = vpack.c.bf16 %v1271, %v1268
    %v1359 = vpack.c.bf16 %v1272, %v1269
    %v1360 = vpack.c.bf16 %v1273, %v1270
    %v1361 = vpack.c.bf16 %v1277, %v1274
    %v1362 = vpack.c.bf16 %v1278, %v1275
    %v1363 = vpack.c.bf16 %v1279, %v1276
    %v1364 = vpack.c.bf16 %v1283, %v1280
    %v1365 = vpack.c.bf16 %v1284, %v1281
    %v1366 = vpack.c.bf16 %v1285, %v1282
    %v1367 = vpack.c.bf16 %v1289, %v1286
    %v1368 = vpack.c.bf16 %v1290, %v1287
    %v1369 = vpack.c.bf16 %v1291, %v1288
    %v1370 = vpack.c.bf16 %v1295, %v1292
    %v1371 = vpack.c.bf16 %v1296, %v1293
    %v1372 = vpack.c.bf16 %v1297, %v1294
    %v1373 = vpack.c.bf16 %v1301, %v1298
    %v1374 = vpack.c.bf16 %v1302, %v1299
    %v1375 = vpack.c.bf16 %v1303, %v1300
    %v1376 = vpack.c.bf16 %v1307, %v1304
    %v1377 = vpack.c.bf16 %v1308, %v1305
    %v1378 = vpack.c.bf16 %v1309, %v1306
    %v1379 = vpack.c.bf16 %v1313, %v1310
    %v1380 = vpack.c.bf16 %v1314, %v1311
    %v1381 = vpack.c.bf16 %v1315, %v1312
    %v1382 = vpack.c.bf16 %v1319, %v1316
    %v1383 = vpack.c.bf16 %v1320, %v1317
    %v1384 = vpack.c.bf16 %v1321, %v1318
    %v1385 = vpack.c.bf16 %v1325, %v1322
    %v1386 = vpack.c.bf16 %v1326, %v1323
    %v1387 = vpack.c.bf16 %v1327, %v1324
    %v1388 = vpack.c.bf16 %v1331, %v1328
    %v1389 = vpack.c.bf16 %v1332, %v1329
    %v1390 = vpack.c.bf16 %v1333, %v1330
    %v1391 = vpack.c.bf16 %v1337, %v1334
    %v1392 = vpack.c.bf16 %v1338, %v1335
    %v1393 = vpack.c.bf16 %v1339, %v1336
    %v1394 = vpack.c.bf16 %v1343, %v1340
    %v1395 = vpack.c.bf16 %v1344, %v1341
    %v1396 = vpack.c.bf16 %v1345, %v1342
    %v1397 = vpack.c.bf16 %v1349, %v1346
    %v1398 = vpack.c.bf16 %v1350, %v1347
    %v1399 = vpack.c.bf16 %v1351, %v1348
    %1400 = vset.pattern.permute.xlu0 3
    %1401 = vperm.xlu0 %1400, %v20
    %v1402 = vpop.permute.xlu0 %1401
    %1403 = vset.pattern.permute.xlu0 3
    %1404 = vperm.xlu0 %1403, %v21
    %v1405 = vpop.permute.xlu0 %1404
    %1406 = vset.pattern.permute.xlu0 3
    %1407 = vperm.xlu0 %1406, %v22
    %v1408 = vpop.permute.xlu0 %1407
    %1409 = vset.pattern.permute.xlu0 3
    %1410 = vperm.xlu0 %1409, %v23
    %v1411 = vpop.permute.xlu0 %1410
    %1412 = vset.pattern.permute.xlu0 3
    %1413 = vperm.xlu0 %1412, %v24
    %v1414 = vpop.permute.xlu0 %1413
    %1415 = vset.pattern.permute.xlu0 3
    %1416 = vperm.xlu0 %1415, %v25
    %v1417 = vpop.permute.xlu0 %1416
    %1418 = vset.pattern.permute.xlu0 3
    %1419 = vperm.xlu0 %1418, %v26
    %v1420 = vpop.permute.xlu0 %1419
    %1421 = vset.pattern.permute.xlu0 3
    %1422 = vperm.xlu0 %1421, %v27
    %v1423 = vpop.permute.xlu0 %1422
    %1424 = vset.pattern.permute.xlu0 3
    %1425 = vperm.xlu0 %1424, %v28
    %v1426 = vpop.permute.xlu0 %1425
    %1427 = vset.pattern.permute.xlu0 3
    %1428 = vperm.xlu0 %1427, %v29
    %v1429 = vpop.permute.xlu0 %1428
    %1430 = vset.pattern.permute.xlu0 3
    %1431 = vperm.xlu0 %1430, %v30
    %v1432 = vpop.permute.xlu0 %1431
    %1433 = vset.pattern.permute.xlu0 3
    %1434 = vperm.xlu0 %1433, %v31
    %v1435 = vpop.permute.xlu0 %1434
    %1436 = vset.pattern.permute.xlu0 3
    %1437 = vperm.xlu0 %1436, %v32
    %v1438 = vpop.permute.xlu0 %1437
    %1439 = vset.pattern.permute.xlu0 3
    %1440 = vperm.xlu0 %1439, %v33
    %v1441 = vpop.permute.xlu0 %1440
    %1442 = vset.pattern.permute.xlu0 3
    %1443 = vperm.xlu0 %1442, %v34
    %v1444 = vpop.permute.xlu0 %1443
    %1445 = vset.pattern.permute.xlu0 3
    %1446 = vperm.xlu0 %1445, %v35
    %v1447 = vpop.permute.xlu0 %1446
    %1448 = vset.pattern.permute.xlu0 3
    %1449 = vperm.xlu0 %1448, %v36
    %v1450 = vpop.permute.xlu0 %1449
    %1451 = vset.pattern.permute.xlu0 3
    %1452 = vperm.xlu0 %1451, %v37
    %v1453 = vpop.permute.xlu0 %1452
    %1454 = vset.pattern.permute.xlu0 3
    %1455 = vperm.xlu0 %1454, %v38
    %v1456 = vpop.permute.xlu0 %1455
    %1457 = vset.pattern.permute.xlu0 3
    %1458 = vperm.xlu0 %1457, %v39
    %v1459 = vpop.permute.xlu0 %1458
    %1460 = vset.pattern.permute.xlu0 3
    %1461 = vperm.xlu0 %1460, %v40
    %v1462 = vpop.permute.xlu0 %1461
    %1463 = vset.pattern.permute.xlu0 3
    %1464 = vperm.xlu0 %1463, %v41
    %v1465 = vpop.permute.xlu0 %1464
    %1466 = vset.pattern.permute.xlu0 3
    %1467 = vperm.xlu0 %1466, %v42
    %v1468 = vpop.permute.xlu0 %1467
    %1469 = vset.pattern.permute.xlu0 3
    %1470 = vperm.xlu0 %1469, %v43
    %v1471 = vpop.permute.xlu0 %1470
    %1472 = vset.pattern.permute.xlu0 3
    %1473 = vperm.xlu0 %1472, %v44
    %v1474 = vpop.permute.xlu0 %1473
    %1475 = vset.pattern.permute.xlu0 3
    %1476 = vperm.xlu0 %1475, %v45
    %v1477 = vpop.permute.xlu0 %1476
    %1478 = vset.pattern.permute.xlu0 3
    %1479 = vperm.xlu0 %1478, %v46
    %v1480 = vpop.permute.xlu0 %1479
    %1481 = vset.pattern.permute.xlu0 3
    %1482 = vperm.xlu0 %1481, %v47
    %v1483 = vpop.permute.xlu0 %1482
    %1484 = vset.pattern.permute.xlu0 3
    %1485 = vperm.xlu0 %1484, %v48
    %v1486 = vpop.permute.xlu0 %1485
    %1487 = vset.pattern.permute.xlu0 3
    %1488 = vperm.xlu0 %1487, %v49
    %v1489 = vpop.permute.xlu0 %1488
    %1490 = vset.pattern.permute.xlu0 3
    %1491 = vperm.xlu0 %1490, %v50
    %v1492 = vpop.permute.xlu0 %1491
    %1493 = vset.pattern.permute.xlu0 3
    %1494 = vperm.xlu0 %1493, %v51
    %v1495 = vpop.permute.xlu0 %1494
    %vm1496 = vcmp.eq.s32.totalorder %v53, %v1402
    %vm1497 = vcmp.eq.s32.totalorder %v54, %v1402
    %vm1498 = vcmp.eq.s32.totalorder %v55, %v1402
    %vm1499 = vcmp.eq.s32.totalorder %v53, %v1405
    %vm1500 = vcmp.eq.s32.totalorder %v54, %v1405
    %vm1501 = vcmp.eq.s32.totalorder %v55, %v1405
    %vm1502 = vcmp.eq.s32.totalorder %v53, %v1408
    %vm1503 = vcmp.eq.s32.totalorder %v54, %v1408
    %vm1504 = vcmp.eq.s32.totalorder %v55, %v1408
    %vm1505 = vcmp.eq.s32.totalorder %v53, %v1411
    %vm1506 = vcmp.eq.s32.totalorder %v54, %v1411
    %vm1507 = vcmp.eq.s32.totalorder %v55, %v1411
    %vm1508 = vcmp.eq.s32.totalorder %v53, %v1414
    %vm1509 = vcmp.eq.s32.totalorder %v54, %v1414
    %vm1510 = vcmp.eq.s32.totalorder %v55, %v1414
    %vm1511 = vcmp.eq.s32.totalorder %v53, %v1417
    %vm1512 = vcmp.eq.s32.totalorder %v54, %v1417
    %vm1513 = vcmp.eq.s32.totalorder %v55, %v1417
    %vm1514 = vcmp.eq.s32.totalorder %v53, %v1420
    %vm1515 = vcmp.eq.s32.totalorder %v54, %v1420
    %vm1516 = vcmp.eq.s32.totalorder %v55, %v1420
    %vm1517 = vcmp.eq.s32.totalorder %v53, %v1423
    %vm1518 = vcmp.eq.s32.totalorder %v54, %v1423
    %vm1519 = vcmp.eq.s32.totalorder %v55, %v1423
    %vm1520 = vcmp.eq.s32.totalorder %v53, %v1426
    %vm1521 = vcmp.eq.s32.totalorder %v54, %v1426
    %vm1522 = vcmp.eq.s32.totalorder %v55, %v1426
    %vm1523 = vcmp.eq.s32.totalorder %v53, %v1429
    %vm1524 = vcmp.eq.s32.totalorder %v54, %v1429
    %vm1525 = vcmp.eq.s32.totalorder %v55, %v1429
    %vm1526 = vcmp.eq.s32.totalorder %v53, %v1432
    %vm1527 = vcmp.eq.s32.totalorder %v54, %v1432
    %vm1528 = vcmp.eq.s32.totalorder %v55, %v1432
    %vm1529 = vcmp.eq.s32.totalorder %v53, %v1435
    %vm1530 = vcmp.eq.s32.totalorder %v54, %v1435
    %vm1531 = vcmp.eq.s32.totalorder %v55, %v1435
    %vm1532 = vcmp.eq.s32.totalorder %v53, %v1438
    %vm1533 = vcmp.eq.s32.totalorder %v54, %v1438
    %vm1534 = vcmp.eq.s32.totalorder %v55, %v1438
    %vm1535 = vcmp.eq.s32.totalorder %v53, %v1441
    %vm1536 = vcmp.eq.s32.totalorder %v54, %v1441
    %vm1537 = vcmp.eq.s32.totalorder %v55, %v1441
    %vm1538 = vcmp.eq.s32.totalorder %v53, %v1444
    %vm1539 = vcmp.eq.s32.totalorder %v54, %v1444
    %vm1540 = vcmp.eq.s32.totalorder %v55, %v1444
    %vm1541 = vcmp.eq.s32.totalorder %v53, %v1447
    %vm1542 = vcmp.eq.s32.totalorder %v54, %v1447
    %vm1543 = vcmp.eq.s32.totalorder %v55, %v1447
    %vm1544 = vcmp.eq.s32.totalorder %v53, %v1450
    %vm1545 = vcmp.eq.s32.totalorder %v54, %v1450
    %vm1546 = vcmp.eq.s32.totalorder %v55, %v1450
    %vm1547 = vcmp.eq.s32.totalorder %v53, %v1453
    %vm1548 = vcmp.eq.s32.totalorder %v54, %v1453
    %vm1549 = vcmp.eq.s32.totalorder %v55, %v1453
    %vm1550 = vcmp.eq.s32.totalorder %v53, %v1456
    %vm1551 = vcmp.eq.s32.totalorder %v54, %v1456
    %vm1552 = vcmp.eq.s32.totalorder %v55, %v1456
    %vm1553 = vcmp.eq.s32.totalorder %v53, %v1459
    %vm1554 = vcmp.eq.s32.totalorder %v54, %v1459
    %vm1555 = vcmp.eq.s32.totalorder %v55, %v1459
    %vm1556 = vcmp.eq.s32.totalorder %v53, %v1462
    %vm1557 = vcmp.eq.s32.totalorder %v54, %v1462
    %vm1558 = vcmp.eq.s32.totalorder %v55, %v1462
    %vm1559 = vcmp.eq.s32.totalorder %v53, %v1465
    %vm1560 = vcmp.eq.s32.totalorder %v54, %v1465
    %vm1561 = vcmp.eq.s32.totalorder %v55, %v1465
    %vm1562 = vcmp.eq.s32.totalorder %v53, %v1468
    %vm1563 = vcmp.eq.s32.totalorder %v54, %v1468
    %vm1564 = vcmp.eq.s32.totalorder %v55, %v1468
    %vm1565 = vcmp.eq.s32.totalorder %v53, %v1471
    %vm1566 = vcmp.eq.s32.totalorder %v54, %v1471
    %vm1567 = vcmp.eq.s32.totalorder %v55, %v1471
    %vm1568 = vcmp.eq.s32.totalorder %v53, %v1474
    %vm1569 = vcmp.eq.s32.totalorder %v54, %v1474
    %vm1570 = vcmp.eq.s32.totalorder %v55, %v1474
    %vm1571 = vcmp.eq.s32.totalorder %v53, %v1477
    %vm1572 = vcmp.eq.s32.totalorder %v54, %v1477
    %vm1573 = vcmp.eq.s32.totalorder %v55, %v1477
    %vm1574 = vcmp.eq.s32.totalorder %v53, %v1480
    %vm1575 = vcmp.eq.s32.totalorder %v54, %v1480
    %vm1576 = vcmp.eq.s32.totalorder %v55, %v1480
    %vm1577 = vcmp.eq.s32.totalorder %v53, %v1483
    %vm1578 = vcmp.eq.s32.totalorder %v54, %v1483
    %vm1579 = vcmp.eq.s32.totalorder %v55, %v1483
    %vm1580 = vcmp.eq.s32.totalorder %v53, %v1486
    %vm1581 = vcmp.eq.s32.totalorder %v54, %v1486
    %vm1582 = vcmp.eq.s32.totalorder %v55, %v1486
    %vm1583 = vcmp.eq.s32.totalorder %v53, %v1489
    %vm1584 = vcmp.eq.s32.totalorder %v54, %v1489
    %vm1585 = vcmp.eq.s32.totalorder %v55, %v1489
    %vm1586 = vcmp.eq.s32.totalorder %v53, %v1492
    %vm1587 = vcmp.eq.s32.totalorder %v54, %v1492
    %vm1588 = vcmp.eq.s32.totalorder %v55, %v1492
    %vm1589 = vcmp.eq.s32.totalorder %v53, %v1495
    %vm1590 = vcmp.eq.s32.totalorder %v54, %v1495
    %vm1591 = vcmp.eq.s32.totalorder %v55, %v1495
    %v1592 = vsel %vm1496, 1, 0
    %v1593 = vsel %vm1497, 1, 0
    %v1594 = vsel %vm1498, 1, 0
    %v1595 = vsel %vm1499, 1, 0
    %v1596 = vsel %vm1500, 1, 0
    %v1597 = vsel %vm1501, 1, 0
    %v1598 = vsel %vm1502, 1, 0
    %v1599 = vsel %vm1503, 1, 0
    %v1600 = vsel %vm1504, 1, 0
    %v1601 = vsel %vm1505, 1, 0
    %v1602 = vsel %vm1506, 1, 0
    %v1603 = vsel %vm1507, 1, 0
    %v1604 = vsel %vm1508, 1, 0
    %v1605 = vsel %vm1509, 1, 0
    %v1606 = vsel %vm1510, 1, 0
    %v1607 = vsel %vm1511, 1, 0
    %v1608 = vsel %vm1512, 1, 0
    %v1609 = vsel %vm1513, 1, 0
    %v1610 = vsel %vm1514, 1, 0
    %v1611 = vsel %vm1515, 1, 0
    %v1612 = vsel %vm1516, 1, 0
    %v1613 = vsel %vm1517, 1, 0
    %v1614 = vsel %vm1518, 1, 0
    %v1615 = vsel %vm1519, 1, 0
    %v1616 = vsel %vm1520, 1, 0
    %v1617 = vsel %vm1521, 1, 0
    %v1618 = vsel %vm1522, 1, 0
    %v1619 = vsel %vm1523, 1, 0
    %v1620 = vsel %vm1524, 1, 0
    %v1621 = vsel %vm1525, 1, 0
    %v1622 = vsel %vm1526, 1, 0
    %v1623 = vsel %vm1527, 1, 0
    %v1624 = vsel %vm1528, 1, 0
    %v1625 = vsel %vm1529, 1, 0
    %v1626 = vsel %vm1530, 1, 0
    %v1627 = vsel %vm1531, 1, 0
    %v1628 = vsel %vm1532, 1, 0
    %v1629 = vsel %vm1533, 1, 0
    %v1630 = vsel %vm1534, 1, 0
    %v1631 = vsel %vm1535, 1, 0
    %v1632 = vsel %vm1536, 1, 0
    %v1633 = vsel %vm1537, 1, 0
    %v1634 = vsel %vm1538, 1, 0
    %v1635 = vsel %vm1539, 1, 0
    %v1636 = vsel %vm1540, 1, 0
    %v1637 = vsel %vm1541, 1, 0
    %v1638 = vsel %vm1542, 1, 0
    %v1639 = vsel %vm1543, 1, 0
    %v1640 = vsel %vm1544, 1, 0
    %v1641 = vsel %vm1545, 1, 0
    %v1642 = vsel %vm1546, 1, 0
    %v1643 = vsel %vm1547, 1, 0
    %v1644 = vsel %vm1548, 1, 0
    %v1645 = vsel %vm1549, 1, 0
    %v1646 = vsel %vm1550, 1, 0
    %v1647 = vsel %vm1551, 1, 0
    %v1648 = vsel %vm1552, 1, 0
    %v1649 = vsel %vm1553, 1, 0
    %v1650 = vsel %vm1554, 1, 0
    %v1651 = vsel %vm1555, 1, 0
    %v1652 = vsel %vm1556, 1, 0
    %v1653 = vsel %vm1557, 1, 0
    %v1654 = vsel %vm1558, 1, 0
    %v1655 = vsel %vm1559, 1, 0
    %v1656 = vsel %vm1560, 1, 0
    %v1657 = vsel %vm1561, 1, 0
    %v1658 = vsel %vm1562, 1, 0
    %v1659 = vsel %vm1563, 1, 0
    %v1660 = vsel %vm1564, 1, 0
    %v1661 = vsel %vm1565, 1, 0
    %v1662 = vsel %vm1566, 1, 0
    %v1663 = vsel %vm1567, 1, 0
    %v1664 = vsel %vm1568, 1, 0
    %v1665 = vsel %vm1569, 1, 0
    %v1666 = vsel %vm1570, 1, 0
    %v1667 = vsel %vm1571, 1, 0
    %v1668 = vsel %vm1572, 1, 0
    %v1669 = vsel %vm1573, 1, 0
    %v1670 = vsel %vm1574, 1, 0
    %v1671 = vsel %vm1575, 1, 0
    %v1672 = vsel %vm1576, 1, 0
    %v1673 = vsel %vm1577, 1, 0
    %v1674 = vsel %vm1578, 1, 0
    %v1675 = vsel %vm1579, 1, 0
    %v1676 = vsel %vm1580, 1, 0
    %v1677 = vsel %vm1581, 1, 0
    %v1678 = vsel %vm1582, 1, 0
    %v1679 = vsel %vm1583, 1, 0
    %v1680 = vsel %vm1584, 1, 0
    %v1681 = vsel %vm1585, 1, 0
    %v1682 = vsel %vm1586, 1, 0
    %v1683 = vsel %vm1587, 1, 0
    %v1684 = vsel %vm1588, 1, 0
    %v1685 = vsel %vm1589, 1, 0
    %v1686 = vsel %vm1590, 1, 0
    %v1687 = vsel %vm1591, 1, 0
    %v1688 = vcvt.s32.f32 %v1592
    %v1689 = vcvt.s32.f32 %v1593
    %v1690 = vcvt.s32.f32 %v1594
    %v1691 = vcvt.s32.f32 %v1595
    %v1692 = vcvt.s32.f32 %v1596
    %v1693 = vcvt.s32.f32 %v1597
    %v1694 = vcvt.s32.f32 %v1598
    %v1695 = vcvt.s32.f32 %v1599
    %v1696 = vcvt.s32.f32 %v1600
    %v1697 = vcvt.s32.f32 %v1601
    %v1698 = vcvt.s32.f32 %v1602
    %v1699 = vcvt.s32.f32 %v1603
    %v1700 = vcvt.s32.f32 %v1604
    %v1701 = vcvt.s32.f32 %v1605
    %v1702 = vcvt.s32.f32 %v1606
    %v1703 = vcvt.s32.f32 %v1607
    %v1704 = vcvt.s32.f32 %v1608
    %v1705 = vcvt.s32.f32 %v1609
    %v1706 = vcvt.s32.f32 %v1610
    %v1707 = vcvt.s32.f32 %v1611
    %v1708 = vcvt.s32.f32 %v1612
    %v1709 = vcvt.s32.f32 %v1613
    %v1710 = vcvt.s32.f32 %v1614
    %v1711 = vcvt.s32.f32 %v1615
    %v1712 = vcvt.s32.f32 %v1616
    %v1713 = vcvt.s32.f32 %v1617
    %v1714 = vcvt.s32.f32 %v1618
    %v1715 = vcvt.s32.f32 %v1619
    %v1716 = vcvt.s32.f32 %v1620
    %v1717 = vcvt.s32.f32 %v1621
    %v1718 = vcvt.s32.f32 %v1622
    %v1719 = vcvt.s32.f32 %v1623
    %v1720 = vcvt.s32.f32 %v1624
    %v1721 = vcvt.s32.f32 %v1625
    %v1722 = vcvt.s32.f32 %v1626
    %v1723 = vcvt.s32.f32 %v1627
    %v1724 = vcvt.s32.f32 %v1628
    %v1725 = vcvt.s32.f32 %v1629
    %v1726 = vcvt.s32.f32 %v1630
    %v1727 = vcvt.s32.f32 %v1631
    %v1728 = vcvt.s32.f32 %v1632
    %v1729 = vcvt.s32.f32 %v1633
    %v1730 = vcvt.s32.f32 %v1634
    %v1731 = vcvt.s32.f32 %v1635
    %v1732 = vcvt.s32.f32 %v1636
    %v1733 = vcvt.s32.f32 %v1637
    %v1734 = vcvt.s32.f32 %v1638
    %v1735 = vcvt.s32.f32 %v1639
    %v1736 = vcvt.s32.f32 %v1640
    %v1737 = vcvt.s32.f32 %v1641
    %v1738 = vcvt.s32.f32 %v1642
    %v1739 = vcvt.s32.f32 %v1643
    %v1740 = vcvt.s32.f32 %v1644
    %v1741 = vcvt.s32.f32 %v1645
    %v1742 = vcvt.s32.f32 %v1646
    %v1743 = vcvt.s32.f32 %v1647
    %v1744 = vcvt.s32.f32 %v1648
    %v1745 = vcvt.s32.f32 %v1649
    %v1746 = vcvt.s32.f32 %v1650
    %v1747 = vcvt.s32.f32 %v1651
    %v1748 = vcvt.s32.f32 %v1652
    %v1749 = vcvt.s32.f32 %v1653
    %v1750 = vcvt.s32.f32 %v1654
    %v1751 = vcvt.s32.f32 %v1655
    %v1752 = vcvt.s32.f32 %v1656
    %v1753 = vcvt.s32.f32 %v1657
    %v1754 = vcvt.s32.f32 %v1658
    %v1755 = vcvt.s32.f32 %v1659
    %v1756 = vcvt.s32.f32 %v1660
    %v1757 = vcvt.s32.f32 %v1661
    %v1758 = vcvt.s32.f32 %v1662
    %v1759 = vcvt.s32.f32 %v1663
    %v1760 = vcvt.s32.f32 %v1664
    %v1761 = vcvt.s32.f32 %v1665
    %v1762 = vcvt.s32.f32 %v1666
    %v1763 = vcvt.s32.f32 %v1667
    %v1764 = vcvt.s32.f32 %v1668
    %v1765 = vcvt.s32.f32 %v1669
    %v1766 = vcvt.s32.f32 %v1670
    %v1767 = vcvt.s32.f32 %v1671
    %v1768 = vcvt.s32.f32 %v1672
    %v1769 = vcvt.s32.f32 %v1673
    %v1770 = vcvt.s32.f32 %v1674
    %v1771 = vcvt.s32.f32 %v1675
    %v1772 = vcvt.s32.f32 %v1676
    %v1773 = vcvt.s32.f32 %v1677
    %v1774 = vcvt.s32.f32 %v1678
    %v1775 = vcvt.s32.f32 %v1679
    %v1776 = vcvt.s32.f32 %v1680
    %v1777 = vcvt.s32.f32 %v1681
    %v1778 = vcvt.s32.f32 %v1682
    %v1779 = vcvt.s32.f32 %v1683
    %v1780 = vcvt.s32.f32 %v1684
    %v1781 = vcvt.s32.f32 %v1685
    %v1782 = vcvt.s32.f32 %v1686
    %v1783 = vcvt.s32.f32 %v1687
    %v1784 = vpack.c.bf16 %v1691, %v1688
    %v1785 = vpack.c.bf16 %v1692, %v1689
    %v1786 = vpack.c.bf16 %v1693, %v1690
    %v1787 = vpack.c.bf16 %v1697, %v1694
    %v1788 = vpack.c.bf16 %v1698, %v1695
    %v1789 = vpack.c.bf16 %v1699, %v1696
    %v1790 = vpack.c.bf16 %v1703, %v1700
    %v1791 = vpack.c.bf16 %v1704, %v1701
    %v1792 = vpack.c.bf16 %v1705, %v1702
    %v1793 = vpack.c.bf16 %v1709, %v1706
    %v1794 = vpack.c.bf16 %v1710, %v1707
    %v1795 = vpack.c.bf16 %v1711, %v1708
    %v1796 = vpack.c.bf16 %v1715, %v1712
    %v1797 = vpack.c.bf16 %v1716, %v1713
    %v1798 = vpack.c.bf16 %v1717, %v1714
    %v1799 = vpack.c.bf16 %v1721, %v1718
    %v1800 = vpack.c.bf16 %v1722, %v1719
    %v1801 = vpack.c.bf16 %v1723, %v1720
    %v1802 = vpack.c.bf16 %v1727, %v1724
    %v1803 = vpack.c.bf16 %v1728, %v1725
    %v1804 = vpack.c.bf16 %v1729, %v1726
    %v1805 = vpack.c.bf16 %v1733, %v1730
    %v1806 = vpack.c.bf16 %v1734, %v1731
    %v1807 = vpack.c.bf16 %v1735, %v1732
    %v1808 = vpack.c.bf16 %v1739, %v1736
    %v1809 = vpack.c.bf16 %v1740, %v1737
    %v1810 = vpack.c.bf16 %v1741, %v1738
    %v1811 = vpack.c.bf16 %v1745, %v1742
    %v1812 = vpack.c.bf16 %v1746, %v1743
    %v1813 = vpack.c.bf16 %v1747, %v1744
    %v1814 = vpack.c.bf16 %v1751, %v1748
    %v1815 = vpack.c.bf16 %v1752, %v1749
    %v1816 = vpack.c.bf16 %v1753, %v1750
    %v1817 = vpack.c.bf16 %v1757, %v1754
    %v1818 = vpack.c.bf16 %v1758, %v1755
    %v1819 = vpack.c.bf16 %v1759, %v1756
    %v1820 = vpack.c.bf16 %v1763, %v1760
    %v1821 = vpack.c.bf16 %v1764, %v1761
    %v1822 = vpack.c.bf16 %v1765, %v1762
    %v1823 = vpack.c.bf16 %v1769, %v1766
    %v1824 = vpack.c.bf16 %v1770, %v1767
    %v1825 = vpack.c.bf16 %v1771, %v1768
    %v1826 = vpack.c.bf16 %v1775, %v1772
    %v1827 = vpack.c.bf16 %v1776, %v1773
    %v1828 = vpack.c.bf16 %v1777, %v1774
    %v1829 = vpack.c.bf16 %v1781, %v1778
    %v1830 = vpack.c.bf16 %v1782, %v1779
    %v1831 = vpack.c.bf16 %v1783, %v1780
    %v1832 = vadd.bf16 %v1352, %v1784
    %v1833 = vadd.bf16 %v1353, %v1785
    %v1834 = vadd.bf16 %v1354, %v1786
    %v1835 = vadd.bf16 %v1355, %v1787
    %v1836 = vadd.bf16 %v1356, %v1788
    %v1837 = vadd.bf16 %v1357, %v1789
    %v1838 = vadd.bf16 %v1358, %v1790
    %v1839 = vadd.bf16 %v1359, %v1791
    %v1840 = vadd.bf16 %v1360, %v1792
    %v1841 = vadd.bf16 %v1361, %v1793
    %v1842 = vadd.bf16 %v1362, %v1794
    %v1843 = vadd.bf16 %v1363, %v1795
    %v1844 = vadd.bf16 %v1364, %v1796
    %v1845 = vadd.bf16 %v1365, %v1797
    %v1846 = vadd.bf16 %v1366, %v1798
    %v1847 = vadd.bf16 %v1367, %v1799
    %v1848 = vadd.bf16 %v1368, %v1800
    %v1849 = vadd.bf16 %v1369, %v1801
    %v1850 = vadd.bf16 %v1370, %v1802
    %v1851 = vadd.bf16 %v1371, %v1803
    %v1852 = vadd.bf16 %v1372, %v1804
    %v1853 = vadd.bf16 %v1373, %v1805
    %v1854 = vadd.bf16 %v1374, %v1806
    %v1855 = vadd.bf16 %v1375, %v1807
    %v1856 = vadd.bf16 %v1376, %v1808
    %v1857 = vadd.bf16 %v1377, %v1809
    %v1858 = vadd.bf16 %v1378, %v1810
    %v1859 = vadd.bf16 %v1379, %v1811
    %v1860 = vadd.bf16 %v1380, %v1812
    %v1861 = vadd.bf16 %v1381, %v1813
    %v1862 = vadd.bf16 %v1382, %v1814
    %v1863 = vadd.bf16 %v1383, %v1815
    %v1864 = vadd.bf16 %v1384, %v1816
    %v1865 = vadd.bf16 %v1385, %v1817
    %v1866 = vadd.bf16 %v1386, %v1818
    %v1867 = vadd.bf16 %v1387, %v1819
    %v1868 = vadd.bf16 %v1388, %v1820
    %v1869 = vadd.bf16 %v1389, %v1821
    %v1870 = vadd.bf16 %v1390, %v1822
    %v1871 = vadd.bf16 %v1391, %v1823
    %v1872 = vadd.bf16 %v1392, %v1824
    %v1873 = vadd.bf16 %v1393, %v1825
    %v1874 = vadd.bf16 %v1394, %v1826
    %v1875 = vadd.bf16 %v1395, %v1827
    %v1876 = vadd.bf16 %v1396, %v1828
    %v1877 = vadd.bf16 %v1397, %v1829
    %v1878 = vadd.bf16 %v1398, %v1830
    %v1879 = vadd.bf16 %v1399, %v1831
    %1880 = vset.pattern.permute.xlu0 4
    %1881 = vperm.xlu0 %1880, %v20
    %v1882 = vpop.permute.xlu0 %1881
    %1883 = vset.pattern.permute.xlu0 4
    %1884 = vperm.xlu0 %1883, %v21
    %v1885 = vpop.permute.xlu0 %1884
    %1886 = vset.pattern.permute.xlu0 4
    %1887 = vperm.xlu0 %1886, %v22
    %v1888 = vpop.permute.xlu0 %1887
    %1889 = vset.pattern.permute.xlu0 4
    %1890 = vperm.xlu0 %1889, %v23
    %v1891 = vpop.permute.xlu0 %1890
    %1892 = vset.pattern.permute.xlu0 4
    %1893 = vperm.xlu0 %1892, %v24
    %v1894 = vpop.permute.xlu0 %1893
    %1895 = vset.pattern.permute.xlu0 4
    %1896 = vperm.xlu0 %1895, %v25
    %v1897 = vpop.permute.xlu0 %1896
    %1898 = vset.pattern.permute.xlu0 4
    %1899 = vperm.xlu0 %1898, %v26
    %v1900 = vpop.permute.xlu0 %1899
    %1901 = vset.pattern.permute.xlu0 4
    %1902 = vperm.xlu0 %1901, %v27
    %v1903 = vpop.permute.xlu0 %1902
    %1904 = vset.pattern.permute.xlu0 4
    %1905 = vperm.xlu0 %1904, %v28
    %v1906 = vpop.permute.xlu0 %1905
    %1907 = vset.pattern.permute.xlu0 4
    %1908 = vperm.xlu0 %1907, %v29
    %v1909 = vpop.permute.xlu0 %1908
    %1910 = vset.pattern.permute.xlu0 4
    %1911 = vperm.xlu0 %1910, %v30
    %v1912 = vpop.permute.xlu0 %1911
    %1913 = vset.pattern.permute.xlu0 4
    %1914 = vperm.xlu0 %1913, %v31
    %v1915 = vpop.permute.xlu0 %1914
    %1916 = vset.pattern.permute.xlu0 4
    %1917 = vperm.xlu0 %1916, %v32
    %v1918 = vpop.permute.xlu0 %1917
    %1919 = vset.pattern.permute.xlu0 4
    %1920 = vperm.xlu0 %1919, %v33
    %v1921 = vpop.permute.xlu0 %1920
    %1922 = vset.pattern.permute.xlu0 4
    %1923 = vperm.xlu0 %1922, %v34
    %v1924 = vpop.permute.xlu0 %1923
    %1925 = vset.pattern.permute.xlu0 4
    %1926 = vperm.xlu0 %1925, %v35
    %v1927 = vpop.permute.xlu0 %1926
    %1928 = vset.pattern.permute.xlu0 4
    %1929 = vperm.xlu0 %1928, %v36
    %v1930 = vpop.permute.xlu0 %1929
    %1931 = vset.pattern.permute.xlu0 4
    %1932 = vperm.xlu0 %1931, %v37
    %v1933 = vpop.permute.xlu0 %1932
    %1934 = vset.pattern.permute.xlu0 4
    %1935 = vperm.xlu0 %1934, %v38
    %v1936 = vpop.permute.xlu0 %1935
    %1937 = vset.pattern.permute.xlu0 4
    %1938 = vperm.xlu0 %1937, %v39
    %v1939 = vpop.permute.xlu0 %1938
    %1940 = vset.pattern.permute.xlu0 4
    %1941 = vperm.xlu0 %1940, %v40
    %v1942 = vpop.permute.xlu0 %1941
    %1943 = vset.pattern.permute.xlu0 4
    %1944 = vperm.xlu0 %1943, %v41
    %v1945 = vpop.permute.xlu0 %1944
    %1946 = vset.pattern.permute.xlu0 4
    %1947 = vperm.xlu0 %1946, %v42
    %v1948 = vpop.permute.xlu0 %1947
    %1949 = vset.pattern.permute.xlu0 4
    %1950 = vperm.xlu0 %1949, %v43
    %v1951 = vpop.permute.xlu0 %1950
    %1952 = vset.pattern.permute.xlu0 4
    %1953 = vperm.xlu0 %1952, %v44
    %v1954 = vpop.permute.xlu0 %1953
    %1955 = vset.pattern.permute.xlu0 4
    %1956 = vperm.xlu0 %1955, %v45
    %v1957 = vpop.permute.xlu0 %1956
    %1958 = vset.pattern.permute.xlu0 4
    %1959 = vperm.xlu0 %1958, %v46
    %v1960 = vpop.permute.xlu0 %1959
    %1961 = vset.pattern.permute.xlu0 4
    %1962 = vperm.xlu0 %1961, %v47
    %v1963 = vpop.permute.xlu0 %1962
    %1964 = vset.pattern.permute.xlu0 4
    %1965 = vperm.xlu0 %1964, %v48
    %v1966 = vpop.permute.xlu0 %1965
    %1967 = vset.pattern.permute.xlu0 4
    %1968 = vperm.xlu0 %1967, %v49
    %v1969 = vpop.permute.xlu0 %1968
    %1970 = vset.pattern.permute.xlu0 4
    %1971 = vperm.xlu0 %1970, %v50
    %v1972 = vpop.permute.xlu0 %1971
    %1973 = vset.pattern.permute.xlu0 4
    %1974 = vperm.xlu0 %1973, %v51
    %v1975 = vpop.permute.xlu0 %1974
    %vm1976 = vcmp.eq.s32.totalorder %v53, %v1882
    %vm1977 = vcmp.eq.s32.totalorder %v54, %v1882
    %vm1978 = vcmp.eq.s32.totalorder %v55, %v1882
    %vm1979 = vcmp.eq.s32.totalorder %v53, %v1885
    %vm1980 = vcmp.eq.s32.totalorder %v54, %v1885
    %vm1981 = vcmp.eq.s32.totalorder %v55, %v1885
    %vm1982 = vcmp.eq.s32.totalorder %v53, %v1888
    %vm1983 = vcmp.eq.s32.totalorder %v54, %v1888
    %vm1984 = vcmp.eq.s32.totalorder %v55, %v1888
    %vm1985 = vcmp.eq.s32.totalorder %v53, %v1891
    %vm1986 = vcmp.eq.s32.totalorder %v54, %v1891
    %vm1987 = vcmp.eq.s32.totalorder %v55, %v1891
    %vm1988 = vcmp.eq.s32.totalorder %v53, %v1894
    %vm1989 = vcmp.eq.s32.totalorder %v54, %v1894
    %vm1990 = vcmp.eq.s32.totalorder %v55, %v1894
    %vm1991 = vcmp.eq.s32.totalorder %v53, %v1897
    %vm1992 = vcmp.eq.s32.totalorder %v54, %v1897
    %vm1993 = vcmp.eq.s32.totalorder %v55, %v1897
    %vm1994 = vcmp.eq.s32.totalorder %v53, %v1900
    %vm1995 = vcmp.eq.s32.totalorder %v54, %v1900
    %vm1996 = vcmp.eq.s32.totalorder %v55, %v1900
    %vm1997 = vcmp.eq.s32.totalorder %v53, %v1903
    %vm1998 = vcmp.eq.s32.totalorder %v54, %v1903
    %vm1999 = vcmp.eq.s32.totalorder %v55, %v1903
    %vm2000 = vcmp.eq.s32.totalorder %v53, %v1906
    %vm2001 = vcmp.eq.s32.totalorder %v54, %v1906
    %vm2002 = vcmp.eq.s32.totalorder %v55, %v1906
    %vm2003 = vcmp.eq.s32.totalorder %v53, %v1909
    %vm2004 = vcmp.eq.s32.totalorder %v54, %v1909
    %vm2005 = vcmp.eq.s32.totalorder %v55, %v1909
    %vm2006 = vcmp.eq.s32.totalorder %v53, %v1912
    %vm2007 = vcmp.eq.s32.totalorder %v54, %v1912
    %vm2008 = vcmp.eq.s32.totalorder %v55, %v1912
    %vm2009 = vcmp.eq.s32.totalorder %v53, %v1915
    %vm2010 = vcmp.eq.s32.totalorder %v54, %v1915
    %vm2011 = vcmp.eq.s32.totalorder %v55, %v1915
    %vm2012 = vcmp.eq.s32.totalorder %v53, %v1918
    %vm2013 = vcmp.eq.s32.totalorder %v54, %v1918
    %vm2014 = vcmp.eq.s32.totalorder %v55, %v1918
    %vm2015 = vcmp.eq.s32.totalorder %v53, %v1921
    %vm2016 = vcmp.eq.s32.totalorder %v54, %v1921
    %vm2017 = vcmp.eq.s32.totalorder %v55, %v1921
    %vm2018 = vcmp.eq.s32.totalorder %v53, %v1924
    %vm2019 = vcmp.eq.s32.totalorder %v54, %v1924
    %vm2020 = vcmp.eq.s32.totalorder %v55, %v1924
    %vm2021 = vcmp.eq.s32.totalorder %v53, %v1927
    %vm2022 = vcmp.eq.s32.totalorder %v54, %v1927
    %vm2023 = vcmp.eq.s32.totalorder %v55, %v1927
    %vm2024 = vcmp.eq.s32.totalorder %v53, %v1930
    %vm2025 = vcmp.eq.s32.totalorder %v54, %v1930
    %vm2026 = vcmp.eq.s32.totalorder %v55, %v1930
    %vm2027 = vcmp.eq.s32.totalorder %v53, %v1933
    %vm2028 = vcmp.eq.s32.totalorder %v54, %v1933
    %vm2029 = vcmp.eq.s32.totalorder %v55, %v1933
    %vm2030 = vcmp.eq.s32.totalorder %v53, %v1936
    %vm2031 = vcmp.eq.s32.totalorder %v54, %v1936
    %vm2032 = vcmp.eq.s32.totalorder %v55, %v1936
    %vm2033 = vcmp.eq.s32.totalorder %v53, %v1939
    %vm2034 = vcmp.eq.s32.totalorder %v54, %v1939
    %vm2035 = vcmp.eq.s32.totalorder %v55, %v1939
    %vm2036 = vcmp.eq.s32.totalorder %v53, %v1942
    %vm2037 = vcmp.eq.s32.totalorder %v54, %v1942
    %vm2038 = vcmp.eq.s32.totalorder %v55, %v1942
    %vm2039 = vcmp.eq.s32.totalorder %v53, %v1945
    %vm2040 = vcmp.eq.s32.totalorder %v54, %v1945
    %vm2041 = vcmp.eq.s32.totalorder %v55, %v1945
    %vm2042 = vcmp.eq.s32.totalorder %v53, %v1948
    %vm2043 = vcmp.eq.s32.totalorder %v54, %v1948
    %vm2044 = vcmp.eq.s32.totalorder %v55, %v1948
    %vm2045 = vcmp.eq.s32.totalorder %v53, %v1951
    %vm2046 = vcmp.eq.s32.totalorder %v54, %v1951
    %vm2047 = vcmp.eq.s32.totalorder %v55, %v1951
    %vm2048 = vcmp.eq.s32.totalorder %v53, %v1954
    %vm2049 = vcmp.eq.s32.totalorder %v54, %v1954
    %vm2050 = vcmp.eq.s32.totalorder %v55, %v1954
    %vm2051 = vcmp.eq.s32.totalorder %v53, %v1957
    %vm2052 = vcmp.eq.s32.totalorder %v54, %v1957
    %vm2053 = vcmp.eq.s32.totalorder %v55, %v1957
    %vm2054 = vcmp.eq.s32.totalorder %v53, %v1960
    %vm2055 = vcmp.eq.s32.totalorder %v54, %v1960
    %vm2056 = vcmp.eq.s32.totalorder %v55, %v1960
    %vm2057 = vcmp.eq.s32.totalorder %v53, %v1963
    %vm2058 = vcmp.eq.s32.totalorder %v54, %v1963
    %vm2059 = vcmp.eq.s32.totalorder %v55, %v1963
    %vm2060 = vcmp.eq.s32.totalorder %v53, %v1966
    %vm2061 = vcmp.eq.s32.totalorder %v54, %v1966
    %vm2062 = vcmp.eq.s32.totalorder %v55, %v1966
    %vm2063 = vcmp.eq.s32.totalorder %v53, %v1969
    %vm2064 = vcmp.eq.s32.totalorder %v54, %v1969
    %vm2065 = vcmp.eq.s32.totalorder %v55, %v1969
    %vm2066 = vcmp.eq.s32.totalorder %v53, %v1972
    %vm2067 = vcmp.eq.s32.totalorder %v54, %v1972
    %vm2068 = vcmp.eq.s32.totalorder %v55, %v1972
    %vm2069 = vcmp.eq.s32.totalorder %v53, %v1975
    %vm2070 = vcmp.eq.s32.totalorder %v54, %v1975
    %vm2071 = vcmp.eq.s32.totalorder %v55, %v1975
    %v2072 = vsel %vm1976, 1, 0
    %v2073 = vsel %vm1977, 1, 0
    %v2074 = vsel %vm1978, 1, 0
    %v2075 = vsel %vm1979, 1, 0
    %v2076 = vsel %vm1980, 1, 0
    %v2077 = vsel %vm1981, 1, 0
    %v2078 = vsel %vm1982, 1, 0
    %v2079 = vsel %vm1983, 1, 0
    %v2080 = vsel %vm1984, 1, 0
    %v2081 = vsel %vm1985, 1, 0
    %v2082 = vsel %vm1986, 1, 0
    %v2083 = vsel %vm1987, 1, 0
    %v2084 = vsel %vm1988, 1, 0
    %v2085 = vsel %vm1989, 1, 0
    %v2086 = vsel %vm1990, 1, 0
    %v2087 = vsel %vm1991, 1, 0
    %v2088 = vsel %vm1992, 1, 0
    %v2089 = vsel %vm1993, 1, 0
    %v2090 = vsel %vm1994, 1, 0
    %v2091 = vsel %vm1995, 1, 0
    %v2092 = vsel %vm1996, 1, 0
    %v2093 = vsel %vm1997, 1, 0
    %v2094 = vsel %vm1998, 1, 0
    %v2095 = vsel %vm1999, 1, 0
    %v2096 = vsel %vm2000, 1, 0
    %v2097 = vsel %vm2001, 1, 0
    %v2098 = vsel %vm2002, 1, 0
    %v2099 = vsel %vm2003, 1, 0
    %v2100 = vsel %vm2004, 1, 0
    %v2101 = vsel %vm2005, 1, 0
    %v2102 = vsel %vm2006, 1, 0
    %v2103 = vsel %vm2007, 1, 0
    %v2104 = vsel %vm2008, 1, 0
    %v2105 = vsel %vm2009, 1, 0
    %v2106 = vsel %vm2010, 1, 0
    %v2107 = vsel %vm2011, 1, 0
    %v2108 = vsel %vm2012, 1, 0
    %v2109 = vsel %vm2013, 1, 0
    %v2110 = vsel %vm2014, 1, 0
    %v2111 = vsel %vm2015, 1, 0
    %v2112 = vsel %vm2016, 1, 0
    %v2113 = vsel %vm2017, 1, 0
    %v2114 = vsel %vm2018, 1, 0
    %v2115 = vsel %vm2019, 1, 0
    %v2116 = vsel %vm2020, 1, 0
    %v2117 = vsel %vm2021, 1, 0
    %v2118 = vsel %vm2022, 1, 0
    %v2119 = vsel %vm2023, 1, 0
    %v2120 = vsel %vm2024, 1, 0
    %v2121 = vsel %vm2025, 1, 0
    %v2122 = vsel %vm2026, 1, 0
    %v2123 = vsel %vm2027, 1, 0
    %v2124 = vsel %vm2028, 1, 0
    %v2125 = vsel %vm2029, 1, 0
    %v2126 = vsel %vm2030, 1, 0
    %v2127 = vsel %vm2031, 1, 0
    %v2128 = vsel %vm2032, 1, 0
    %v2129 = vsel %vm2033, 1, 0
    %v2130 = vsel %vm2034, 1, 0
    %v2131 = vsel %vm2035, 1, 0
    %v2132 = vsel %vm2036, 1, 0
    %v2133 = vsel %vm2037, 1, 0
    %v2134 = vsel %vm2038, 1, 0
    %v2135 = vsel %vm2039, 1, 0
    %v2136 = vsel %vm2040, 1, 0
    %v2137 = vsel %vm2041, 1, 0
    %v2138 = vsel %vm2042, 1, 0
    %v2139 = vsel %vm2043, 1, 0
    %v2140 = vsel %vm2044, 1, 0
    %v2141 = vsel %vm2045, 1, 0
    %v2142 = vsel %vm2046, 1, 0
    %v2143 = vsel %vm2047, 1, 0
    %v2144 = vsel %vm2048, 1, 0
    %v2145 = vsel %vm2049, 1, 0
    %v2146 = vsel %vm2050, 1, 0
    %v2147 = vsel %vm2051, 1, 0
    %v2148 = vsel %vm2052, 1, 0
    %v2149 = vsel %vm2053, 1, 0
    %v2150 = vsel %vm2054, 1, 0
    %v2151 = vsel %vm2055, 1, 0
    %v2152 = vsel %vm2056, 1, 0
    %v2153 = vsel %vm2057, 1, 0
    %v2154 = vsel %vm2058, 1, 0
    %v2155 = vsel %vm2059, 1, 0
    %v2156 = vsel %vm2060, 1, 0
    %v2157 = vsel %vm2061, 1, 0
    %v2158 = vsel %vm2062, 1, 0
    %v2159 = vsel %vm2063, 1, 0
    %v2160 = vsel %vm2064, 1, 0
    %v2161 = vsel %vm2065, 1, 0
    %v2162 = vsel %vm2066, 1, 0
    %v2163 = vsel %vm2067, 1, 0
    %v2164 = vsel %vm2068, 1, 0
    %v2165 = vsel %vm2069, 1, 0
    %v2166 = vsel %vm2070, 1, 0
    %v2167 = vsel %vm2071, 1, 0
    %v2168 = vcvt.s32.f32 %v2072
    %v2169 = vcvt.s32.f32 %v2073
    %v2170 = vcvt.s32.f32 %v2074
    %v2171 = vcvt.s32.f32 %v2075
    %v2172 = vcvt.s32.f32 %v2076
    %v2173 = vcvt.s32.f32 %v2077
    %v2174 = vcvt.s32.f32 %v2078
    %v2175 = vcvt.s32.f32 %v2079
    %v2176 = vcvt.s32.f32 %v2080
    %v2177 = vcvt.s32.f32 %v2081
    %v2178 = vcvt.s32.f32 %v2082
    %v2179 = vcvt.s32.f32 %v2083
    %v2180 = vcvt.s32.f32 %v2084
    %v2181 = vcvt.s32.f32 %v2085
    %v2182 = vcvt.s32.f32 %v2086
    %v2183 = vcvt.s32.f32 %v2087
    %v2184 = vcvt.s32.f32 %v2088
    %v2185 = vcvt.s32.f32 %v2089
    %v2186 = vcvt.s32.f32 %v2090
    %v2187 = vcvt.s32.f32 %v2091
    %v2188 = vcvt.s32.f32 %v2092
    %v2189 = vcvt.s32.f32 %v2093
    %v2190 = vcvt.s32.f32 %v2094
    %v2191 = vcvt.s32.f32 %v2095
    %v2192 = vcvt.s32.f32 %v2096
    %v2193 = vcvt.s32.f32 %v2097
    %v2194 = vcvt.s32.f32 %v2098
    %v2195 = vcvt.s32.f32 %v2099
    %v2196 = vcvt.s32.f32 %v2100
    %v2197 = vcvt.s32.f32 %v2101
    %v2198 = vcvt.s32.f32 %v2102
    %v2199 = vcvt.s32.f32 %v2103
    %v2200 = vcvt.s32.f32 %v2104
    %v2201 = vcvt.s32.f32 %v2105
    %v2202 = vcvt.s32.f32 %v2106
    %v2203 = vcvt.s32.f32 %v2107
    %v2204 = vcvt.s32.f32 %v2108
    %v2205 = vcvt.s32.f32 %v2109
    %v2206 = vcvt.s32.f32 %v2110
    %v2207 = vcvt.s32.f32 %v2111
    %v2208 = vcvt.s32.f32 %v2112
    %v2209 = vcvt.s32.f32 %v2113
    %v2210 = vcvt.s32.f32 %v2114
    %v2211 = vcvt.s32.f32 %v2115
    %v2212 = vcvt.s32.f32 %v2116
    %v2213 = vcvt.s32.f32 %v2117
    %v2214 = vcvt.s32.f32 %v2118
    %v2215 = vcvt.s32.f32 %v2119
    %v2216 = vcvt.s32.f32 %v2120
    %v2217 = vcvt.s32.f32 %v2121
    %v2218 = vcvt.s32.f32 %v2122
    %v2219 = vcvt.s32.f32 %v2123
    %v2220 = vcvt.s32.f32 %v2124
    %v2221 = vcvt.s32.f32 %v2125
    %v2222 = vcvt.s32.f32 %v2126
    %v2223 = vcvt.s32.f32 %v2127
    %v2224 = vcvt.s32.f32 %v2128
    %v2225 = vcvt.s32.f32 %v2129
    %v2226 = vcvt.s32.f32 %v2130
    %v2227 = vcvt.s32.f32 %v2131
    %v2228 = vcvt.s32.f32 %v2132
    %v2229 = vcvt.s32.f32 %v2133
    %v2230 = vcvt.s32.f32 %v2134
    %v2231 = vcvt.s32.f32 %v2135
    %v2232 = vcvt.s32.f32 %v2136
    %v2233 = vcvt.s32.f32 %v2137
    %v2234 = vcvt.s32.f32 %v2138
    %v2235 = vcvt.s32.f32 %v2139
    %v2236 = vcvt.s32.f32 %v2140
    %v2237 = vcvt.s32.f32 %v2141
    %v2238 = vcvt.s32.f32 %v2142
    %v2239 = vcvt.s32.f32 %v2143
    %v2240 = vcvt.s32.f32 %v2144
    %v2241 = vcvt.s32.f32 %v2145
    %v2242 = vcvt.s32.f32 %v2146
    %v2243 = vcvt.s32.f32 %v2147
    %v2244 = vcvt.s32.f32 %v2148
    %v2245 = vcvt.s32.f32 %v2149
    %v2246 = vcvt.s32.f32 %v2150
    %v2247 = vcvt.s32.f32 %v2151
    %v2248 = vcvt.s32.f32 %v2152
    %v2249 = vcvt.s32.f32 %v2153
    %v2250 = vcvt.s32.f32 %v2154
    %v2251 = vcvt.s32.f32 %v2155
    %v2252 = vcvt.s32.f32 %v2156
    %v2253 = vcvt.s32.f32 %v2157
    %v2254 = vcvt.s32.f32 %v2158
    %v2255 = vcvt.s32.f32 %v2159
    %v2256 = vcvt.s32.f32 %v2160
    %v2257 = vcvt.s32.f32 %v2161
    %v2258 = vcvt.s32.f32 %v2162
    %v2259 = vcvt.s32.f32 %v2163
    %v2260 = vcvt.s32.f32 %v2164
    %v2261 = vcvt.s32.f32 %v2165
    %v2262 = vcvt.s32.f32 %v2166
    %v2263 = vcvt.s32.f32 %v2167
    %v2264 = vpack.c.bf16 %v2171, %v2168
    %v2265 = vpack.c.bf16 %v2172, %v2169
    %v2266 = vpack.c.bf16 %v2173, %v2170
    %v2267 = vpack.c.bf16 %v2177, %v2174
    %v2268 = vpack.c.bf16 %v2178, %v2175
    %v2269 = vpack.c.bf16 %v2179, %v2176
    %v2270 = vpack.c.bf16 %v2183, %v2180
    %v2271 = vpack.c.bf16 %v2184, %v2181
    %v2272 = vpack.c.bf16 %v2185, %v2182
    %v2273 = vpack.c.bf16 %v2189, %v2186
    %v2274 = vpack.c.bf16 %v2190, %v2187
    %v2275 = vpack.c.bf16 %v2191, %v2188
    %v2276 = vpack.c.bf16 %v2195, %v2192
    %v2277 = vpack.c.bf16 %v2196, %v2193
    %v2278 = vpack.c.bf16 %v2197, %v2194
    %v2279 = vpack.c.bf16 %v2201, %v2198
    %v2280 = vpack.c.bf16 %v2202, %v2199
    %v2281 = vpack.c.bf16 %v2203, %v2200
    %v2282 = vpack.c.bf16 %v2207, %v2204
    %v2283 = vpack.c.bf16 %v2208, %v2205
    %v2284 = vpack.c.bf16 %v2209, %v2206
    %v2285 = vpack.c.bf16 %v2213, %v2210
    %v2286 = vpack.c.bf16 %v2214, %v2211
    %v2287 = vpack.c.bf16 %v2215, %v2212
    %v2288 = vpack.c.bf16 %v2219, %v2216
    %v2289 = vpack.c.bf16 %v2220, %v2217
    %v2290 = vpack.c.bf16 %v2221, %v2218
    %v2291 = vpack.c.bf16 %v2225, %v2222
    %v2292 = vpack.c.bf16 %v2226, %v2223
    %v2293 = vpack.c.bf16 %v2227, %v2224
    %v2294 = vpack.c.bf16 %v2231, %v2228
    %v2295 = vpack.c.bf16 %v2232, %v2229
    %v2296 = vpack.c.bf16 %v2233, %v2230
    %v2297 = vpack.c.bf16 %v2237, %v2234
    %v2298 = vpack.c.bf16 %v2238, %v2235
    %v2299 = vpack.c.bf16 %v2239, %v2236
    %v2300 = vpack.c.bf16 %v2243, %v2240
    %v2301 = vpack.c.bf16 %v2244, %v2241
    %v2302 = vpack.c.bf16 %v2245, %v2242
    %v2303 = vpack.c.bf16 %v2249, %v2246
    %v2304 = vpack.c.bf16 %v2250, %v2247
    %v2305 = vpack.c.bf16 %v2251, %v2248
    %v2306 = vpack.c.bf16 %v2255, %v2252
    %v2307 = vpack.c.bf16 %v2256, %v2253
    %v2308 = vpack.c.bf16 %v2257, %v2254
    %v2309 = vpack.c.bf16 %v2261, %v2258
    %v2310 = vpack.c.bf16 %v2262, %v2259
    %v2311 = vpack.c.bf16 %v2263, %v2260
    %v2312 = vadd.bf16 %v1832, %v2264
    %v2313 = vadd.bf16 %v1833, %v2265
    %v2314 = vadd.bf16 %v1834, %v2266
    %v2315 = vadd.bf16 %v1835, %v2267
    %v2316 = vadd.bf16 %v1836, %v2268
    %v2317 = vadd.bf16 %v1837, %v2269
    %v2318 = vadd.bf16 %v1838, %v2270
    %v2319 = vadd.bf16 %v1839, %v2271
    %v2320 = vadd.bf16 %v1840, %v2272
    %v2321 = vadd.bf16 %v1841, %v2273
    %v2322 = vadd.bf16 %v1842, %v2274
    %v2323 = vadd.bf16 %v1843, %v2275
    %v2324 = vadd.bf16 %v1844, %v2276
    %v2325 = vadd.bf16 %v1845, %v2277
    %v2326 = vadd.bf16 %v1846, %v2278
    %v2327 = vadd.bf16 %v1847, %v2279
    %v2328 = vadd.bf16 %v1848, %v2280
    %v2329 = vadd.bf16 %v1849, %v2281
    %v2330 = vadd.bf16 %v1850, %v2282
    %v2331 = vadd.bf16 %v1851, %v2283
    %v2332 = vadd.bf16 %v1852, %v2284
    %v2333 = vadd.bf16 %v1853, %v2285
    %v2334 = vadd.bf16 %v1854, %v2286
    %v2335 = vadd.bf16 %v1855, %v2287
    %v2336 = vadd.bf16 %v1856, %v2288
    %v2337 = vadd.bf16 %v1857, %v2289
    %v2338 = vadd.bf16 %v1858, %v2290
    %v2339 = vadd.bf16 %v1859, %v2291
    %v2340 = vadd.bf16 %v1860, %v2292
    %v2341 = vadd.bf16 %v1861, %v2293
    %v2342 = vadd.bf16 %v1862, %v2294
    %v2343 = vadd.bf16 %v1863, %v2295
    %v2344 = vadd.bf16 %v1864, %v2296
    %v2345 = vadd.bf16 %v1865, %v2297
    %v2346 = vadd.bf16 %v1866, %v2298
    %v2347 = vadd.bf16 %v1867, %v2299
    %v2348 = vadd.bf16 %v1868, %v2300
    %v2349 = vadd.bf16 %v1869, %v2301
    %v2350 = vadd.bf16 %v1870, %v2302
    %v2351 = vadd.bf16 %v1871, %v2303
    %v2352 = vadd.bf16 %v1872, %v2304
    %v2353 = vadd.bf16 %v1873, %v2305
    %v2354 = vadd.bf16 %v1874, %v2306
    %v2355 = vadd.bf16 %v1875, %v2307
    %v2356 = vadd.bf16 %v1876, %v2308
    %v2357 = vadd.bf16 %v1877, %v2309
    %v2358 = vadd.bf16 %v1878, %v2310
    %v2359 = vadd.bf16 %v1879, %v2311
    %2360 = vset.pattern.permute.xlu0 5
    %2361 = vperm.xlu0 %2360, %v20
    %v2362 = vpop.permute.xlu0 %2361
    %2363 = vset.pattern.permute.xlu0 5
    %2364 = vperm.xlu0 %2363, %v21
    %v2365 = vpop.permute.xlu0 %2364
    %2366 = vset.pattern.permute.xlu0 5
    %2367 = vperm.xlu0 %2366, %v22
    %v2368 = vpop.permute.xlu0 %2367
    %2369 = vset.pattern.permute.xlu0 5
    %2370 = vperm.xlu0 %2369, %v23
    %v2371 = vpop.permute.xlu0 %2370
    %2372 = vset.pattern.permute.xlu0 5
    %2373 = vperm.xlu0 %2372, %v24
    %v2374 = vpop.permute.xlu0 %2373
    %2375 = vset.pattern.permute.xlu0 5
    %2376 = vperm.xlu0 %2375, %v25
    %v2377 = vpop.permute.xlu0 %2376
    %2378 = vset.pattern.permute.xlu0 5
    %2379 = vperm.xlu0 %2378, %v26
    %v2380 = vpop.permute.xlu0 %2379
    %2381 = vset.pattern.permute.xlu0 5
    %2382 = vperm.xlu0 %2381, %v27
    %v2383 = vpop.permute.xlu0 %2382
    %2384 = vset.pattern.permute.xlu0 5
    %2385 = vperm.xlu0 %2384, %v28
    %v2386 = vpop.permute.xlu0 %2385
    %2387 = vset.pattern.permute.xlu0 5
    %2388 = vperm.xlu0 %2387, %v29
    %v2389 = vpop.permute.xlu0 %2388
    %2390 = vset.pattern.permute.xlu0 5
    %2391 = vperm.xlu0 %2390, %v30
    %v2392 = vpop.permute.xlu0 %2391
    %2393 = vset.pattern.permute.xlu0 5
    %2394 = vperm.xlu0 %2393, %v31
    %v2395 = vpop.permute.xlu0 %2394
    %2396 = vset.pattern.permute.xlu0 5
    %2397 = vperm.xlu0 %2396, %v32
    %v2398 = vpop.permute.xlu0 %2397
    %2399 = vset.pattern.permute.xlu0 5
    %2400 = vperm.xlu0 %2399, %v33
    %v2401 = vpop.permute.xlu0 %2400
    %2402 = vset.pattern.permute.xlu0 5
    %2403 = vperm.xlu0 %2402, %v34
    %v2404 = vpop.permute.xlu0 %2403
    %2405 = vset.pattern.permute.xlu0 5
    %2406 = vperm.xlu0 %2405, %v35
    %v2407 = vpop.permute.xlu0 %2406
    %2408 = vset.pattern.permute.xlu0 5
    %2409 = vperm.xlu0 %2408, %v36
    %v2410 = vpop.permute.xlu0 %2409
    %2411 = vset.pattern.permute.xlu0 5
    %2412 = vperm.xlu0 %2411, %v37
    %v2413 = vpop.permute.xlu0 %2412
    %2414 = vset.pattern.permute.xlu0 5
    %2415 = vperm.xlu0 %2414, %v38
    %v2416 = vpop.permute.xlu0 %2415
    %2417 = vset.pattern.permute.xlu0 5
    %2418 = vperm.xlu0 %2417, %v39
    %v2419 = vpop.permute.xlu0 %2418
    %2420 = vset.pattern.permute.xlu0 5
    %2421 = vperm.xlu0 %2420, %v40
    %v2422 = vpop.permute.xlu0 %2421
    %2423 = vset.pattern.permute.xlu0 5
    %2424 = vperm.xlu0 %2423, %v41
    %v2425 = vpop.permute.xlu0 %2424
    %2426 = vset.pattern.permute.xlu0 5
    %2427 = vperm.xlu0 %2426, %v42
    %v2428 = vpop.permute.xlu0 %2427
    %2429 = vset.pattern.permute.xlu0 5
    %2430 = vperm.xlu0 %2429, %v43
    %v2431 = vpop.permute.xlu0 %2430
    %2432 = vset.pattern.permute.xlu0 5
    %2433 = vperm.xlu0 %2432, %v44
    %v2434 = vpop.permute.xlu0 %2433
    %2435 = vset.pattern.permute.xlu0 5
    %2436 = vperm.xlu0 %2435, %v45
    %v2437 = vpop.permute.xlu0 %2436
    %2438 = vset.pattern.permute.xlu0 5
    %2439 = vperm.xlu0 %2438, %v46
    %v2440 = vpop.permute.xlu0 %2439
    %2441 = vset.pattern.permute.xlu0 5
    %2442 = vperm.xlu0 %2441, %v47
    %v2443 = vpop.permute.xlu0 %2442
    %2444 = vset.pattern.permute.xlu0 5
    %2445 = vperm.xlu0 %2444, %v48
    %v2446 = vpop.permute.xlu0 %2445
    %2447 = vset.pattern.permute.xlu0 5
    %2448 = vperm.xlu0 %2447, %v49
    %v2449 = vpop.permute.xlu0 %2448
    %2450 = vset.pattern.permute.xlu0 5
    %2451 = vperm.xlu0 %2450, %v50
    %v2452 = vpop.permute.xlu0 %2451
    %2453 = vset.pattern.permute.xlu0 5
    %2454 = vperm.xlu0 %2453, %v51
    %v2455 = vpop.permute.xlu0 %2454
    %vm2456 = vcmp.eq.s32.totalorder %v53, %v2362
    %vm2457 = vcmp.eq.s32.totalorder %v54, %v2362
    %vm2458 = vcmp.eq.s32.totalorder %v55, %v2362
    %vm2459 = vcmp.eq.s32.totalorder %v53, %v2365
    %vm2460 = vcmp.eq.s32.totalorder %v54, %v2365
    %vm2461 = vcmp.eq.s32.totalorder %v55, %v2365
    %vm2462 = vcmp.eq.s32.totalorder %v53, %v2368
    %vm2463 = vcmp.eq.s32.totalorder %v54, %v2368
    %vm2464 = vcmp.eq.s32.totalorder %v55, %v2368
    %vm2465 = vcmp.eq.s32.totalorder %v53, %v2371
    %vm2466 = vcmp.eq.s32.totalorder %v54, %v2371
    %vm2467 = vcmp.eq.s32.totalorder %v55, %v2371
    %vm2468 = vcmp.eq.s32.totalorder %v53, %v2374
    %vm2469 = vcmp.eq.s32.totalorder %v54, %v2374
    %vm2470 = vcmp.eq.s32.totalorder %v55, %v2374
    %vm2471 = vcmp.eq.s32.totalorder %v53, %v2377
    %vm2472 = vcmp.eq.s32.totalorder %v54, %v2377
    %vm2473 = vcmp.eq.s32.totalorder %v55, %v2377
    %vm2474 = vcmp.eq.s32.totalorder %v53, %v2380
    %vm2475 = vcmp.eq.s32.totalorder %v54, %v2380
    %vm2476 = vcmp.eq.s32.totalorder %v55, %v2380
    %vm2477 = vcmp.eq.s32.totalorder %v53, %v2383
    %vm2478 = vcmp.eq.s32.totalorder %v54, %v2383
    %vm2479 = vcmp.eq.s32.totalorder %v55, %v2383
    %vm2480 = vcmp.eq.s32.totalorder %v53, %v2386
    %vm2481 = vcmp.eq.s32.totalorder %v54, %v2386
    %vm2482 = vcmp.eq.s32.totalorder %v55, %v2386
    %vm2483 = vcmp.eq.s32.totalorder %v53, %v2389
    %vm2484 = vcmp.eq.s32.totalorder %v54, %v2389
    %vm2485 = vcmp.eq.s32.totalorder %v55, %v2389
    %vm2486 = vcmp.eq.s32.totalorder %v53, %v2392
    %vm2487 = vcmp.eq.s32.totalorder %v54, %v2392
    %vm2488 = vcmp.eq.s32.totalorder %v55, %v2392
    %vm2489 = vcmp.eq.s32.totalorder %v53, %v2395
    %vm2490 = vcmp.eq.s32.totalorder %v54, %v2395
    %vm2491 = vcmp.eq.s32.totalorder %v55, %v2395
    %vm2492 = vcmp.eq.s32.totalorder %v53, %v2398
    %vm2493 = vcmp.eq.s32.totalorder %v54, %v2398
    %vm2494 = vcmp.eq.s32.totalorder %v55, %v2398
    %vm2495 = vcmp.eq.s32.totalorder %v53, %v2401
    %vm2496 = vcmp.eq.s32.totalorder %v54, %v2401
    %vm2497 = vcmp.eq.s32.totalorder %v55, %v2401
    %vm2498 = vcmp.eq.s32.totalorder %v53, %v2404
    %vm2499 = vcmp.eq.s32.totalorder %v54, %v2404
    %vm2500 = vcmp.eq.s32.totalorder %v55, %v2404
    %vm2501 = vcmp.eq.s32.totalorder %v53, %v2407
    %vm2502 = vcmp.eq.s32.totalorder %v54, %v2407
    %vm2503 = vcmp.eq.s32.totalorder %v55, %v2407
    %vm2504 = vcmp.eq.s32.totalorder %v53, %v2410
    %vm2505 = vcmp.eq.s32.totalorder %v54, %v2410
    %vm2506 = vcmp.eq.s32.totalorder %v55, %v2410
    %vm2507 = vcmp.eq.s32.totalorder %v53, %v2413
    %vm2508 = vcmp.eq.s32.totalorder %v54, %v2413
    %vm2509 = vcmp.eq.s32.totalorder %v55, %v2413
    %vm2510 = vcmp.eq.s32.totalorder %v53, %v2416
    %vm2511 = vcmp.eq.s32.totalorder %v54, %v2416
    %vm2512 = vcmp.eq.s32.totalorder %v55, %v2416
    %vm2513 = vcmp.eq.s32.totalorder %v53, %v2419
    %vm2514 = vcmp.eq.s32.totalorder %v54, %v2419
    %vm2515 = vcmp.eq.s32.totalorder %v55, %v2419
    %vm2516 = vcmp.eq.s32.totalorder %v53, %v2422
    %vm2517 = vcmp.eq.s32.totalorder %v54, %v2422
    %vm2518 = vcmp.eq.s32.totalorder %v55, %v2422
    %vm2519 = vcmp.eq.s32.totalorder %v53, %v2425
    %vm2520 = vcmp.eq.s32.totalorder %v54, %v2425
    %vm2521 = vcmp.eq.s32.totalorder %v55, %v2425
    %vm2522 = vcmp.eq.s32.totalorder %v53, %v2428
    %vm2523 = vcmp.eq.s32.totalorder %v54, %v2428
    %vm2524 = vcmp.eq.s32.totalorder %v55, %v2428
    %vm2525 = vcmp.eq.s32.totalorder %v53, %v2431
    %vm2526 = vcmp.eq.s32.totalorder %v54, %v2431
    %vm2527 = vcmp.eq.s32.totalorder %v55, %v2431
    %vm2528 = vcmp.eq.s32.totalorder %v53, %v2434
    %vm2529 = vcmp.eq.s32.totalorder %v54, %v2434
    %vm2530 = vcmp.eq.s32.totalorder %v55, %v2434
    %vm2531 = vcmp.eq.s32.totalorder %v53, %v2437
    %vm2532 = vcmp.eq.s32.totalorder %v54, %v2437
    %vm2533 = vcmp.eq.s32.totalorder %v55, %v2437
    %vm2534 = vcmp.eq.s32.totalorder %v53, %v2440
    %vm2535 = vcmp.eq.s32.totalorder %v54, %v2440
    %vm2536 = vcmp.eq.s32.totalorder %v55, %v2440
    %vm2537 = vcmp.eq.s32.totalorder %v53, %v2443
    %vm2538 = vcmp.eq.s32.totalorder %v54, %v2443
    %vm2539 = vcmp.eq.s32.totalorder %v55, %v2443
    %vm2540 = vcmp.eq.s32.totalorder %v53, %v2446
    %vm2541 = vcmp.eq.s32.totalorder %v54, %v2446
    %vm2542 = vcmp.eq.s32.totalorder %v55, %v2446
    %vm2543 = vcmp.eq.s32.totalorder %v53, %v2449
    %vm2544 = vcmp.eq.s32.totalorder %v54, %v2449
    %vm2545 = vcmp.eq.s32.totalorder %v55, %v2449
    %vm2546 = vcmp.eq.s32.totalorder %v53, %v2452
    %vm2547 = vcmp.eq.s32.totalorder %v54, %v2452
    %vm2548 = vcmp.eq.s32.totalorder %v55, %v2452
    %vm2549 = vcmp.eq.s32.totalorder %v53, %v2455
    %vm2550 = vcmp.eq.s32.totalorder %v54, %v2455
    %vm2551 = vcmp.eq.s32.totalorder %v55, %v2455
    %v2552 = vsel %vm2456, 1, 0
    %v2553 = vsel %vm2457, 1, 0
    %v2554 = vsel %vm2458, 1, 0
    %v2555 = vsel %vm2459, 1, 0
    %v2556 = vsel %vm2460, 1, 0
    %v2557 = vsel %vm2461, 1, 0
    %v2558 = vsel %vm2462, 1, 0
    %v2559 = vsel %vm2463, 1, 0
    %v2560 = vsel %vm2464, 1, 0
    %v2561 = vsel %vm2465, 1, 0
    %v2562 = vsel %vm2466, 1, 0
    %v2563 = vsel %vm2467, 1, 0
    %v2564 = vsel %vm2468, 1, 0
    %v2565 = vsel %vm2469, 1, 0
    %v2566 = vsel %vm2470, 1, 0
    %v2567 = vsel %vm2471, 1, 0
    %v2568 = vsel %vm2472, 1, 0
    %v2569 = vsel %vm2473, 1, 0
    %v2570 = vsel %vm2474, 1, 0
    %v2571 = vsel %vm2475, 1, 0
    %v2572 = vsel %vm2476, 1, 0
    %v2573 = vsel %vm2477, 1, 0
    %v2574 = vsel %vm2478, 1, 0
    %v2575 = vsel %vm2479, 1, 0
    %v2576 = vsel %vm2480, 1, 0
    %v2577 = vsel %vm2481, 1, 0
    %v2578 = vsel %vm2482, 1, 0
    %v2579 = vsel %vm2483, 1, 0
    %v2580 = vsel %vm2484, 1, 0
    %v2581 = vsel %vm2485, 1, 0
    %v2582 = vsel %vm2486, 1, 0
    %v2583 = vsel %vm2487, 1, 0
    %v2584 = vsel %vm2488, 1, 0
    %v2585 = vsel %vm2489, 1, 0
    %v2586 = vsel %vm2490, 1, 0
    %v2587 = vsel %vm2491, 1, 0
    %v2588 = vsel %vm2492, 1, 0
    %v2589 = vsel %vm2493, 1, 0
    %v2590 = vsel %vm2494, 1, 0
    %v2591 = vsel %vm2495, 1, 0
    %v2592 = vsel %vm2496, 1, 0
    %v2593 = vsel %vm2497, 1, 0
    %v2594 = vsel %vm2498, 1, 0
    %v2595 = vsel %vm2499, 1, 0
    %v2596 = vsel %vm2500, 1, 0
    %v2597 = vsel %vm2501, 1, 0
    %v2598 = vsel %vm2502, 1, 0
    %v2599 = vsel %vm2503, 1, 0
    %v2600 = vsel %vm2504, 1, 0
    %v2601 = vsel %vm2505, 1, 0
    %v2602 = vsel %vm2506, 1, 0
    %v2603 = vsel %vm2507, 1, 0
    %v2604 = vsel %vm2508, 1, 0
    %v2605 = vsel %vm2509, 1, 0
    %v2606 = vsel %vm2510, 1, 0
    %v2607 = vsel %vm2511, 1, 0
    %v2608 = vsel %vm2512, 1, 0
    %v2609 = vsel %vm2513, 1, 0
    %v2610 = vsel %vm2514, 1, 0
    %v2611 = vsel %vm2515, 1, 0
    %v2612 = vsel %vm2516, 1, 0
    %v2613 = vsel %vm2517, 1, 0
    %v2614 = vsel %vm2518, 1, 0
    %v2615 = vsel %vm2519, 1, 0
    %v2616 = vsel %vm2520, 1, 0
    %v2617 = vsel %vm2521, 1, 0
    %v2618 = vsel %vm2522, 1, 0
    %v2619 = vsel %vm2523, 1, 0
    %v2620 = vsel %vm2524, 1, 0
    %v2621 = vsel %vm2525, 1, 0
    %v2622 = vsel %vm2526, 1, 0
    %v2623 = vsel %vm2527, 1, 0
    %v2624 = vsel %vm2528, 1, 0
    %v2625 = vsel %vm2529, 1, 0
    %v2626 = vsel %vm2530, 1, 0
    %v2627 = vsel %vm2531, 1, 0
    %v2628 = vsel %vm2532, 1, 0
    %v2629 = vsel %vm2533, 1, 0
    %v2630 = vsel %vm2534, 1, 0
    %v2631 = vsel %vm2535, 1, 0
    %v2632 = vsel %vm2536, 1, 0
    %v2633 = vsel %vm2537, 1, 0
    %v2634 = vsel %vm2538, 1, 0
    %v2635 = vsel %vm2539, 1, 0
    %v2636 = vsel %vm2540, 1, 0
    %v2637 = vsel %vm2541, 1, 0
    %v2638 = vsel %vm2542, 1, 0
    %v2639 = vsel %vm2543, 1, 0
    %v2640 = vsel %vm2544, 1, 0
    %v2641 = vsel %vm2545, 1, 0
    %v2642 = vsel %vm2546, 1, 0
    %v2643 = vsel %vm2547, 1, 0
    %v2644 = vsel %vm2548, 1, 0
    %v2645 = vsel %vm2549, 1, 0
    %v2646 = vsel %vm2550, 1, 0
    %v2647 = vsel %vm2551, 1, 0
    %v2648 = vcvt.s32.f32 %v2552
    %v2649 = vcvt.s32.f32 %v2553
    %v2650 = vcvt.s32.f32 %v2554
    %v2651 = vcvt.s32.f32 %v2555
    %v2652 = vcvt.s32.f32 %v2556
    %v2653 = vcvt.s32.f32 %v2557
    %v2654 = vcvt.s32.f32 %v2558
    %v2655 = vcvt.s32.f32 %v2559
    %v2656 = vcvt.s32.f32 %v2560
    %v2657 = vcvt.s32.f32 %v2561
    %v2658 = vcvt.s32.f32 %v2562
    %v2659 = vcvt.s32.f32 %v2563
    %v2660 = vcvt.s32.f32 %v2564
    %v2661 = vcvt.s32.f32 %v2565
    %v2662 = vcvt.s32.f32 %v2566
    %v2663 = vcvt.s32.f32 %v2567
    %v2664 = vcvt.s32.f32 %v2568
    %v2665 = vcvt.s32.f32 %v2569
    %v2666 = vcvt.s32.f32 %v2570
    %v2667 = vcvt.s32.f32 %v2571
    %v2668 = vcvt.s32.f32 %v2572
    %v2669 = vcvt.s32.f32 %v2573
    %v2670 = vcvt.s32.f32 %v2574
    %v2671 = vcvt.s32.f32 %v2575
    %v2672 = vcvt.s32.f32 %v2576
    %v2673 = vcvt.s32.f32 %v2577
    %v2674 = vcvt.s32.f32 %v2578
    %v2675 = vcvt.s32.f32 %v2579
    %v2676 = vcvt.s32.f32 %v2580
    %v2677 = vcvt.s32.f32 %v2581
    %v2678 = vcvt.s32.f32 %v2582
    %v2679 = vcvt.s32.f32 %v2583
    %v2680 = vcvt.s32.f32 %v2584
    %v2681 = vcvt.s32.f32 %v2585
    %v2682 = vcvt.s32.f32 %v2586
    %v2683 = vcvt.s32.f32 %v2587
    %v2684 = vcvt.s32.f32 %v2588
    %v2685 = vcvt.s32.f32 %v2589
    %v2686 = vcvt.s32.f32 %v2590
    %v2687 = vcvt.s32.f32 %v2591
    %v2688 = vcvt.s32.f32 %v2592
    %v2689 = vcvt.s32.f32 %v2593
    %v2690 = vcvt.s32.f32 %v2594
    %v2691 = vcvt.s32.f32 %v2595
    %v2692 = vcvt.s32.f32 %v2596
    %v2693 = vcvt.s32.f32 %v2597
    %v2694 = vcvt.s32.f32 %v2598
    %v2695 = vcvt.s32.f32 %v2599
    %v2696 = vcvt.s32.f32 %v2600
    %v2697 = vcvt.s32.f32 %v2601
    %v2698 = vcvt.s32.f32 %v2602
    %v2699 = vcvt.s32.f32 %v2603
    %v2700 = vcvt.s32.f32 %v2604
    %v2701 = vcvt.s32.f32 %v2605
    %v2702 = vcvt.s32.f32 %v2606
    %v2703 = vcvt.s32.f32 %v2607
    %v2704 = vcvt.s32.f32 %v2608
    %v2705 = vcvt.s32.f32 %v2609
    %v2706 = vcvt.s32.f32 %v2610
    %v2707 = vcvt.s32.f32 %v2611
    %v2708 = vcvt.s32.f32 %v2612
    %v2709 = vcvt.s32.f32 %v2613
    %v2710 = vcvt.s32.f32 %v2614
    %v2711 = vcvt.s32.f32 %v2615
    %v2712 = vcvt.s32.f32 %v2616
    %v2713 = vcvt.s32.f32 %v2617
    %v2714 = vcvt.s32.f32 %v2618
    %v2715 = vcvt.s32.f32 %v2619
    %v2716 = vcvt.s32.f32 %v2620
    %v2717 = vcvt.s32.f32 %v2621
    %v2718 = vcvt.s32.f32 %v2622
    %v2719 = vcvt.s32.f32 %v2623
    %v2720 = vcvt.s32.f32 %v2624
    %v2721 = vcvt.s32.f32 %v2625
    %v2722 = vcvt.s32.f32 %v2626
    %v2723 = vcvt.s32.f32 %v2627
    %v2724 = vcvt.s32.f32 %v2628
    %v2725 = vcvt.s32.f32 %v2629
    %v2726 = vcvt.s32.f32 %v2630
    %v2727 = vcvt.s32.f32 %v2631
    %v2728 = vcvt.s32.f32 %v2632
    %v2729 = vcvt.s32.f32 %v2633
    %v2730 = vcvt.s32.f32 %v2634
    %v2731 = vcvt.s32.f32 %v2635
    %v2732 = vcvt.s32.f32 %v2636
    %v2733 = vcvt.s32.f32 %v2637
    %v2734 = vcvt.s32.f32 %v2638
    %v2735 = vcvt.s32.f32 %v2639
    %v2736 = vcvt.s32.f32 %v2640
    %v2737 = vcvt.s32.f32 %v2641
    %v2738 = vcvt.s32.f32 %v2642
    %v2739 = vcvt.s32.f32 %v2643
    %v2740 = vcvt.s32.f32 %v2644
    %v2741 = vcvt.s32.f32 %v2645
    %v2742 = vcvt.s32.f32 %v2646
    %v2743 = vcvt.s32.f32 %v2647
    %v2744 = vpack.c.bf16 %v2651, %v2648
    %v2745 = vpack.c.bf16 %v2652, %v2649
    %v2746 = vpack.c.bf16 %v2653, %v2650
    %v2747 = vpack.c.bf16 %v2657, %v2654
    %v2748 = vpack.c.bf16 %v2658, %v2655
    %v2749 = vpack.c.bf16 %v2659, %v2656
    %v2750 = vpack.c.bf16 %v2663, %v2660
    %v2751 = vpack.c.bf16 %v2664, %v2661
    %v2752 = vpack.c.bf16 %v2665, %v2662
    %v2753 = vpack.c.bf16 %v2669, %v2666
    %v2754 = vpack.c.bf16 %v2670, %v2667
    %v2755 = vpack.c.bf16 %v2671, %v2668
    %v2756 = vpack.c.bf16 %v2675, %v2672
    %v2757 = vpack.c.bf16 %v2676, %v2673
    %v2758 = vpack.c.bf16 %v2677, %v2674
    %v2759 = vpack.c.bf16 %v2681, %v2678
    %v2760 = vpack.c.bf16 %v2682, %v2679
    %v2761 = vpack.c.bf16 %v2683, %v2680
    %v2762 = vpack.c.bf16 %v2687, %v2684
    %v2763 = vpack.c.bf16 %v2688, %v2685
    %v2764 = vpack.c.bf16 %v2689, %v2686
    %v2765 = vpack.c.bf16 %v2693, %v2690
    %v2766 = vpack.c.bf16 %v2694, %v2691
    %v2767 = vpack.c.bf16 %v2695, %v2692
    %v2768 = vpack.c.bf16 %v2699, %v2696
    %v2769 = vpack.c.bf16 %v2700, %v2697
    %v2770 = vpack.c.bf16 %v2701, %v2698
    %v2771 = vpack.c.bf16 %v2705, %v2702
    %v2772 = vpack.c.bf16 %v2706, %v2703
    %v2773 = vpack.c.bf16 %v2707, %v2704
    %v2774 = vpack.c.bf16 %v2711, %v2708
    %v2775 = vpack.c.bf16 %v2712, %v2709
    %v2776 = vpack.c.bf16 %v2713, %v2710
    %v2777 = vpack.c.bf16 %v2717, %v2714
    %v2778 = vpack.c.bf16 %v2718, %v2715
    %v2779 = vpack.c.bf16 %v2719, %v2716
    %v2780 = vpack.c.bf16 %v2723, %v2720
    %v2781 = vpack.c.bf16 %v2724, %v2721
    %v2782 = vpack.c.bf16 %v2725, %v2722
    %v2783 = vpack.c.bf16 %v2729, %v2726
    %v2784 = vpack.c.bf16 %v2730, %v2727
    %v2785 = vpack.c.bf16 %v2731, %v2728
    %v2786 = vpack.c.bf16 %v2735, %v2732
    %v2787 = vpack.c.bf16 %v2736, %v2733
    %v2788 = vpack.c.bf16 %v2737, %v2734
    %v2789 = vpack.c.bf16 %v2741, %v2738
    %v2790 = vpack.c.bf16 %v2742, %v2739
    %v2791 = vpack.c.bf16 %v2743, %v2740
    %v2792 = vadd.bf16 %v2312, %v2744
    %v2793 = vadd.bf16 %v2313, %v2745
    %v2794 = vadd.bf16 %v2314, %v2746
    %v2795 = vadd.bf16 %v2315, %v2747
    %v2796 = vadd.bf16 %v2316, %v2748
    %v2797 = vadd.bf16 %v2317, %v2749
    %v2798 = vadd.bf16 %v2318, %v2750
    %v2799 = vadd.bf16 %v2319, %v2751
    %v2800 = vadd.bf16 %v2320, %v2752
    %v2801 = vadd.bf16 %v2321, %v2753
    %v2802 = vadd.bf16 %v2322, %v2754
    %v2803 = vadd.bf16 %v2323, %v2755
    %v2804 = vadd.bf16 %v2324, %v2756
    %v2805 = vadd.bf16 %v2325, %v2757
    %v2806 = vadd.bf16 %v2326, %v2758
    %v2807 = vadd.bf16 %v2327, %v2759
    %v2808 = vadd.bf16 %v2328, %v2760
    %v2809 = vadd.bf16 %v2329, %v2761
    %v2810 = vadd.bf16 %v2330, %v2762
    %v2811 = vadd.bf16 %v2331, %v2763
    %v2812 = vadd.bf16 %v2332, %v2764
    %v2813 = vadd.bf16 %v2333, %v2765
    %v2814 = vadd.bf16 %v2334, %v2766
    %v2815 = vadd.bf16 %v2335, %v2767
    %v2816 = vadd.bf16 %v2336, %v2768
    %v2817 = vadd.bf16 %v2337, %v2769
    %v2818 = vadd.bf16 %v2338, %v2770
    %v2819 = vadd.bf16 %v2339, %v2771
    %v2820 = vadd.bf16 %v2340, %v2772
    %v2821 = vadd.bf16 %v2341, %v2773
    %v2822 = vadd.bf16 %v2342, %v2774
    %v2823 = vadd.bf16 %v2343, %v2775
    %v2824 = vadd.bf16 %v2344, %v2776
    %v2825 = vadd.bf16 %v2345, %v2777
    %v2826 = vadd.bf16 %v2346, %v2778
    %v2827 = vadd.bf16 %v2347, %v2779
    %v2828 = vadd.bf16 %v2348, %v2780
    %v2829 = vadd.bf16 %v2349, %v2781
    %v2830 = vadd.bf16 %v2350, %v2782
    %v2831 = vadd.bf16 %v2351, %v2783
    %v2832 = vadd.bf16 %v2352, %v2784
    %v2833 = vadd.bf16 %v2353, %v2785
    %v2834 = vadd.bf16 %v2354, %v2786
    %v2835 = vadd.bf16 %v2355, %v2787
    %v2836 = vadd.bf16 %v2356, %v2788
    %v2837 = vadd.bf16 %v2357, %v2789
    %v2838 = vadd.bf16 %v2358, %v2790
    %v2839 = vadd.bf16 %v2359, %v2791
    %v2840 = vmul.bf16 %v2792, 1056980736
    %v2841 = vmul.bf16 %v2793, 1056980736
    %v2842 = vmul.bf16 %v2794, 1056980736
    %v2843 = vmul.bf16 %v2795, 1056980736
    %v2844 = vmul.bf16 %v2796, 1056980736
    %v2845 = vmul.bf16 %v2797, 1056980736
    %v2846 = vmul.bf16 %v2798, 1056980736
    %v2847 = vmul.bf16 %v2799, 1056980736
    %v2848 = vmul.bf16 %v2800, 1056980736
    %v2849 = vmul.bf16 %v2801, 1056980736
    %v2850 = vmul.bf16 %v2802, 1056980736
    %v2851 = vmul.bf16 %v2803, 1056980736
    %v2852 = vmul.bf16 %v2804, 1056980736
    %v2853 = vmul.bf16 %v2805, 1056980736
    %v2854 = vmul.bf16 %v2806, 1056980736
    %v2855 = vmul.bf16 %v2807, 1056980736
    %v2856 = vmul.bf16 %v2808, 1056980736
    %v2857 = vmul.bf16 %v2809, 1056980736
    %v2858 = vmul.bf16 %v2810, 1056980736
    %v2859 = vmul.bf16 %v2811, 1056980736
    %v2860 = vmul.bf16 %v2812, 1056980736
    %v2861 = vmul.bf16 %v2813, 1056980736
    %v2862 = vmul.bf16 %v2814, 1056980736
    %v2863 = vmul.bf16 %v2815, 1056980736
    %v2864 = vmul.bf16 %v2816, 1056980736
    %v2865 = vmul.bf16 %v2817, 1056980736
    %v2866 = vmul.bf16 %v2818, 1056980736
    %v2867 = vmul.bf16 %v2819, 1056980736
    %v2868 = vmul.bf16 %v2820, 1056980736
    %v2869 = vmul.bf16 %v2821, 1056980736
    %v2870 = vmul.bf16 %v2822, 1056980736
    %v2871 = vmul.bf16 %v2823, 1056980736
    %v2872 = vmul.bf16 %v2824, 1056980736
    %v2873 = vmul.bf16 %v2825, 1056980736
    %v2874 = vmul.bf16 %v2826, 1056980736
    %v2875 = vmul.bf16 %v2827, 1056980736
    %v2876 = vmul.bf16 %v2828, 1056980736
    %v2877 = vmul.bf16 %v2829, 1056980736
    %v2878 = vmul.bf16 %v2830, 1056980736
    %v2879 = vmul.bf16 %v2831, 1056980736
    %v2880 = vmul.bf16 %v2832, 1056980736
    %v2881 = vmul.bf16 %v2833, 1056980736
    %v2882 = vmul.bf16 %v2834, 1056980736
    %v2883 = vmul.bf16 %v2835, 1056980736
    %v2884 = vmul.bf16 %v2836, 1056980736
    %v2885 = vmul.bf16 %v2837, 1056980736
    %v2886 = vmul.bf16 %v2838, 1056980736
    %v2887 = vmul.bf16 %v2839, 1056980736
    %v2888 = vadd.bf16 %v920, %v2840
    %v2889 = vadd.bf16 %v921, %v2841
    %v2890 = vadd.bf16 %v922, %v2842
    %v2891 = vadd.bf16 %v923, %v2843
    %v2892 = vadd.bf16 %v924, %v2844
    %v2893 = vadd.bf16 %v925, %v2845
    %v2894 = vadd.bf16 %v926, %v2846
    %v2895 = vadd.bf16 %v927, %v2847
    %v2896 = vadd.bf16 %v928, %v2848
    %v2897 = vadd.bf16 %v929, %v2849
    %v2898 = vadd.bf16 %v930, %v2850
    %v2899 = vadd.bf16 %v931, %v2851
    %v2900 = vadd.bf16 %v932, %v2852
    %v2901 = vadd.bf16 %v933, %v2853
    %v2902 = vadd.bf16 %v934, %v2854
    %v2903 = vadd.bf16 %v935, %v2855
    %v2904 = vadd.bf16 %v936, %v2856
    %v2905 = vadd.bf16 %v937, %v2857
    %v2906 = vadd.bf16 %v938, %v2858
    %v2907 = vadd.bf16 %v939, %v2859
    %v2908 = vadd.bf16 %v940, %v2860
    %v2909 = vadd.bf16 %v941, %v2861
    %v2910 = vadd.bf16 %v942, %v2862
    %v2911 = vadd.bf16 %v943, %v2863
    %v2912 = vadd.bf16 %v944, %v2864
    %v2913 = vadd.bf16 %v945, %v2865
    %v2914 = vadd.bf16 %v946, %v2866
    %v2915 = vadd.bf16 %v947, %v2867
    %v2916 = vadd.bf16 %v948, %v2868
    %v2917 = vadd.bf16 %v949, %v2869
    %v2918 = vadd.bf16 %v950, %v2870
    %v2919 = vadd.bf16 %v951, %v2871
    %v2920 = vadd.bf16 %v952, %v2872
    %v2921 = vadd.bf16 %v953, %v2873
    %v2922 = vadd.bf16 %v954, %v2874
    %v2923 = vadd.bf16 %v955, %v2875
    %v2924 = vadd.bf16 %v956, %v2876
    %v2925 = vadd.bf16 %v957, %v2877
    %v2926 = vadd.bf16 %v958, %v2878
    %v2927 = vadd.bf16 %v959, %v2879
    %v2928 = vadd.bf16 %v960, %v2880
    %v2929 = vadd.bf16 %v961, %v2881
    %v2930 = vadd.bf16 %v962, %v2882
    %v2931 = vadd.bf16 %v963, %v2883
    %v2932 = vadd.bf16 %v964, %v2884
    %v2933 = vadd.bf16 %v965, %v2885
    %v2934 = vadd.bf16 %v966, %v2886
    %v2935 = vadd.bf16 %v967, %v2887
    %2936 = vset.pattern.permute.xlu0 6
    %2937 = vperm.xlu0 %2936, %v20
    %v2938 = vpop.permute.xlu0 %2937
    %2939 = vset.pattern.permute.xlu0 6
    %2940 = vperm.xlu0 %2939, %v21
    %v2941 = vpop.permute.xlu0 %2940
    %2942 = vset.pattern.permute.xlu0 6
    %2943 = vperm.xlu0 %2942, %v22
    %v2944 = vpop.permute.xlu0 %2943
    %2945 = vset.pattern.permute.xlu0 6
    %2946 = vperm.xlu0 %2945, %v23
    %v2947 = vpop.permute.xlu0 %2946
    %2948 = vset.pattern.permute.xlu0 6
    %2949 = vperm.xlu0 %2948, %v24
    %v2950 = vpop.permute.xlu0 %2949
    %2951 = vset.pattern.permute.xlu0 6
    %2952 = vperm.xlu0 %2951, %v25
    %v2953 = vpop.permute.xlu0 %2952
    %2954 = vset.pattern.permute.xlu0 6
    %2955 = vperm.xlu0 %2954, %v26
    %v2956 = vpop.permute.xlu0 %2955
    %2957 = vset.pattern.permute.xlu0 6
    %2958 = vperm.xlu0 %2957, %v27
    %v2959 = vpop.permute.xlu0 %2958
    %2960 = vset.pattern.permute.xlu0 6
    %2961 = vperm.xlu0 %2960, %v28
    %v2962 = vpop.permute.xlu0 %2961
    %2963 = vset.pattern.permute.xlu0 6
    %2964 = vperm.xlu0 %2963, %v29
    %v2965 = vpop.permute.xlu0 %2964
    %2966 = vset.pattern.permute.xlu0 6
    %2967 = vperm.xlu0 %2966, %v30
    %v2968 = vpop.permute.xlu0 %2967
    %2969 = vset.pattern.permute.xlu0 6
    %2970 = vperm.xlu0 %2969, %v31
    %v2971 = vpop.permute.xlu0 %2970
    %2972 = vset.pattern.permute.xlu0 6
    %2973 = vperm.xlu0 %2972, %v32
    %v2974 = vpop.permute.xlu0 %2973
    %2975 = vset.pattern.permute.xlu0 6
    %2976 = vperm.xlu0 %2975, %v33
    %v2977 = vpop.permute.xlu0 %2976
    %2978 = vset.pattern.permute.xlu0 6
    %2979 = vperm.xlu0 %2978, %v34
    %v2980 = vpop.permute.xlu0 %2979
    %2981 = vset.pattern.permute.xlu0 6
    %2982 = vperm.xlu0 %2981, %v35
    %v2983 = vpop.permute.xlu0 %2982
    %2984 = vset.pattern.permute.xlu0 6
    %2985 = vperm.xlu0 %2984, %v36
    %v2986 = vpop.permute.xlu0 %2985
    %2987 = vset.pattern.permute.xlu0 6
    %2988 = vperm.xlu0 %2987, %v37
    %v2989 = vpop.permute.xlu0 %2988
    %2990 = vset.pattern.permute.xlu0 6
    %2991 = vperm.xlu0 %2990, %v38
    %v2992 = vpop.permute.xlu0 %2991
    %2993 = vset.pattern.permute.xlu0 6
    %2994 = vperm.xlu0 %2993, %v39
    %v2995 = vpop.permute.xlu0 %2994
    %2996 = vset.pattern.permute.xlu0 6
    %2997 = vperm.xlu0 %2996, %v40
    %v2998 = vpop.permute.xlu0 %2997
    %2999 = vset.pattern.permute.xlu0 6
    %3000 = vperm.xlu0 %2999, %v41
    %v3001 = vpop.permute.xlu0 %3000
    %3002 = vset.pattern.permute.xlu0 6
    %3003 = vperm.xlu0 %3002, %v42
    %v3004 = vpop.permute.xlu0 %3003
    %3005 = vset.pattern.permute.xlu0 6
    %3006 = vperm.xlu0 %3005, %v43
    %v3007 = vpop.permute.xlu0 %3006
    %3008 = vset.pattern.permute.xlu0 6
    %3009 = vperm.xlu0 %3008, %v44
    %v3010 = vpop.permute.xlu0 %3009
    %3011 = vset.pattern.permute.xlu0 6
    %3012 = vperm.xlu0 %3011, %v45
    %v3013 = vpop.permute.xlu0 %3012
    %3014 = vset.pattern.permute.xlu0 6
    %3015 = vperm.xlu0 %3014, %v46
    %v3016 = vpop.permute.xlu0 %3015
    %3017 = vset.pattern.permute.xlu0 6
    %3018 = vperm.xlu0 %3017, %v47
    %v3019 = vpop.permute.xlu0 %3018
    %3020 = vset.pattern.permute.xlu0 6
    %3021 = vperm.xlu0 %3020, %v48
    %v3022 = vpop.permute.xlu0 %3021
    %3023 = vset.pattern.permute.xlu0 6
    %3024 = vperm.xlu0 %3023, %v49
    %v3025 = vpop.permute.xlu0 %3024
    %3026 = vset.pattern.permute.xlu0 6
    %3027 = vperm.xlu0 %3026, %v50
    %v3028 = vpop.permute.xlu0 %3027
    %3029 = vset.pattern.permute.xlu0 6
    %3030 = vperm.xlu0 %3029, %v51
    %v3031 = vpop.permute.xlu0 %3030
    %vm3032 = vcmp.eq.s32.totalorder %v53, %v2938
    %vm3033 = vcmp.eq.s32.totalorder %v54, %v2938
    %vm3034 = vcmp.eq.s32.totalorder %v55, %v2938
    %vm3035 = vcmp.eq.s32.totalorder %v53, %v2941
    %vm3036 = vcmp.eq.s32.totalorder %v54, %v2941
    %vm3037 = vcmp.eq.s32.totalorder %v55, %v2941
    %vm3038 = vcmp.eq.s32.totalorder %v53, %v2944
    %vm3039 = vcmp.eq.s32.totalorder %v54, %v2944
    %vm3040 = vcmp.eq.s32.totalorder %v55, %v2944
    %vm3041 = vcmp.eq.s32.totalorder %v53, %v2947
    %vm3042 = vcmp.eq.s32.totalorder %v54, %v2947
    %vm3043 = vcmp.eq.s32.totalorder %v55, %v2947
    %vm3044 = vcmp.eq.s32.totalorder %v53, %v2950
    %vm3045 = vcmp.eq.s32.totalorder %v54, %v2950
    %vm3046 = vcmp.eq.s32.totalorder %v55, %v2950
    %vm3047 = vcmp.eq.s32.totalorder %v53, %v2953
    %vm3048 = vcmp.eq.s32.totalorder %v54, %v2953
    %vm3049 = vcmp.eq.s32.totalorder %v55, %v2953
    %vm3050 = vcmp.eq.s32.totalorder %v53, %v2956
    %vm3051 = vcmp.eq.s32.totalorder %v54, %v2956
    %vm3052 = vcmp.eq.s32.totalorder %v55, %v2956
    %vm3053 = vcmp.eq.s32.totalorder %v53, %v2959
    %vm3054 = vcmp.eq.s32.totalorder %v54, %v2959
    %vm3055 = vcmp.eq.s32.totalorder %v55, %v2959
    %vm3056 = vcmp.eq.s32.totalorder %v53, %v2962
    %vm3057 = vcmp.eq.s32.totalorder %v54, %v2962
    %vm3058 = vcmp.eq.s32.totalorder %v55, %v2962
    %vm3059 = vcmp.eq.s32.totalorder %v53, %v2965
    %vm3060 = vcmp.eq.s32.totalorder %v54, %v2965
    %vm3061 = vcmp.eq.s32.totalorder %v55, %v2965
    %vm3062 = vcmp.eq.s32.totalorder %v53, %v2968
    %vm3063 = vcmp.eq.s32.totalorder %v54, %v2968
    %vm3064 = vcmp.eq.s32.totalorder %v55, %v2968
    %vm3065 = vcmp.eq.s32.totalorder %v53, %v2971
    %vm3066 = vcmp.eq.s32.totalorder %v54, %v2971
    %vm3067 = vcmp.eq.s32.totalorder %v55, %v2971
    %vm3068 = vcmp.eq.s32.totalorder %v53, %v2974
    %vm3069 = vcmp.eq.s32.totalorder %v54, %v2974
    %vm3070 = vcmp.eq.s32.totalorder %v55, %v2974
    %vm3071 = vcmp.eq.s32.totalorder %v53, %v2977
    %vm3072 = vcmp.eq.s32.totalorder %v54, %v2977
    %vm3073 = vcmp.eq.s32.totalorder %v55, %v2977
    %vm3074 = vcmp.eq.s32.totalorder %v53, %v2980
    %vm3075 = vcmp.eq.s32.totalorder %v54, %v2980
    %vm3076 = vcmp.eq.s32.totalorder %v55, %v2980
    %vm3077 = vcmp.eq.s32.totalorder %v53, %v2983
    %vm3078 = vcmp.eq.s32.totalorder %v54, %v2983
    %vm3079 = vcmp.eq.s32.totalorder %v55, %v2983
    %vm3080 = vcmp.eq.s32.totalorder %v53, %v2986
    %vm3081 = vcmp.eq.s32.totalorder %v54, %v2986
    %vm3082 = vcmp.eq.s32.totalorder %v55, %v2986
    %vm3083 = vcmp.eq.s32.totalorder %v53, %v2989
    %vm3084 = vcmp.eq.s32.totalorder %v54, %v2989
    %vm3085 = vcmp.eq.s32.totalorder %v55, %v2989
    %vm3086 = vcmp.eq.s32.totalorder %v53, %v2992
    %vm3087 = vcmp.eq.s32.totalorder %v54, %v2992
    %vm3088 = vcmp.eq.s32.totalorder %v55, %v2992
    %vm3089 = vcmp.eq.s32.totalorder %v53, %v2995
    %vm3090 = vcmp.eq.s32.totalorder %v54, %v2995
    %vm3091 = vcmp.eq.s32.totalorder %v55, %v2995
    %vm3092 = vcmp.eq.s32.totalorder %v53, %v2998
    %vm3093 = vcmp.eq.s32.totalorder %v54, %v2998
    %vm3094 = vcmp.eq.s32.totalorder %v55, %v2998
    %vm3095 = vcmp.eq.s32.totalorder %v53, %v3001
    %vm3096 = vcmp.eq.s32.totalorder %v54, %v3001
    %vm3097 = vcmp.eq.s32.totalorder %v55, %v3001
    %vm3098 = vcmp.eq.s32.totalorder %v53, %v3004
    %vm3099 = vcmp.eq.s32.totalorder %v54, %v3004
    %vm3100 = vcmp.eq.s32.totalorder %v55, %v3004
    %vm3101 = vcmp.eq.s32.totalorder %v53, %v3007
    %vm3102 = vcmp.eq.s32.totalorder %v54, %v3007
    %vm3103 = vcmp.eq.s32.totalorder %v55, %v3007
    %vm3104 = vcmp.eq.s32.totalorder %v53, %v3010
    %vm3105 = vcmp.eq.s32.totalorder %v54, %v3010
    %vm3106 = vcmp.eq.s32.totalorder %v55, %v3010
    %vm3107 = vcmp.eq.s32.totalorder %v53, %v3013
    %vm3108 = vcmp.eq.s32.totalorder %v54, %v3013
    %vm3109 = vcmp.eq.s32.totalorder %v55, %v3013
    %vm3110 = vcmp.eq.s32.totalorder %v53, %v3016
    %vm3111 = vcmp.eq.s32.totalorder %v54, %v3016
    %vm3112 = vcmp.eq.s32.totalorder %v55, %v3016
    %vm3113 = vcmp.eq.s32.totalorder %v53, %v3019
    %vm3114 = vcmp.eq.s32.totalorder %v54, %v3019
    %vm3115 = vcmp.eq.s32.totalorder %v55, %v3019
    %vm3116 = vcmp.eq.s32.totalorder %v53, %v3022
    %vm3117 = vcmp.eq.s32.totalorder %v54, %v3022
    %vm3118 = vcmp.eq.s32.totalorder %v55, %v3022
    %vm3119 = vcmp.eq.s32.totalorder %v53, %v3025
    %vm3120 = vcmp.eq.s32.totalorder %v54, %v3025
    %vm3121 = vcmp.eq.s32.totalorder %v55, %v3025
    %vm3122 = vcmp.eq.s32.totalorder %v53, %v3028
    %vm3123 = vcmp.eq.s32.totalorder %v54, %v3028
    %vm3124 = vcmp.eq.s32.totalorder %v55, %v3028
    %vm3125 = vcmp.eq.s32.totalorder %v53, %v3031
    %vm3126 = vcmp.eq.s32.totalorder %v54, %v3031
    %vm3127 = vcmp.eq.s32.totalorder %v55, %v3031
    %v3128 = vsel %vm3032, 1, 0
    %v3129 = vsel %vm3033, 1, 0
    %v3130 = vsel %vm3034, 1, 0
    %v3131 = vsel %vm3035, 1, 0
    %v3132 = vsel %vm3036, 1, 0
    %v3133 = vsel %vm3037, 1, 0
    %v3134 = vsel %vm3038, 1, 0
    %v3135 = vsel %vm3039, 1, 0
    %v3136 = vsel %vm3040, 1, 0
    %v3137 = vsel %vm3041, 1, 0
    %v3138 = vsel %vm3042, 1, 0
    %v3139 = vsel %vm3043, 1, 0
    %v3140 = vsel %vm3044, 1, 0
    %v3141 = vsel %vm3045, 1, 0
    %v3142 = vsel %vm3046, 1, 0
    %v3143 = vsel %vm3047, 1, 0
    %v3144 = vsel %vm3048, 1, 0
    %v3145 = vsel %vm3049, 1, 0
    %v3146 = vsel %vm3050, 1, 0
    %v3147 = vsel %vm3051, 1, 0
    %v3148 = vsel %vm3052, 1, 0
    %v3149 = vsel %vm3053, 1, 0
    %v3150 = vsel %vm3054, 1, 0
    %v3151 = vsel %vm3055, 1, 0
    %v3152 = vsel %vm3056, 1, 0
    %v3153 = vsel %vm3057, 1, 0
    %v3154 = vsel %vm3058, 1, 0
    %v3155 = vsel %vm3059, 1, 0
    %v3156 = vsel %vm3060, 1, 0
    %v3157 = vsel %vm3061, 1, 0
    %v3158 = vsel %vm3062, 1, 0
    %v3159 = vsel %vm3063, 1, 0
    %v3160 = vsel %vm3064, 1, 0
    %v3161 = vsel %vm3065, 1, 0
    %v3162 = vsel %vm3066, 1, 0
    %v3163 = vsel %vm3067, 1, 0
    %v3164 = vsel %vm3068, 1, 0
    %v3165 = vsel %vm3069, 1, 0
    %v3166 = vsel %vm3070, 1, 0
    %v3167 = vsel %vm3071, 1, 0
    %v3168 = vsel %vm3072, 1, 0
    %v3169 = vsel %vm3073, 1, 0
    %v3170 = vsel %vm3074, 1, 0
    %v3171 = vsel %vm3075, 1, 0
    %v3172 = vsel %vm3076, 1, 0
    %v3173 = vsel %vm3077, 1, 0
    %v3174 = vsel %vm3078, 1, 0
    %v3175 = vsel %vm3079, 1, 0
    %v3176 = vsel %vm3080, 1, 0
    %v3177 = vsel %vm3081, 1, 0
    %v3178 = vsel %vm3082, 1, 0
    %v3179 = vsel %vm3083, 1, 0
    %v3180 = vsel %vm3084, 1, 0
    %v3181 = vsel %vm3085, 1, 0
    %v3182 = vsel %vm3086, 1, 0
    %v3183 = vsel %vm3087, 1, 0
    %v3184 = vsel %vm3088, 1, 0
    %v3185 = vsel %vm3089, 1, 0
    %v3186 = vsel %vm3090, 1, 0
    %v3187 = vsel %vm3091, 1, 0
    %v3188 = vsel %vm3092, 1, 0
    %v3189 = vsel %vm3093, 1, 0
    %v3190 = vsel %vm3094, 1, 0
    %v3191 = vsel %vm3095, 1, 0
    %v3192 = vsel %vm3096, 1, 0
    %v3193 = vsel %vm3097, 1, 0
    %v3194 = vsel %vm3098, 1, 0
    %v3195 = vsel %vm3099, 1, 0
    %v3196 = vsel %vm3100, 1, 0
    %v3197 = vsel %vm3101, 1, 0
    %v3198 = vsel %vm3102, 1, 0
    %v3199 = vsel %vm3103, 1, 0
    %v3200 = vsel %vm3104, 1, 0
    %v3201 = vsel %vm3105, 1, 0
    %v3202 = vsel %vm3106, 1, 0
    %v3203 = vsel %vm3107, 1, 0
    %v3204 = vsel %vm3108, 1, 0
    %v3205 = vsel %vm3109, 1, 0
    %v3206 = vsel %vm3110, 1, 0
    %v3207 = vsel %vm3111, 1, 0
    %v3208 = vsel %vm3112, 1, 0
    %v3209 = vsel %vm3113, 1, 0
    %v3210 = vsel %vm3114, 1, 0
    %v3211 = vsel %vm3115, 1, 0
    %v3212 = vsel %vm3116, 1, 0
    %v3213 = vsel %vm3117, 1, 0
    %v3214 = vsel %vm3118, 1, 0
    %v3215 = vsel %vm3119, 1, 0
    %v3216 = vsel %vm3120, 1, 0
    %v3217 = vsel %vm3121, 1, 0
    %v3218 = vsel %vm3122, 1, 0
    %v3219 = vsel %vm3123, 1, 0
    %v3220 = vsel %vm3124, 1, 0
    %v3221 = vsel %vm3125, 1, 0
    %v3222 = vsel %vm3126, 1, 0
    %v3223 = vsel %vm3127, 1, 0
    %v3224 = vcvt.s32.f32 %v3128
    %v3225 = vcvt.s32.f32 %v3129
    %v3226 = vcvt.s32.f32 %v3130
    %v3227 = vcvt.s32.f32 %v3131
    %v3228 = vcvt.s32.f32 %v3132
    %v3229 = vcvt.s32.f32 %v3133
    %v3230 = vcvt.s32.f32 %v3134
    %v3231 = vcvt.s32.f32 %v3135
    %v3232 = vcvt.s32.f32 %v3136
    %v3233 = vcvt.s32.f32 %v3137
    %v3234 = vcvt.s32.f32 %v3138
    %v3235 = vcvt.s32.f32 %v3139
    %v3236 = vcvt.s32.f32 %v3140
    %v3237 = vcvt.s32.f32 %v3141
    %v3238 = vcvt.s32.f32 %v3142
    %v3239 = vcvt.s32.f32 %v3143
    %v3240 = vcvt.s32.f32 %v3144
    %v3241 = vcvt.s32.f32 %v3145
    %v3242 = vcvt.s32.f32 %v3146
    %v3243 = vcvt.s32.f32 %v3147
    %v3244 = vcvt.s32.f32 %v3148
    %v3245 = vcvt.s32.f32 %v3149
    %v3246 = vcvt.s32.f32 %v3150
    %v3247 = vcvt.s32.f32 %v3151
    %v3248 = vcvt.s32.f32 %v3152
    %v3249 = vcvt.s32.f32 %v3153
    %v3250 = vcvt.s32.f32 %v3154
    %v3251 = vcvt.s32.f32 %v3155
    %v3252 = vcvt.s32.f32 %v3156
    %v3253 = vcvt.s32.f32 %v3157
    %v3254 = vcvt.s32.f32 %v3158
    %v3255 = vcvt.s32.f32 %v3159
    %v3256 = vcvt.s32.f32 %v3160
    %v3257 = vcvt.s32.f32 %v3161
    %v3258 = vcvt.s32.f32 %v3162
    %v3259 = vcvt.s32.f32 %v3163
    %v3260 = vcvt.s32.f32 %v3164
    %v3261 = vcvt.s32.f32 %v3165
    %v3262 = vcvt.s32.f32 %v3166
    %v3263 = vcvt.s32.f32 %v3167
    %v3264 = vcvt.s32.f32 %v3168
    %v3265 = vcvt.s32.f32 %v3169
    %v3266 = vcvt.s32.f32 %v3170
    %v3267 = vcvt.s32.f32 %v3171
    %v3268 = vcvt.s32.f32 %v3172
    %v3269 = vcvt.s32.f32 %v3173
    %v3270 = vcvt.s32.f32 %v3174
    %v3271 = vcvt.s32.f32 %v3175
    %v3272 = vcvt.s32.f32 %v3176
    %v3273 = vcvt.s32.f32 %v3177
    %v3274 = vcvt.s32.f32 %v3178
    %v3275 = vcvt.s32.f32 %v3179
    %v3276 = vcvt.s32.f32 %v3180
    %v3277 = vcvt.s32.f32 %v3181
    %v3278 = vcvt.s32.f32 %v3182
    %v3279 = vcvt.s32.f32 %v3183
    %v3280 = vcvt.s32.f32 %v3184
    %v3281 = vcvt.s32.f32 %v3185
    %v3282 = vcvt.s32.f32 %v3186
    %v3283 = vcvt.s32.f32 %v3187
    %v3284 = vcvt.s32.f32 %v3188
    %v3285 = vcvt.s32.f32 %v3189
    %v3286 = vcvt.s32.f32 %v3190
    %v3287 = vcvt.s32.f32 %v3191
    %v3288 = vcvt.s32.f32 %v3192
    %v3289 = vcvt.s32.f32 %v3193
    %v3290 = vcvt.s32.f32 %v3194
    %v3291 = vcvt.s32.f32 %v3195
    %v3292 = vcvt.s32.f32 %v3196
    %v3293 = vcvt.s32.f32 %v3197
    %v3294 = vcvt.s32.f32 %v3198
    %v3295 = vcvt.s32.f32 %v3199
    %v3296 = vcvt.s32.f32 %v3200
    %v3297 = vcvt.s32.f32 %v3201
    %v3298 = vcvt.s32.f32 %v3202
    %v3299 = vcvt.s32.f32 %v3203
    %v3300 = vcvt.s32.f32 %v3204
    %v3301 = vcvt.s32.f32 %v3205
    %v3302 = vcvt.s32.f32 %v3206
    %v3303 = vcvt.s32.f32 %v3207
    %v3304 = vcvt.s32.f32 %v3208
    %v3305 = vcvt.s32.f32 %v3209
    %v3306 = vcvt.s32.f32 %v3210
    %v3307 = vcvt.s32.f32 %v3211
    %v3308 = vcvt.s32.f32 %v3212
    %v3309 = vcvt.s32.f32 %v3213
    %v3310 = vcvt.s32.f32 %v3214
    %v3311 = vcvt.s32.f32 %v3215
    %v3312 = vcvt.s32.f32 %v3216
    %v3313 = vcvt.s32.f32 %v3217
    %v3314 = vcvt.s32.f32 %v3218
    %v3315 = vcvt.s32.f32 %v3219
    %v3316 = vcvt.s32.f32 %v3220
    %v3317 = vcvt.s32.f32 %v3221
    %v3318 = vcvt.s32.f32 %v3222
    %v3319 = vcvt.s32.f32 %v3223
    %v3320 = vpack.c.bf16 %v3227, %v3224
    %v3321 = vpack.c.bf16 %v3228, %v3225
    %v3322 = vpack.c.bf16 %v3229, %v3226
    %v3323 = vpack.c.bf16 %v3233, %v3230
    %v3324 = vpack.c.bf16 %v3234, %v3231
    %v3325 = vpack.c.bf16 %v3235, %v3232
    %v3326 = vpack.c.bf16 %v3239, %v3236
    %v3327 = vpack.c.bf16 %v3240, %v3237
    %v3328 = vpack.c.bf16 %v3241, %v3238
    %v3329 = vpack.c.bf16 %v3245, %v3242
    %v3330 = vpack.c.bf16 %v3246, %v3243
    %v3331 = vpack.c.bf16 %v3247, %v3244
    %v3332 = vpack.c.bf16 %v3251, %v3248
    %v3333 = vpack.c.bf16 %v3252, %v3249
    %v3334 = vpack.c.bf16 %v3253, %v3250
    %v3335 = vpack.c.bf16 %v3257, %v3254
    %v3336 = vpack.c.bf16 %v3258, %v3255
    %v3337 = vpack.c.bf16 %v3259, %v3256
    %v3338 = vpack.c.bf16 %v3263, %v3260
    %v3339 = vpack.c.bf16 %v3264, %v3261
    %v3340 = vpack.c.bf16 %v3265, %v3262
    %v3341 = vpack.c.bf16 %v3269, %v3266
    %v3342 = vpack.c.bf16 %v3270, %v3267
    %v3343 = vpack.c.bf16 %v3271, %v3268
    %v3344 = vpack.c.bf16 %v3275, %v3272
    %v3345 = vpack.c.bf16 %v3276, %v3273
    %v3346 = vpack.c.bf16 %v3277, %v3274
    %v3347 = vpack.c.bf16 %v3281, %v3278
    %v3348 = vpack.c.bf16 %v3282, %v3279
    %v3349 = vpack.c.bf16 %v3283, %v3280
    %v3350 = vpack.c.bf16 %v3287, %v3284
    %v3351 = vpack.c.bf16 %v3288, %v3285
    %v3352 = vpack.c.bf16 %v3289, %v3286
    %v3353 = vpack.c.bf16 %v3293, %v3290
    %v3354 = vpack.c.bf16 %v3294, %v3291
    %v3355 = vpack.c.bf16 %v3295, %v3292
    %v3356 = vpack.c.bf16 %v3299, %v3296
    %v3357 = vpack.c.bf16 %v3300, %v3297
    %v3358 = vpack.c.bf16 %v3301, %v3298
    %v3359 = vpack.c.bf16 %v3305, %v3302
    %v3360 = vpack.c.bf16 %v3306, %v3303
    %v3361 = vpack.c.bf16 %v3307, %v3304
    %v3362 = vpack.c.bf16 %v3311, %v3308
    %v3363 = vpack.c.bf16 %v3312, %v3309
    %v3364 = vpack.c.bf16 %v3313, %v3310
    %v3365 = vpack.c.bf16 %v3317, %v3314
    %v3366 = vpack.c.bf16 %v3318, %v3315
    %v3367 = vpack.c.bf16 %v3319, %v3316
    %v3368 = vadd.bf16 %v2888, %v3320
    %v3369 = vadd.bf16 %v2889, %v3321
    %v3370 = vadd.bf16 %v2890, %v3322
    %v3371 = vadd.bf16 %v2891, %v3323
    %v3372 = vadd.bf16 %v2892, %v3324
    %v3373 = vadd.bf16 %v2893, %v3325
    %v3374 = vadd.bf16 %v2894, %v3326
    %v3375 = vadd.bf16 %v2895, %v3327
    %v3376 = vadd.bf16 %v2896, %v3328
    %v3377 = vadd.bf16 %v2897, %v3329
    %v3378 = vadd.bf16 %v2898, %v3330
    %v3379 = vadd.bf16 %v2899, %v3331
    %v3380 = vadd.bf16 %v2900, %v3332
    %v3381 = vadd.bf16 %v2901, %v3333
    %v3382 = vadd.bf16 %v2902, %v3334
    %v3383 = vadd.bf16 %v2903, %v3335
    %v3384 = vadd.bf16 %v2904, %v3336
    %v3385 = vadd.bf16 %v2905, %v3337
    %v3386 = vadd.bf16 %v2906, %v3338
    %v3387 = vadd.bf16 %v2907, %v3339
    %v3388 = vadd.bf16 %v2908, %v3340
    %v3389 = vadd.bf16 %v2909, %v3341
    %v3390 = vadd.bf16 %v2910, %v3342
    %v3391 = vadd.bf16 %v2911, %v3343
    %v3392 = vadd.bf16 %v2912, %v3344
    %v3393 = vadd.bf16 %v2913, %v3345
    %v3394 = vadd.bf16 %v2914, %v3346
    %v3395 = vadd.bf16 %v2915, %v3347
    %v3396 = vadd.bf16 %v2916, %v3348
    %v3397 = vadd.bf16 %v2917, %v3349
    %v3398 = vadd.bf16 %v2918, %v3350
    %v3399 = vadd.bf16 %v2919, %v3351
    %v3400 = vadd.bf16 %v2920, %v3352
    %v3401 = vadd.bf16 %v2921, %v3353
    %v3402 = vadd.bf16 %v2922, %v3354
    %v3403 = vadd.bf16 %v2923, %v3355
    %v3404 = vadd.bf16 %v2924, %v3356
    %v3405 = vadd.bf16 %v2925, %v3357
    %v3406 = vadd.bf16 %v2926, %v3358
    %v3407 = vadd.bf16 %v2927, %v3359
    %v3408 = vadd.bf16 %v2928, %v3360
    %v3409 = vadd.bf16 %v2929, %v3361
    %v3410 = vadd.bf16 %v2930, %v3362
    %v3411 = vadd.bf16 %v2931, %v3363
    %v3412 = vadd.bf16 %v2932, %v3364
    %v3413 = vadd.bf16 %v2933, %v3365
    %v3414 = vadd.bf16 %v2934, %v3366
    %v3415 = vadd.bf16 %v2935, %v3367
    %v3416 = vld [vmem:[%s2] sm:$0xf]
    %v3417 = vld [vmem:[%s2 + $0x4] sm:$0xf]
    %v3418 = vld [vmem:[%s2 + $0x8] sm:$0xf]
    %v3419 = vld [vmem:[%s2 + $0xc] sm:$0xf]
    %v3420 = vld [vmem:[%s2 + $0x10] sm:$0xf]
    %v3421 = vld [vmem:[%s2 + $0x14] sm:$0xf]
    %v3422 = vld [vmem:[%s2 + $0x18] sm:$0xf]
    %v3423 = vld [vmem:[%s2 + $0x1c] sm:$0xf]
    %v3424 = vld [vmem:[%s2 + $0x20] sm:$0xf]
    %v3425 = vld [vmem:[%s2 + $0x24] sm:$0xf]
    %v3426 = vld [vmem:[%s2 + $0x28] sm:$0xf]
    %v3427 = vld [vmem:[%s2 + $0x2c] sm:$0xf]
    %v3428 = vld [vmem:[%s2 + $0x30] sm:$0xf]
    %v3429 = vld [vmem:[%s2 + $0x34] sm:$0xf]
    %v3430 = vld [vmem:[%s2 + $0x38] sm:$0xf]
    %v3431 = vld [vmem:[%s2 + $0x3c] sm:$0xf]
    %v3432 = vld [vmem:[%s2 + $0x40] sm:$0xf]
    %v3433 = vld [vmem:[%s2 + $0x44] sm:$0xf]
    %v3434 = vld [vmem:[%s2 + $0x48] sm:$0xf]
    %v3435 = vld [vmem:[%s2 + $0x4c] sm:$0xf]
    %v3436 = vld [vmem:[%s2 + $0x50] sm:$0xf]
    %v3437 = vld [vmem:[%s2 + $0x54] sm:$0xf]
    %v3438 = vld [vmem:[%s2 + $0x58] sm:$0xf]
    %v3439 = vld [vmem:[%s2 + $0x5c] sm:$0xf]
    %v3440 = vld [vmem:[%s2 + $0x60] sm:$0xf]
    %v3441 = vld [vmem:[%s2 + $0x64] sm:$0xf]
    %v3442 = vld [vmem:[%s2 + $0x68] sm:$0xf]
    %v3443 = vld [vmem:[%s2 + $0x6c] sm:$0xf]
    %v3444 = vld [vmem:[%s2 + $0x70] sm:$0xf]
    %v3445 = vld [vmem:[%s2 + $0x74] sm:$0xf]
    %v3446 = vld [vmem:[%s2 + $0x78] sm:$0xf]
    %v3447 = vld [vmem:[%s2 + $0x7c] sm:$0xf]
    %v3448 = vld [vmem:[%s2 + $0x80] sm:$0xf]
    %v3449 = vld [vmem:[%s2 + $0x84] sm:$0xf]
    %v3450 = vld [vmem:[%s2 + $0x88] sm:$0xf]
    %v3451 = vld [vmem:[%s2 + $0x8c] sm:$0xf]
    %v3452 = vld [vmem:[%s2 + $0x90] sm:$0xf]
    %v3453 = vld [vmem:[%s2 + $0x94] sm:$0xf]
    %v3454 = vld [vmem:[%s2 + $0x98] sm:$0xf]
    %v3455 = vld [vmem:[%s2 + $0x9c] sm:$0xf]
    %v3456 = vld [vmem:[%s2 + $0xa0] sm:$0xf]
    %v3457 = vld [vmem:[%s2 + $0xa4] sm:$0xf]
    %v3458 = vld [vmem:[%s2 + $0xa8] sm:$0xf]
    %v3459 = vld [vmem:[%s2 + $0xac] sm:$0xf]
    %v3460 = vld [vmem:[%s2 + $0xb0] sm:$0xf]
    %v3461 = vld [vmem:[%s2 + $0xb4] sm:$0xf]
    %v3462 = vld [vmem:[%s2 + $0xb8] sm:$0xf]
    %v3463 = vld [vmem:[%s2 + $0xbc] sm:$0xf]
    %v3512 = vunpack.c.l.b16 %v3416
    %v3513 = vunpack.c.l.b16 %v3417
    %v3514 = vunpack.c.l.b16 %v3418
    %v3515 = vunpack.c.l.b16 %v3419
    %v3516 = vunpack.c.l.b16 %v3420
    %v3517 = vunpack.c.l.b16 %v3421
    %v3518 = vunpack.c.l.b16 %v3422
    %v3519 = vunpack.c.l.b16 %v3423
    %v3520 = vunpack.c.l.b16 %v3424
    %v3521 = vunpack.c.l.b16 %v3425
    %v3522 = vunpack.c.l.b16 %v3426
    %v3523 = vunpack.c.l.b16 %v3427
    %v3524 = vunpack.c.l.b16 %v3428
    %v3525 = vunpack.c.l.b16 %v3429
    %v3526 = vunpack.c.l.b16 %v3430
    %v3527 = vunpack.c.l.b16 %v3431
    %v3528 = vunpack.c.l.b16 %v3432
    %v3529 = vunpack.c.l.b16 %v3433
    %v3530 = vunpack.c.l.b16 %v3434
    %v3531 = vunpack.c.l.b16 %v3435
    %v3532 = vunpack.c.l.b16 %v3436
    %v3533 = vunpack.c.l.b16 %v3437
    %v3534 = vunpack.c.l.b16 %v3438
    %v3535 = vunpack.c.l.b16 %v3439
    %v3536 = vunpack.c.l.b16 %v3440
    %v3537 = vunpack.c.l.b16 %v3441
    %v3538 = vunpack.c.l.b16 %v3442
    %v3539 = vunpack.c.l.b16 %v3443
    %v3540 = vunpack.c.l.b16 %v3444
    %v3541 = vunpack.c.l.b16 %v3445
    %v3542 = vunpack.c.l.b16 %v3446
    %v3543 = vunpack.c.l.b16 %v3447
    %v3544 = vunpack.c.l.b16 %v3448
    %v3545 = vunpack.c.l.b16 %v3449
    %v3546 = vunpack.c.l.b16 %v3450
    %v3547 = vunpack.c.l.b16 %v3451
    %v3548 = vunpack.c.l.b16 %v3452
    %v3549 = vunpack.c.l.b16 %v3453
    %v3550 = vunpack.c.l.b16 %v3454
    %v3551 = vunpack.c.l.b16 %v3455
    %v3552 = vunpack.c.l.b16 %v3456
    %v3553 = vunpack.c.l.b16 %v3457
    %v3554 = vunpack.c.l.b16 %v3458
    %v3555 = vunpack.c.l.b16 %v3459
    %v3556 = vunpack.c.l.b16 %v3460
    %v3557 = vunpack.c.l.b16 %v3461
    %v3558 = vunpack.c.l.b16 %v3462
    %v3559 = vunpack.c.l.b16 %v3463
    %v3560 = vpack.c.b16 %v3513, %v3512
    %v3561 = vpack.c.b16 %v3515, %v3514
    %v3562 = vpack.c.b16 %v3517, %v3516
    %v3563 = vpack.c.b16 %v3519, %v3518
    %v3564 = vpack.c.b16 %v3521, %v3520
    %v3565 = vpack.c.b16 %v3523, %v3522
    %v3566 = vpack.c.b16 %v3525, %v3524
    %v3567 = vpack.c.b16 %v3527, %v3526
    %v3568 = vpack.c.b16 %v3529, %v3528
    %v3569 = vpack.c.b16 %v3531, %v3530
    %v3570 = vpack.c.b16 %v3533, %v3532
    %v3571 = vpack.c.b16 %v3535, %v3534
    %v3572 = vpack.c.b16 %v3537, %v3536
    %v3573 = vpack.c.b16 %v3539, %v3538
    %v3574 = vpack.c.b16 %v3541, %v3540
    %v3575 = vpack.c.b16 %v3543, %v3542
    %v3576 = vpack.c.b16 %v3545, %v3544
    %v3577 = vpack.c.b16 %v3547, %v3546
    %v3578 = vpack.c.b16 %v3549, %v3548
    %v3579 = vpack.c.b16 %v3551, %v3550
    %v3580 = vpack.c.b16 %v3553, %v3552
    %v3581 = vpack.c.b16 %v3555, %v3554
    %v3582 = vpack.c.b16 %v3557, %v3556
    %v3583 = vpack.c.b16 %v3559, %v3558
    %3608 = vmatprep.subr.bf16.mxu0 0
    %3609 = vmatpush1.bf16.msra.mxu0 %v3560
    %3610 = vmatprep.subr.bf16.mxu0 0
    %3611 = vmatpush1.bf16.msra.mxu0 %v3561
    %3612 = vmatprep.subr.bf16.mxu0 0
    %3613 = vmatpush1.bf16.msra.mxu0 %v3562
    %3614 = vmatprep.subr.bf16.mxu0 0
    %3615 = vmatpush1.bf16.msra.mxu0 %v3563
    %3616 = vmatprep.subr.bf16.mxu0 0
    %3617 = vmatpush1.bf16.msra.mxu0 %v3564
    %3618 = vmatprep.subr.bf16.mxu0 0
    %3619 = vmatpush1.bf16.msra.mxu0 %v3565
    %3620 = vmatprep.subr.bf16.mxu0 0
    %3621 = vmatpush1.bf16.msra.mxu0 %v3566
    %3622 = vmatprep.subr.bf16.mxu0 0
    %3623 = vmatpush1.bf16.msra.mxu0 %v3567
    %3624 = vmatprep.subr.bf16.mxu0 0
    %3625 = vmatpush1.bf16.msra.mxu0 %v3568
    %3626 = vmatprep.subr.bf16.mxu0 0
    %3627 = vmatpush1.bf16.msra.mxu0 %v3569
    %3628 = vmatprep.subr.bf16.mxu0 0
    %3629 = vmatpush1.bf16.msra.mxu0 %v3570
    %3630 = vmatprep.subr.bf16.mxu0 0
    %3631 = vmatpush1.bf16.msra.mxu0 %v3571
    %3632 = vmatprep.subr.bf16.mxu0 0
    %3633 = vmatpush1.bf16.msra.mxu0 %v3572
    %3634 = vmatprep.subr.bf16.mxu0 0
    %3635 = vmatpush1.bf16.msra.mxu0 %v3573
    %3636 = vmatprep.subr.bf16.mxu0 0
    %3637 = vmatpush1.bf16.msra.mxu0 %v3574
    %3638 = vmatprep.subr.bf16.mxu0 0
    %3639 = vmatpush1.bf16.msra.mxu0 %v3575
    %3640 = vmatprep.mubr.bf16.mxu0 %v3369
    %3641 = vmatmul.mubr.bf16.gmra.mrb[0].mxu0 %v3368
    %v3642 = vpop.f32.mrb[0].mxu0
    %v3643 = vadd.f32 0.0, %v3642
    %v3644 = vpop.f32.mrb[0].mxu0
    %v3645 = vpop.f32.mrb[0].mxu0
    %v3646 = vadd.f32 0.0, %v3645
    %v3647 = vpop.f32.mrb[0].mxu0
    %3648 = vmatprep.mubr.bf16.mxu0 %v3372
    %3649 = vmatmul.mubr.bf16.gmra.mrb[0].mxu0 %v3371
    %v3650 = vpop.f32.mrb[0].mxu0
    %v3651 = vadd.f32 0.0, %v3650
    %v3652 = vpop.f32.mrb[0].mxu0
    %v3653 = vpop.f32.mrb[0].mxu0
    %v3654 = vadd.f32 0.0, %v3653
    %v3655 = vpop.f32.mrb[0].mxu0
    %3656 = vmatprep.mubr.bf16.mxu0 %v3375
    %3657 = vmatmul.mubr.bf16.gmra.mrb[0].mxu0 %v3374
    %v3658 = vpop.f32.mrb[0].mxu0
    %v3659 = vadd.f32 0.0, %v3658
    %v3660 = vpop.f32.mrb[0].mxu0
    %v3661 = vpop.f32.mrb[0].mxu0
    %v3662 = vadd.f32 0.0, %v3661
    %v3663 = vpop.f32.mrb[0].mxu0
    %3664 = vmatprep.mubr.bf16.mxu0 %v3378
    %3665 = vmatmul.mubr.bf16.gmra.mrb[0].mxu0 %v3377
    %v3666 = vpop.f32.mrb[0].mxu0
    %v3667 = vadd.f32 0.0, %v3666
    %v3668 = vpop.f32.mrb[0].mxu0
    %v3669 = vpop.f32.mrb[0].mxu0
    %v3670 = vadd.f32 0.0, %v3669
    %v3671 = vpop.f32.mrb[0].mxu0
    %3672 = vmatprep.mubr.bf16.mxu0 %v3381
    %3673 = vmatmul.mubr.bf16.gmra.mrb[0].mxu0 %v3380
    %v3674 = vpop.f32.mrb[0].mxu0
    %v3675 = vadd.f32 0.0, %v3674
    %v3676 = vpop.f32.mrb[0].mxu0
    %v3677 = vpop.f32.mrb[0].mxu0
    %v3678 = vadd.f32 0.0, %v3677
    %v3679 = vpop.f32.mrb[0].mxu0
    %3680 = vmatprep.mubr.bf16.mxu0 %v3384
    %3681 = vmatmul.mubr.bf16.gmra.mrb[0].mxu0 %v3383
    %v3682 = vpop.f32.mrb[0].mxu0
    %v3683 = vadd.f32 0.0, %v3682
    %v3684 = vpop.f32.mrb[0].mxu0
    %v3685 = vpop.f32.mrb[0].mxu0
    %v3686 = vadd.f32 0.0, %v3685
    %v3687 = vpop.f32.mrb[0].mxu0
    %3688 = vmatprep.mubr.bf16.mxu0 %v3387
    %3689 = vmatmul.mubr.bf16.gmra.mrb[0].mxu0 %v3386
    %v3690 = vpop.f32.mrb[0].mxu0
    %v3691 = vadd.f32 0.0, %v3690
    %v3692 = vpop.f32.mrb[0].mxu0
    %v3693 = vpop.f32.mrb[0].mxu0
    %v3694 = vadd.f32 0.0, %v3693
    %v3695 = vpop.f32.mrb[0].mxu0
    %3696 = vmatprep.mubr.bf16.mxu0 %v3390
    %3697 = vmatmul.mubr.bf16.gmra.mrb[0].mxu0 %v3389
    %v3698 = vpop.f32.mrb[0].mxu0
    %v3699 = vadd.f32 0.0, %v3698
    %v3700 = vpop.f32.mrb[0].mxu0
    %v3701 = vpop.f32.mrb[0].mxu0
    %v3702 = vadd.f32 0.0, %v3701
    %v3703 = vpop.f32.mrb[0].mxu0
    %3704 = vmatprep.mubr.bf16.mxu0 %v3393
    %3705 = vmatmul.mubr.bf16.gmra.mrb[0].mxu0 %v3392
    %v3706 = vpop.f32.mrb[0].mxu0
    %v3707 = vadd.f32 0.0, %v3706
    %v3708 = vpop.f32.mrb[0].mxu0
    %v3709 = vpop.f32.mrb[0].mxu0
    %v3710 = vadd.f32 0.0, %v3709
    %v3711 = vpop.f32.mrb[0].mxu0
    %3712 = vmatprep.mubr.bf16.mxu0 %v3396
    %3713 = vmatmul.mubr.bf16.gmra.mrb[0].mxu0 %v3395
    %v3714 = vpop.f32.mrb[0].mxu0
    %v3715 = vadd.f32 0.0, %v3714
    %v3716 = vpop.f32.mrb[0].mxu0
    %v3717 = vpop.f32.mrb[0].mxu0
    %v3718 = vadd.f32 0.0, %v3717
    %v3719 = vpop.f32.mrb[0].mxu0
    %3720 = vmatprep.mubr.bf16.mxu0 %v3399
    %3721 = vmatmul.mubr.bf16.gmra.mrb[0].mxu0 %v3398
    %v3722 = vpop.f32.mrb[0].mxu0
    %v3723 = vadd.f32 0.0, %v3722
    %v3724 = vpop.f32.mrb[0].mxu0
    %v3725 = vpop.f32.mrb[0].mxu0
    %v3726 = vadd.f32 0.0, %v3725
    %v3727 = vpop.f32.mrb[0].mxu0
    %3728 = vmatprep.mubr.bf16.mxu0 %v3402
    %3729 = vmatmul.mubr.bf16.gmra.mrb[0].mxu0 %v3401
    %v3730 = vpop.f32.mrb[0].mxu0
    %v3731 = vadd.f32 0.0, %v3730
    %v3732 = vpop.f32.mrb[0].mxu0
    %v3733 = vpop.f32.mrb[0].mxu0
    %v3734 = vadd.f32 0.0, %v3733
    %v3735 = vpop.f32.mrb[0].mxu0
    %3736 = vmatprep.mubr.bf16.mxu0 %v3405
    %3737 = vmatmul.mubr.bf16.gmra.mrb[0].mxu0 %v3404
    %v3738 = vpop.f32.mrb[0].mxu0
    %v3739 = vadd.f32 0.0, %v3738
    %v3740 = vpop.f32.mrb[0].mxu0
    %v3741 = vpop.f32.mrb[0].mxu0
    %v3742 = vadd.f32 0.0, %v3741
    %v3743 = vpop.f32.mrb[0].mxu0
    %3744 = vmatprep.mubr.bf16.mxu0 %v3408
    %3745 = vmatmul.mubr.bf16.gmra.mrb[0].mxu0 %v3407
    %v3746 = vpop.f32.mrb[0].mxu0
    %v3747 = vadd.f32 0.0, %v3746
    %v3748 = vpop.f32.mrb[0].mxu0
    %v3749 = vpop.f32.mrb[0].mxu0
    %v3750 = vadd.f32 0.0, %v3749
    %v3751 = vpop.f32.mrb[0].mxu0
    %3752 = vmatprep.mubr.bf16.mxu0 %v3411
    %3753 = vmatmul.mubr.bf16.gmra.mrb[0].mxu0 %v3410
    %v3754 = vpop.f32.mrb[0].mxu0
    %v3755 = vadd.f32 0.0, %v3754
    %v3756 = vpop.f32.mrb[0].mxu0
    %v3757 = vpop.f32.mrb[0].mxu0
    %v3758 = vadd.f32 0.0, %v3757
    %v3759 = vpop.f32.mrb[0].mxu0
    %3760 = vmatprep.mubr.bf16.mxu0 %v3414
    %3761 = vmatmul.mubr.bf16.gmra.mrb[0].mxu0 %v3413
    %v3762 = vpop.f32.mrb[0].mxu0
    %v3763 = vadd.f32 0.0, %v3762
    %v3764 = vpop.f32.mrb[0].mxu0
    %v3765 = vpop.f32.mrb[0].mxu0
    %v3766 = vadd.f32 0.0, %v3765
    %v3767 = vpop.f32.mrb[0].mxu0
    %3768 = vdwg.mxu0
    %3769 = vmatprep.subr.bf16.mxu0 0
    %3770 = vmatpush1.bf16.msra.mxu0 %v3576
    %3771 = vmatprep.subr.bf16.mxu0 0
    %3772 = vmatpush1.bf16.msra.mxu0 %v3577
    %3773 = vmatprep.subr.bf16.mxu0 0
    %3774 = vmatpush1.bf16.msra.mxu0 %v3578
    %3775 = vmatprep.subr.bf16.mxu0 0
    %3776 = vmatpush1.bf16.msra.mxu0 %v3579
    %3777 = vmatprep.subr.bf16.mxu0 0
    %3778 = vmatpush1.bf16.msra.mxu0 %v3580
    %3779 = vmatprep.subr.bf16.mxu0 0
    %3780 = vmatpush1.bf16.msra.mxu0 %v3581
    %3781 = vmatprep.subr.bf16.mxu0 0
    %3782 = vmatpush1.bf16.msra.mxu0 %v3582
    %3783 = vmatprep.subr.bf16.mxu0 0
    %3784 = vmatpush1.bf16.msra.mxu0 %v3583
    %3785 = vmatprep.subr.bf16.mxu0 0
    %3786 = vmatpush1.bf16.msra.mxu0 0
    %3787 = vmatprep.subr.bf16.mxu0 0
    %3788 = vmatpush1.bf16.msra.mxu0 0
    %3789 = vmatprep.subr.bf16.mxu0 0
    %3790 = vmatpush1.bf16.msra.mxu0 0
    %3791 = vmatprep.subr.bf16.mxu0 0
    %3792 = vmatpush1.bf16.msra.mxu0 0
    %3793 = vmatprep.subr.bf16.mxu0 0
    %3794 = vmatpush1.bf16.msra.mxu0 0
    %3795 = vmatprep.subr.bf16.mxu0 0
    %3796 = vmatpush1.bf16.msra.mxu0 0
    %3797 = vmatprep.subr.bf16.mxu0 0
    %3798 = vmatpush1.bf16.msra.mxu0 0
    %3799 = vmatprep.subr.bf16.mxu0 0
    %3800 = vmatpush1.bf16.msra.mxu0 0
    %3801 = vmatprep.mubr.bf16.mxu0 0
    %3802 = vmatmul.mubr.bf16.gmra.mrb[0].mxu0 %v3370
    %v3803 = vpop.f32.mrb[0].mxu0
    %v3804 = vadd.f32 %v3643, %v3803
    %v3805 = vpop.f32.mrb[0].mxu0
    %v3806 = vpop.f32.mrb[0].mxu0
    %v3807 = vadd.f32 %v3646, %v3806
    %v3808 = vpop.f32.mrb[0].mxu0
    %3809 = vmatprep.mubr.bf16.mxu0 0
    %3810 = vmatmul.mubr.bf16.gmra.mrb[0].mxu0 %v3373
    %v3811 = vpop.f32.mrb[0].mxu0
    %v3812 = vadd.f32 %v3651, %v3811
    %v3813 = vpop.f32.mrb[0].mxu0
    %v3814 = vpop.f32.mrb[0].mxu0
    %v3815 = vadd.f32 %v3654, %v3814
    %v3816 = vpop.f32.mrb[0].mxu0
    %3817 = vmatprep.mubr.bf16.mxu0 0
    %3818 = vmatmul.mubr.bf16.gmra.mrb[0].mxu0 %v3376
    %v3819 = vpop.f32.mrb[0].mxu0
    %v3820 = vadd.f32 %v3659, %v3819
    %v3821 = vpop.f32.mrb[0].mxu0
    %v3822 = vpop.f32.mrb[0].mxu0
    %v3823 = vadd.f32 %v3662, %v3822
    %v3824 = vpop.f32.mrb[0].mxu0
    %3825 = vmatprep.mubr.bf16.mxu0 0
    %3826 = vmatmul.mubr.bf16.gmra.mrb[0].mxu0 %v3379
    %v3827 = vpop.f32.mrb[0].mxu0
    %v3828 = vadd.f32 %v3667, %v3827
    %v3829 = vpop.f32.mrb[0].mxu0
    %v3830 = vpop.f32.mrb[0].mxu0
    %v3831 = vadd.f32 %v3670, %v3830
    %v3832 = vpop.f32.mrb[0].mxu0
    %3833 = vmatprep.mubr.bf16.mxu0 0
    %3834 = vmatmul.mubr.bf16.gmra.mrb[0].mxu0 %v3382
    %v3835 = vpop.f32.mrb[0].mxu0
    %v3836 = vadd.f32 %v3675, %v3835
    %v3837 = vpop.f32.mrb[0].mxu0
    %v3838 = vpop.f32.mrb[0].mxu0
    %v3839 = vadd.f32 %v3678, %v3838
    %v3840 = vpop.f32.mrb[0].mxu0
    %3841 = vmatprep.mubr.bf16.mxu0 0
    %3842 = vmatmul.mubr.bf16.gmra.mrb[0].mxu0 %v3385
    %v3843 = vpop.f32.mrb[0].mxu0
    %v3844 = vadd.f32 %v3683, %v3843
    %v3845 = vpop.f32.mrb[0].mxu0
    %v3846 = vpop.f32.mrb[0].mxu0
    %v3847 = vadd.f32 %v3686, %v3846
    %v3848 = vpop.f32.mrb[0].mxu0
    %3849 = vmatprep.mubr.bf16.mxu0 0
    %3850 = vmatmul.mubr.bf16.gmra.mrb[0].mxu0 %v3388
    %v3851 = vpop.f32.mrb[0].mxu0
    %v3852 = vadd.f32 %v3691, %v3851
    %v3853 = vpop.f32.mrb[0].mxu0
    %v3854 = vpop.f32.mrb[0].mxu0
    %v3855 = vadd.f32 %v3694, %v3854
    %v3856 = vpop.f32.mrb[0].mxu0
    %3857 = vmatprep.mubr.bf16.mxu0 0
    %3858 = vmatmul.mubr.bf16.gmra.mrb[0].mxu0 %v3391
    %v3859 = vpop.f32.mrb[0].mxu0
    %v3860 = vadd.f32 %v3699, %v3859
    %v3861 = vpop.f32.mrb[0].mxu0
    %v3862 = vpop.f32.mrb[0].mxu0
    %v3863 = vadd.f32 %v3702, %v3862
    %v3864 = vpop.f32.mrb[0].mxu0
    %3865 = vmatprep.mubr.bf16.mxu0 0
    %3866 = vmatmul.mubr.bf16.gmra.mrb[0].mxu0 %v3394
    %v3867 = vpop.f32.mrb[0].mxu0
    %v3868 = vadd.f32 %v3707, %v3867
    %v3869 = vpop.f32.mrb[0].mxu0
    %v3870 = vpop.f32.mrb[0].mxu0
    %v3871 = vadd.f32 %v3710, %v3870
    %v3872 = vpop.f32.mrb[0].mxu0
    %3873 = vmatprep.mubr.bf16.mxu0 0
    %3874 = vmatmul.mubr.bf16.gmra.mrb[0].mxu0 %v3397
    %v3875 = vpop.f32.mrb[0].mxu0
    %v3876 = vadd.f32 %v3715, %v3875
    %v3877 = vpop.f32.mrb[0].mxu0
    %v3878 = vpop.f32.mrb[0].mxu0
    %v3879 = vadd.f32 %v3718, %v3878
    %v3880 = vpop.f32.mrb[0].mxu0
    %3881 = vmatprep.mubr.bf16.mxu0 0
    %3882 = vmatmul.mubr.bf16.gmra.mrb[0].mxu0 %v3400
    %v3883 = vpop.f32.mrb[0].mxu0
    %v3884 = vadd.f32 %v3723, %v3883
    %v3885 = vpop.f32.mrb[0].mxu0
    %v3886 = vpop.f32.mrb[0].mxu0
    %v3887 = vadd.f32 %v3726, %v3886
    %v3888 = vpop.f32.mrb[0].mxu0
    %3889 = vmatprep.mubr.bf16.mxu0 0
    %3890 = vmatmul.mubr.bf16.gmra.mrb[0].mxu0 %v3403
    %v3891 = vpop.f32.mrb[0].mxu0
    %v3892 = vadd.f32 %v3731, %v3891
    %v3893 = vpop.f32.mrb[0].mxu0
    %v3894 = vpop.f32.mrb[0].mxu0
    %v3895 = vadd.f32 %v3734, %v3894
    %v3896 = vpop.f32.mrb[0].mxu0
    %3897 = vmatprep.mubr.bf16.mxu0 0
    %3898 = vmatmul.mubr.bf16.gmra.mrb[0].mxu0 %v3406
    %v3899 = vpop.f32.mrb[0].mxu0
    %v3900 = vadd.f32 %v3739, %v3899
    %v3901 = vpop.f32.mrb[0].mxu0
    %v3902 = vpop.f32.mrb[0].mxu0
    %v3903 = vadd.f32 %v3742, %v3902
    %v3904 = vpop.f32.mrb[0].mxu0
    %3905 = vmatprep.mubr.bf16.mxu0 0
    %3906 = vmatmul.mubr.bf16.gmra.mrb[0].mxu0 %v3409
    %v3907 = vpop.f32.mrb[0].mxu0
    %v3908 = vadd.f32 %v3747, %v3907
    %v3909 = vpop.f32.mrb[0].mxu0
    %v3910 = vpop.f32.mrb[0].mxu0
    %v3911 = vadd.f32 %v3750, %v3910
    %v3912 = vpop.f32.mrb[0].mxu0
    %3913 = vmatprep.mubr.bf16.mxu0 0
    %3914 = vmatmul.mubr.bf16.gmra.mrb[0].mxu0 %v3412
    %v3915 = vpop.f32.mrb[0].mxu0
    %v3916 = vadd.f32 %v3755, %v3915
    %v3917 = vpop.f32.mrb[0].mxu0
    %v3918 = vpop.f32.mrb[0].mxu0
    %v3919 = vadd.f32 %v3758, %v3918
    %v3920 = vpop.f32.mrb[0].mxu0
    %3921 = vmatprep.mubr.bf16.mxu0 0
    %3922 = vmatmul.mubr.bf16.gmra.mrb[0].mxu0 %v3415
    %v3923 = vpop.f32.mrb[0].mxu0
    %v3924 = vadd.f32 %v3763, %v3923
    %v3925 = vpop.f32.mrb[0].mxu0
    %v3926 = vpop.f32.mrb[0].mxu0
    %v3927 = vadd.f32 %v3766, %v3926
    %v3928 = vpop.f32.mrb[0].mxu0
    %3929 = vdwg.mxu0
    %v3930 = vld [vmem:[%s1] sm:$0xff]
    %v3931 = vld [vmem:[%s1 + $0x8] sm:$0xff]
    %v3932 = vld [vmem:[%s1 + $0x10] sm:$0xff]
    %v3933 = vld [vmem:[%s1 + $0x18] sm:$0xff]
    %v3934 = vld [vmem:[%s1 + $0x20] sm:$0xff]
    %v3935 = vld [vmem:[%s1 + $0x28] sm:$0xff]
    %v3936 = vld [vmem:[%s1 + $0x30] sm:$0xff]
    %v3937 = vld [vmem:[%s1 + $0x38] sm:$0xff]
    %v3938 = vld [vmem:[%s1 + $0x40] sm:$0xff]
    %v3939 = vld [vmem:[%s1 + $0x48] sm:$0xff]
    %v3940 = vld [vmem:[%s1 + $0x50] sm:$0xff]
    %v3941 = vld [vmem:[%s1 + $0x58] sm:$0xff]
    %v3942 = vld [vmem:[%s1 + $0x60] sm:$0xff]
    %v3943 = vld [vmem:[%s1 + $0x68] sm:$0xff]
    %v3944 = vld [vmem:[%s1 + $0x70] sm:$0xff]
    %v3945 = vld [vmem:[%s1 + $0x78] sm:$0xff]
    %v3946 = vld [vmem:[%s1 + $0x80] sm:$0xff]
    %v3947 = vld [vmem:[%s1 + $0x88] sm:$0xff]
    %v3948 = vld [vmem:[%s1 + $0x90] sm:$0xff]
    %v3949 = vld [vmem:[%s1 + $0x98] sm:$0xff]
    %v3950 = vld [vmem:[%s1 + $0xa0] sm:$0xff]
    %v3951 = vld [vmem:[%s1 + $0xa8] sm:$0xff]
    %v3952 = vld [vmem:[%s1 + $0xb0] sm:$0xff]
    %v3953 = vld [vmem:[%s1 + $0xb8] sm:$0xff]
    %v3954 = vld [vmem:[%s1 + $0xc0] sm:$0xff]
    %v3955 = vld [vmem:[%s1 + $0xc8] sm:$0xff]
    %v3956 = vld [vmem:[%s1 + $0xd0] sm:$0xff]
    %v3957 = vld [vmem:[%s1 + $0xd8] sm:$0xff]
    %v3958 = vld [vmem:[%s1 + $0xe0] sm:$0xff]
    %v3959 = vld [vmem:[%s1 + $0xe8] sm:$0xff]
    %v3960 = vld [vmem:[%s1 + $0xf0] sm:$0xff]
    %v3961 = vld [vmem:[%s1 + $0xf8] sm:$0xff]
    %3962 = vset.pattern.permute.xlu0 0
    %3963 = vperm.xlu0 %3962, %v3930
    %v3964 = vpop.permute.xlu0 %3963
    %3965 = vset.pattern.permute.xlu0 0
    %3966 = vperm.xlu0 %3965, %v3931
    %v3967 = vpop.permute.xlu0 %3966
    %3968 = vset.pattern.permute.xlu0 0
    %3969 = vperm.xlu0 %3968, %v3932
    %v3970 = vpop.permute.xlu0 %3969
    %3971 = vset.pattern.permute.xlu0 0
    %3972 = vperm.xlu0 %3971, %v3933
    %v3973 = vpop.permute.xlu0 %3972
    %3974 = vset.pattern.permute.xlu0 0
    %3975 = vperm.xlu0 %3974, %v3934
    %v3976 = vpop.permute.xlu0 %3975
    %3977 = vset.pattern.permute.xlu0 0
    %3978 = vperm.xlu0 %3977, %v3935
    %v3979 = vpop.permute.xlu0 %3978
    %3980 = vset.pattern.permute.xlu0 0
    %3981 = vperm.xlu0 %3980, %v3936
    %v3982 = vpop.permute.xlu0 %3981
    %3983 = vset.pattern.permute.xlu0 0
    %3984 = vperm.xlu0 %3983, %v3937
    %v3985 = vpop.permute.xlu0 %3984
    %3986 = vset.pattern.permute.xlu0 0
    %3987 = vperm.xlu0 %3986, %v3938
    %v3988 = vpop.permute.xlu0 %3987
    %3989 = vset.pattern.permute.xlu0 0
    %3990 = vperm.xlu0 %3989, %v3939
    %v3991 = vpop.permute.xlu0 %3990
    %3992 = vset.pattern.permute.xlu0 0
    %3993 = vperm.xlu0 %3992, %v3940
    %v3994 = vpop.permute.xlu0 %3993
    %3995 = vset.pattern.permute.xlu0 0
    %3996 = vperm.xlu0 %3995, %v3941
    %v3997 = vpop.permute.xlu0 %3996
    %3998 = vset.pattern.permute.xlu0 0
    %3999 = vperm.xlu0 %3998, %v3942
    %v4000 = vpop.permute.xlu0 %3999
    %4001 = vset.pattern.permute.xlu0 0
    %4002 = vperm.xlu0 %4001, %v3943
    %v4003 = vpop.permute.xlu0 %4002
    %4004 = vset.pattern.permute.xlu0 0
    %4005 = vperm.xlu0 %4004, %v3944
    %v4006 = vpop.permute.xlu0 %4005
    %4007 = vset.pattern.permute.xlu0 0
    %4008 = vperm.xlu0 %4007, %v3945
    %v4009 = vpop.permute.xlu0 %4008
    %4010 = vset.pattern.permute.xlu0 0
    %4011 = vperm.xlu0 %4010, %v3946
    %v4012 = vpop.permute.xlu0 %4011
    %4013 = vset.pattern.permute.xlu0 0
    %4014 = vperm.xlu0 %4013, %v3947
    %v4015 = vpop.permute.xlu0 %4014
    %4016 = vset.pattern.permute.xlu0 0
    %4017 = vperm.xlu0 %4016, %v3948
    %v4018 = vpop.permute.xlu0 %4017
    %4019 = vset.pattern.permute.xlu0 0
    %4020 = vperm.xlu0 %4019, %v3949
    %v4021 = vpop.permute.xlu0 %4020
    %4022 = vset.pattern.permute.xlu0 0
    %4023 = vperm.xlu0 %4022, %v3950
    %v4024 = vpop.permute.xlu0 %4023
    %4025 = vset.pattern.permute.xlu0 0
    %4026 = vperm.xlu0 %4025, %v3951
    %v4027 = vpop.permute.xlu0 %4026
    %4028 = vset.pattern.permute.xlu0 0
    %4029 = vperm.xlu0 %4028, %v3952
    %v4030 = vpop.permute.xlu0 %4029
    %4031 = vset.pattern.permute.xlu0 0
    %4032 = vperm.xlu0 %4031, %v3953
    %v4033 = vpop.permute.xlu0 %4032
    %4034 = vset.pattern.permute.xlu0 0
    %4035 = vperm.xlu0 %4034, %v3954
    %v4036 = vpop.permute.xlu0 %4035
    %4037 = vset.pattern.permute.xlu0 0
    %4038 = vperm.xlu0 %4037, %v3955
    %v4039 = vpop.permute.xlu0 %4038
    %4040 = vset.pattern.permute.xlu0 0
    %4041 = vperm.xlu0 %4040, %v3956
    %v4042 = vpop.permute.xlu0 %4041
    %4043 = vset.pattern.permute.xlu0 0
    %4044 = vperm.xlu0 %4043, %v3957
    %v4045 = vpop.permute.xlu0 %4044
    %4046 = vset.pattern.permute.xlu0 0
    %4047 = vperm.xlu0 %4046, %v3958
    %v4048 = vpop.permute.xlu0 %4047
    %4049 = vset.pattern.permute.xlu0 0
    %4050 = vperm.xlu0 %4049, %v3959
    %v4051 = vpop.permute.xlu0 %4050
    %4052 = vset.pattern.permute.xlu0 0
    %4053 = vperm.xlu0 %4052, %v3960
    %v4054 = vpop.permute.xlu0 %4053
    %4055 = vset.pattern.permute.xlu0 0
    %4056 = vperm.xlu0 %4055, %v3961
    %v4057 = vpop.permute.xlu0 %4056
    %vm4058 = vcmp.eq.s32.totalorder %v53, %v3964
    %vm4059 = vcmp.eq.s32.totalorder %v53, %v3967
    %vm4060 = vcmp.eq.s32.totalorder %v53, %v3970
    %vm4061 = vcmp.eq.s32.totalorder %v53, %v3973
    %vm4062 = vcmp.eq.s32.totalorder %v53, %v3976
    %vm4063 = vcmp.eq.s32.totalorder %v53, %v3979
    %vm4064 = vcmp.eq.s32.totalorder %v53, %v3982
    %vm4065 = vcmp.eq.s32.totalorder %v53, %v3985
    %vm4066 = vcmp.eq.s32.totalorder %v53, %v3988
    %vm4067 = vcmp.eq.s32.totalorder %v53, %v3991
    %vm4068 = vcmp.eq.s32.totalorder %v53, %v3994
    %vm4069 = vcmp.eq.s32.totalorder %v53, %v3997
    %vm4070 = vcmp.eq.s32.totalorder %v53, %v4000
    %vm4071 = vcmp.eq.s32.totalorder %v53, %v4003
    %vm4072 = vcmp.eq.s32.totalorder %v53, %v4006
    %vm4073 = vcmp.eq.s32.totalorder %v53, %v4009
    %vm4074 = vcmp.eq.s32.totalorder %v53, %v4012
    %vm4075 = vcmp.eq.s32.totalorder %v53, %v4015
    %vm4076 = vcmp.eq.s32.totalorder %v53, %v4018
    %vm4077 = vcmp.eq.s32.totalorder %v53, %v4021
    %vm4078 = vcmp.eq.s32.totalorder %v53, %v4024
    %vm4079 = vcmp.eq.s32.totalorder %v53, %v4027
    %vm4080 = vcmp.eq.s32.totalorder %v53, %v4030
    %vm4081 = vcmp.eq.s32.totalorder %v53, %v4033
    %vm4082 = vcmp.eq.s32.totalorder %v53, %v4036
    %vm4083 = vcmp.eq.s32.totalorder %v53, %v4039
    %vm4084 = vcmp.eq.s32.totalorder %v53, %v4042
    %vm4085 = vcmp.eq.s32.totalorder %v53, %v4045
    %vm4086 = vcmp.eq.s32.totalorder %v53, %v4048
    %vm4087 = vcmp.eq.s32.totalorder %v53, %v4051
    %vm4088 = vcmp.eq.s32.totalorder %v53, %v4054
    %vm4089 = vcmp.eq.s32.totalorder %v53, %v4057
    %v4090 = vsel %vm4058, 1, 0
    %v4091 = vsel %vm4059, 1, 0
    %v4092 = vsel %vm4060, 1, 0
    %v4093 = vsel %vm4061, 1, 0
    %v4094 = vsel %vm4062, 1, 0
    %v4095 = vsel %vm4063, 1, 0
    %v4096 = vsel %vm4064, 1, 0
    %v4097 = vsel %vm4065, 1, 0
    %v4098 = vsel %vm4066, 1, 0
    %v4099 = vsel %vm4067, 1, 0
    %v4100 = vsel %vm4068, 1, 0
    %v4101 = vsel %vm4069, 1, 0
    %v4102 = vsel %vm4070, 1, 0
    %v4103 = vsel %vm4071, 1, 0
    %v4104 = vsel %vm4072, 1, 0
    %v4105 = vsel %vm4073, 1, 0
    %v4106 = vsel %vm4074, 1, 0
    %v4107 = vsel %vm4075, 1, 0
    %v4108 = vsel %vm4076, 1, 0
    %v4109 = vsel %vm4077, 1, 0
    %v4110 = vsel %vm4078, 1, 0
    %v4111 = vsel %vm4079, 1, 0
    %v4112 = vsel %vm4080, 1, 0
    %v4113 = vsel %vm4081, 1, 0
    %v4114 = vsel %vm4082, 1, 0
    %v4115 = vsel %vm4083, 1, 0
    %v4116 = vsel %vm4084, 1, 0
    %v4117 = vsel %vm4085, 1, 0
    %v4118 = vsel %vm4086, 1, 0
    %v4119 = vsel %vm4087, 1, 0
    %v4120 = vsel %vm4088, 1, 0
    %v4121 = vsel %vm4089, 1, 0
    %v4122 = vcvt.s32.f32 %v4090
    %v4123 = vcvt.s32.f32 %v4091
    %v4124 = vcvt.s32.f32 %v4092
    %v4125 = vcvt.s32.f32 %v4093
    %v4126 = vcvt.s32.f32 %v4094
    %v4127 = vcvt.s32.f32 %v4095
    %v4128 = vcvt.s32.f32 %v4096
    %v4129 = vcvt.s32.f32 %v4097
    %v4130 = vcvt.s32.f32 %v4098
    %v4131 = vcvt.s32.f32 %v4099
    %v4132 = vcvt.s32.f32 %v4100
    %v4133 = vcvt.s32.f32 %v4101
    %v4134 = vcvt.s32.f32 %v4102
    %v4135 = vcvt.s32.f32 %v4103
    %v4136 = vcvt.s32.f32 %v4104
    %v4137 = vcvt.s32.f32 %v4105
    %v4138 = vcvt.s32.f32 %v4106
    %v4139 = vcvt.s32.f32 %v4107
    %v4140 = vcvt.s32.f32 %v4108
    %v4141 = vcvt.s32.f32 %v4109
    %v4142 = vcvt.s32.f32 %v4110
    %v4143 = vcvt.s32.f32 %v4111
    %v4144 = vcvt.s32.f32 %v4112
    %v4145 = vcvt.s32.f32 %v4113
    %v4146 = vcvt.s32.f32 %v4114
    %v4147 = vcvt.s32.f32 %v4115
    %v4148 = vcvt.s32.f32 %v4116
    %v4149 = vcvt.s32.f32 %v4117
    %v4150 = vcvt.s32.f32 %v4118
    %v4151 = vcvt.s32.f32 %v4119
    %v4152 = vcvt.s32.f32 %v4120
    %v4153 = vcvt.s32.f32 %v4121
    %v4154 = vpack.c.bf16 %v4123, %v4122
    %v4155 = vpack.c.bf16 %v4125, %v4124
    %v4156 = vpack.c.bf16 %v4127, %v4126
    %v4157 = vpack.c.bf16 %v4129, %v4128
    %v4158 = vpack.c.bf16 %v4131, %v4130
    %v4159 = vpack.c.bf16 %v4133, %v4132
    %v4160 = vpack.c.bf16 %v4135, %v4134
    %v4161 = vpack.c.bf16 %v4137, %v4136
    %v4162 = vpack.c.bf16 %v4139, %v4138
    %v4163 = vpack.c.bf16 %v4141, %v4140
    %v4164 = vpack.c.bf16 %v4143, %v4142
    %v4165 = vpack.c.bf16 %v4145, %v4144
    %v4166 = vpack.c.bf16 %v4147, %v4146
    %v4167 = vpack.c.bf16 %v4149, %v4148
    %v4168 = vpack.c.bf16 %v4151, %v4150
    %v4169 = vpack.c.bf16 %v4153, %v4152
    %v4170 = vld [vmem:[%s3] sm:$0xf]
    %v4171 = vld [vmem:[%s3 + $0x4] sm:$0xf]
    %v4172 = vld [vmem:[%s3 + $0x8] sm:$0xf]
    %v4173 = vld [vmem:[%s3 + $0xc] sm:$0xf]
    %v4174 = vld [vmem:[%s3 + $0x10] sm:$0xf]
    %v4175 = vld [vmem:[%s3 + $0x14] sm:$0xf]
    %v4176 = vld [vmem:[%s3 + $0x18] sm:$0xf]
    %v4177 = vld [vmem:[%s3 + $0x1c] sm:$0xf]
    %v4178 = vld [vmem:[%s3 + $0x20] sm:$0xf]
    %v4179 = vld [vmem:[%s3 + $0x24] sm:$0xf]
    %v4180 = vld [vmem:[%s3 + $0x28] sm:$0xf]
    %v4181 = vld [vmem:[%s3 + $0x2c] sm:$0xf]
    %v4182 = vld [vmem:[%s3 + $0x30] sm:$0xf]
    %v4183 = vld [vmem:[%s3 + $0x34] sm:$0xf]
    %v4184 = vld [vmem:[%s3 + $0x38] sm:$0xf]
    %v4185 = vld [vmem:[%s3 + $0x3c] sm:$0xf]
    %v4202 = vunpack.c.l.b16 %v4170
    %v4203 = vunpack.c.l.b16 %v4171
    %v4204 = vunpack.c.l.b16 %v4172
    %v4205 = vunpack.c.l.b16 %v4173
    %v4206 = vunpack.c.l.b16 %v4174
    %v4207 = vunpack.c.l.b16 %v4175
    %v4208 = vunpack.c.l.b16 %v4176
    %v4209 = vunpack.c.l.b16 %v4177
    %v4210 = vunpack.c.l.b16 %v4178
    %v4211 = vunpack.c.l.b16 %v4179
    %v4212 = vunpack.c.l.b16 %v4180
    %v4213 = vunpack.c.l.b16 %v4181
    %v4214 = vunpack.c.l.b16 %v4182
    %v4215 = vunpack.c.l.b16 %v4183
    %v4216 = vunpack.c.l.b16 %v4184
    %v4217 = vunpack.c.l.b16 %v4185
    %v4218 = vpack.c.b16 %v4203, %v4202
    %v4219 = vpack.c.b16 %v4205, %v4204
    %v4220 = vpack.c.b16 %v4207, %v4206
    %v4221 = vpack.c.b16 %v4209, %v4208
    %v4222 = vpack.c.b16 %v4211, %v4210
    %v4223 = vpack.c.b16 %v4213, %v4212
    %v4224 = vpack.c.b16 %v4215, %v4214
    %v4225 = vpack.c.b16 %v4217, %v4216
    %4234 = vmatprep.subr.bf16.mxu0 0
    %4235 = vmatpush1.bf16.msra.mxu0 %v4218
    %4236 = vmatprep.subr.bf16.mxu0 0
    %4237 = vmatpush1.bf16.msra.mxu0 %v4219
    %4238 = vmatprep.subr.bf16.mxu0 0
    %4239 = vmatpush1.bf16.msra.mxu0 %v4220
    %4240 = vmatprep.subr.bf16.mxu0 0
    %4241 = vmatpush1.bf16.msra.mxu0 %v4221
    %4242 = vmatprep.subr.bf16.mxu0 0
    %4243 = vmatpush1.bf16.msra.mxu0 %v4222
    %4244 = vmatprep.subr.bf16.mxu0 0
    %4245 = vmatpush1.bf16.msra.mxu0 %v4223
    %4246 = vmatprep.subr.bf16.mxu0 0
    %4247 = vmatpush1.bf16.msra.mxu0 %v4224
    %4248 = vmatprep.subr.bf16.mxu0 0
    %4249 = vmatpush1.bf16.msra.mxu0 %v4225
    %4250 = vmatprep.subr.bf16.mxu0 0
    %4251 = vmatpush1.bf16.msra.mxu0 0
    %4252 = vmatprep.subr.bf16.mxu0 0
    %4253 = vmatpush1.bf16.msra.mxu0 0
    %4254 = vmatprep.subr.bf16.mxu0 0
    %4255 = vmatpush1.bf16.msra.mxu0 0
    %4256 = vmatprep.subr.bf16.mxu0 0
    %4257 = vmatpush1.bf16.msra.mxu0 0
    %4258 = vmatprep.subr.bf16.mxu0 0
    %4259 = vmatpush1.bf16.msra.mxu0 0
    %4260 = vmatprep.subr.bf16.mxu0 0
    %4261 = vmatpush1.bf16.msra.mxu0 0
    %4262 = vmatprep.subr.bf16.mxu0 0
    %4263 = vmatpush1.bf16.msra.mxu0 0
    %4264 = vmatprep.subr.bf16.mxu0 0
    %4265 = vmatpush1.bf16.msra.mxu0 0
    %4266 = vmatprep.mubr.bf16.mxu0 0
    %4267 = vmatmul.mubr.bf16.gmra.mrb[0].mxu0 %v4154
    %v4268 = vpop.f32.mrb[0].mxu0
    %v4269 = vadd.f32 0.0, %v4268
    %v4270 = vpop.f32.mrb[0].mxu0
    %v4271 = vpop.f32.mrb[0].mxu0
    %v4272 = vadd.f32 0.0, %v4271
    %v4273 = vpop.f32.mrb[0].mxu0
    %4274 = vmatprep.mubr.bf16.mxu0 0
    %4275 = vmatmul.mubr.bf16.gmra.mrb[0].mxu0 %v4155
    %v4276 = vpop.f32.mrb[0].mxu0
    %v4277 = vadd.f32 0.0, %v4276
    %v4278 = vpop.f32.mrb[0].mxu0
    %v4279 = vpop.f32.mrb[0].mxu0
    %v4280 = vadd.f32 0.0, %v4279
    %v4281 = vpop.f32.mrb[0].mxu0
    %4282 = vmatprep.mubr.bf16.mxu0 0
    %4283 = vmatmul.mubr.bf16.gmra.mrb[0].mxu0 %v4156
    %v4284 = vpop.f32.mrb[0].mxu0
    %v4285 = vadd.f32 0.0, %v4284
    %v4286 = vpop.f32.mrb[0].mxu0
    %v4287 = vpop.f32.mrb[0].mxu0
    %v4288 = vadd.f32 0.0, %v4287
    %v4289 = vpop.f32.mrb[0].mxu0
    %4290 = vmatprep.mubr.bf16.mxu0 0
    %4291 = vmatmul.mubr.bf16.gmra.mrb[0].mxu0 %v4157
    %v4292 = vpop.f32.mrb[0].mxu0
    %v4293 = vadd.f32 0.0, %v4292
    %v4294 = vpop.f32.mrb[0].mxu0
    %v4295 = vpop.f32.mrb[0].mxu0
    %v4296 = vadd.f32 0.0, %v4295
    %v4297 = vpop.f32.mrb[0].mxu0
    %4298 = vmatprep.mubr.bf16.mxu0 0
    %4299 = vmatmul.mubr.bf16.gmra.mrb[0].mxu0 %v4158
    %v4300 = vpop.f32.mrb[0].mxu0
    %v4301 = vadd.f32 0.0, %v4300
    %v4302 = vpop.f32.mrb[0].mxu0
    %v4303 = vpop.f32.mrb[0].mxu0
    %v4304 = vadd.f32 0.0, %v4303
    %v4305 = vpop.f32.mrb[0].mxu0
    %4306 = vmatprep.mubr.bf16.mxu0 0
    %4307 = vmatmul.mubr.bf16.gmra.mrb[0].mxu0 %v4159
    %v4308 = vpop.f32.mrb[0].mxu0
    %v4309 = vadd.f32 0.0, %v4308
    %v4310 = vpop.f32.mrb[0].mxu0
    %v4311 = vpop.f32.mrb[0].mxu0
    %v4312 = vadd.f32 0.0, %v4311
    %v4313 = vpop.f32.mrb[0].mxu0
    %4314 = vmatprep.mubr.bf16.mxu0 0
    %4315 = vmatmul.mubr.bf16.gmra.mrb[0].mxu0 %v4160
    %v4316 = vpop.f32.mrb[0].mxu0
    %v4317 = vadd.f32 0.0, %v4316
    %v4318 = vpop.f32.mrb[0].mxu0
    %v4319 = vpop.f32.mrb[0].mxu0
    %v4320 = vadd.f32 0.0, %v4319
    %v4321 = vpop.f32.mrb[0].mxu0
    %4322 = vmatprep.mubr.bf16.mxu0 0
    %4323 = vmatmul.mubr.bf16.gmra.mrb[0].mxu0 %v4161
    %v4324 = vpop.f32.mrb[0].mxu0
    %v4325 = vadd.f32 0.0, %v4324
    %v4326 = vpop.f32.mrb[0].mxu0
    %v4327 = vpop.f32.mrb[0].mxu0
    %v4328 = vadd.f32 0.0, %v4327
    %v4329 = vpop.f32.mrb[0].mxu0
    %4330 = vmatprep.mubr.bf16.mxu0 0
    %4331 = vmatmul.mubr.bf16.gmra.mrb[0].mxu0 %v4162
    %v4332 = vpop.f32.mrb[0].mxu0
    %v4333 = vadd.f32 0.0, %v4332
    %v4334 = vpop.f32.mrb[0].mxu0
    %v4335 = vpop.f32.mrb[0].mxu0
    %v4336 = vadd.f32 0.0, %v4335
    %v4337 = vpop.f32.mrb[0].mxu0
    %4338 = vmatprep.mubr.bf16.mxu0 0
    %4339 = vmatmul.mubr.bf16.gmra.mrb[0].mxu0 %v4163
    %v4340 = vpop.f32.mrb[0].mxu0
    %v4341 = vadd.f32 0.0, %v4340
    %v4342 = vpop.f32.mrb[0].mxu0
    %v4343 = vpop.f32.mrb[0].mxu0
    %v4344 = vadd.f32 0.0, %v4343
    %v4345 = vpop.f32.mrb[0].mxu0
    %4346 = vmatprep.mubr.bf16.mxu0 0
    %4347 = vmatmul.mubr.bf16.gmra.mrb[0].mxu0 %v4164
    %v4348 = vpop.f32.mrb[0].mxu0
    %v4349 = vadd.f32 0.0, %v4348
    %v4350 = vpop.f32.mrb[0].mxu0
    %v4351 = vpop.f32.mrb[0].mxu0
    %v4352 = vadd.f32 0.0, %v4351
    %v4353 = vpop.f32.mrb[0].mxu0
    %4354 = vmatprep.mubr.bf16.mxu0 0
    %4355 = vmatmul.mubr.bf16.gmra.mrb[0].mxu0 %v4165
    %v4356 = vpop.f32.mrb[0].mxu0
    %v4357 = vadd.f32 0.0, %v4356
    %v4358 = vpop.f32.mrb[0].mxu0
    %v4359 = vpop.f32.mrb[0].mxu0
    %v4360 = vadd.f32 0.0, %v4359
    %v4361 = vpop.f32.mrb[0].mxu0
    %4362 = vmatprep.mubr.bf16.mxu0 0
    %4363 = vmatmul.mubr.bf16.gmra.mrb[0].mxu0 %v4166
    %v4364 = vpop.f32.mrb[0].mxu0
    %v4365 = vadd.f32 0.0, %v4364
    %v4366 = vpop.f32.mrb[0].mxu0
    %v4367 = vpop.f32.mrb[0].mxu0
    %v4368 = vadd.f32 0.0, %v4367
    %v4369 = vpop.f32.mrb[0].mxu0
    %4370 = vmatprep.mubr.bf16.mxu0 0
    %4371 = vmatmul.mubr.bf16.gmra.mrb[0].mxu0 %v4167
    %v4372 = vpop.f32.mrb[0].mxu0
    %v4373 = vadd.f32 0.0, %v4372
    %v4374 = vpop.f32.mrb[0].mxu0
    %v4375 = vpop.f32.mrb[0].mxu0
    %v4376 = vadd.f32 0.0, %v4375
    %v4377 = vpop.f32.mrb[0].mxu0
    %4378 = vmatprep.mubr.bf16.mxu0 0
    %4379 = vmatmul.mubr.bf16.gmra.mrb[0].mxu0 %v4168
    %v4380 = vpop.f32.mrb[0].mxu0
    %v4381 = vadd.f32 0.0, %v4380
    %v4382 = vpop.f32.mrb[0].mxu0
    %v4383 = vpop.f32.mrb[0].mxu0
    %v4384 = vadd.f32 0.0, %v4383
    %v4385 = vpop.f32.mrb[0].mxu0
    %4386 = vmatprep.mubr.bf16.mxu0 0
    %4387 = vmatmul.mubr.bf16.gmra.mrb[0].mxu0 %v4169
    %v4388 = vpop.f32.mrb[0].mxu0
    %v4389 = vadd.f32 0.0, %v4388
    %v4390 = vpop.f32.mrb[0].mxu0
    %v4391 = vpop.f32.mrb[0].mxu0
    %v4392 = vadd.f32 0.0, %v4391
    %v4393 = vpop.f32.mrb[0].mxu0
    %4394 = vdwg.mxu0
    %v4395 = vmul.f32 %v4269, %v3804
    %v4396 = vmul.f32 %v4272, %v3807
    %v4397 = vmul.f32 %v4277, %v3812
    %v4398 = vmul.f32 %v4280, %v3815
    %v4399 = vmul.f32 %v4285, %v3820
    %v4400 = vmul.f32 %v4288, %v3823
    %v4401 = vmul.f32 %v4293, %v3828
    %v4402 = vmul.f32 %v4296, %v3831
    %v4403 = vmul.f32 %v4301, %v3836
    %v4404 = vmul.f32 %v4304, %v3839
    %v4405 = vmul.f32 %v4309, %v3844
    %v4406 = vmul.f32 %v4312, %v3847
    %v4407 = vmul.f32 %v4317, %v3852
    %v4408 = vmul.f32 %v4320, %v3855
    %v4409 = vmul.f32 %v4325, %v3860
    %v4410 = vmul.f32 %v4328, %v3863
    %v4411 = vmul.f32 %v4333, %v3868
    %v4412 = vmul.f32 %v4336, %v3871
    %v4413 = vmul.f32 %v4341, %v3876
    %v4414 = vmul.f32 %v4344, %v3879
    %v4415 = vmul.f32 %v4349, %v3884
    %v4416 = vmul.f32 %v4352, %v3887
    %v4417 = vmul.f32 %v4357, %v3892
    %v4418 = vmul.f32 %v4360, %v3895
    %v4419 = vmul.f32 %v4365, %v3900
    %v4420 = vmul.f32 %v4368, %v3903
    %v4421 = vmul.f32 %v4373, %v3908
    %v4422 = vmul.f32 %v4376, %v3911
    %v4423 = vmul.f32 %v4381, %v3916
    %v4424 = vmul.f32 %v4384, %v3919
    %v4425 = vmul.f32 %v4389, %v3924
    %v4426 = vmul.f32 %v4392, %v3927
    %vm4427 = vcmask 261120
    %v4428 = vsel %vm4427, %v4395, 0.0
    %4429 = vadd.xlane.f32.xlu0 %v4428
    %v4430 = vpop.xlane.xlu0 %4429
    %v4431 = vsel %vm4427, %v4396, 0.0
    %4432 = vadd.xlane.f32.xlu0 %v4431
    %v4433 = vpop.xlane.xlu0 %4432
    %v4434 = vsel %vm4427, %v4397, 0.0
    %4435 = vadd.xlane.f32.xlu0 %v4434
    %v4436 = vpop.xlane.xlu0 %4435
    %v4437 = vsel %vm4427, %v4398, 0.0
    %4438 = vadd.xlane.f32.xlu0 %v4437
    %v4439 = vpop.xlane.xlu0 %4438
    %v4440 = vsel %vm4427, %v4399, 0.0
    %4441 = vadd.xlane.f32.xlu0 %v4440
    %v4442 = vpop.xlane.xlu0 %4441
    %v4443 = vsel %vm4427, %v4400, 0.0
    %4444 = vadd.xlane.f32.xlu0 %v4443
    %v4445 = vpop.xlane.xlu0 %4444
    %v4446 = vsel %vm4427, %v4401, 0.0
    %4447 = vadd.xlane.f32.xlu0 %v4446
    %v4448 = vpop.xlane.xlu0 %4447
    %v4449 = vsel %vm4427, %v4402, 0.0
    %4450 = vadd.xlane.f32.xlu0 %v4449
    %v4451 = vpop.xlane.xlu0 %4450
    %v4452 = vsel %vm4427, %v4403, 0.0
    %4453 = vadd.xlane.f32.xlu0 %v4452
    %v4454 = vpop.xlane.xlu0 %4453
    %v4455 = vsel %vm4427, %v4404, 0.0
    %4456 = vadd.xlane.f32.xlu0 %v4455
    %v4457 = vpop.xlane.xlu0 %4456
    %v4458 = vsel %vm4427, %v4405, 0.0
    %4459 = vadd.xlane.f32.xlu0 %v4458
    %v4460 = vpop.xlane.xlu0 %4459
    %v4461 = vsel %vm4427, %v4406, 0.0
    %4462 = vadd.xlane.f32.xlu0 %v4461
    %v4463 = vpop.xlane.xlu0 %4462
    %v4464 = vsel %vm4427, %v4407, 0.0
    %4465 = vadd.xlane.f32.xlu0 %v4464
    %v4466 = vpop.xlane.xlu0 %4465
    %v4467 = vsel %vm4427, %v4408, 0.0
    %4468 = vadd.xlane.f32.xlu0 %v4467
    %v4469 = vpop.xlane.xlu0 %4468
    %v4470 = vsel %vm4427, %v4409, 0.0
    %4471 = vadd.xlane.f32.xlu0 %v4470
    %v4472 = vpop.xlane.xlu0 %4471
    %v4473 = vsel %vm4427, %v4410, 0.0
    %4474 = vadd.xlane.f32.xlu0 %v4473
    %v4475 = vpop.xlane.xlu0 %4474
    %v4476 = vsel %vm4427, %v4411, 0.0
    %4477 = vadd.xlane.f32.xlu0 %v4476
    %v4478 = vpop.xlane.xlu0 %4477
    %v4479 = vsel %vm4427, %v4412, 0.0
    %4480 = vadd.xlane.f32.xlu0 %v4479
    %v4481 = vpop.xlane.xlu0 %4480
    %v4482 = vsel %vm4427, %v4413, 0.0
    %4483 = vadd.xlane.f32.xlu0 %v4482
    %v4484 = vpop.xlane.xlu0 %4483
    %v4485 = vsel %vm4427, %v4414, 0.0
    %4486 = vadd.xlane.f32.xlu0 %v4485
    %v4487 = vpop.xlane.xlu0 %4486
    %v4488 = vsel %vm4427, %v4415, 0.0
    %4489 = vadd.xlane.f32.xlu0 %v4488
    %v4490 = vpop.xlane.xlu0 %4489
    %v4491 = vsel %vm4427, %v4416, 0.0
    %4492 = vadd.xlane.f32.xlu0 %v4491
    %v4493 = vpop.xlane.xlu0 %4492
    %v4494 = vsel %vm4427, %v4417, 0.0
    %4495 = vadd.xlane.f32.xlu0 %v4494
    %v4496 = vpop.xlane.xlu0 %4495
    %v4497 = vsel %vm4427, %v4418, 0.0
    %4498 = vadd.xlane.f32.xlu0 %v4497
    %v4499 = vpop.xlane.xlu0 %4498
    %v4500 = vsel %vm4427, %v4419, 0.0
    %4501 = vadd.xlane.f32.xlu0 %v4500
    %v4502 = vpop.xlane.xlu0 %4501
    %v4503 = vsel %vm4427, %v4420, 0.0
    %4504 = vadd.xlane.f32.xlu0 %v4503
    %v4505 = vpop.xlane.xlu0 %4504
    %v4506 = vsel %vm4427, %v4421, 0.0
    %4507 = vadd.xlane.f32.xlu0 %v4506
    %v4508 = vpop.xlane.xlu0 %4507
    %v4509 = vsel %vm4427, %v4422, 0.0
    %4510 = vadd.xlane.f32.xlu0 %v4509
    %v4511 = vpop.xlane.xlu0 %4510
    %v4512 = vsel %vm4427, %v4423, 0.0
    %4513 = vadd.xlane.f32.xlu0 %v4512
    %v4514 = vpop.xlane.xlu0 %4513
    %v4515 = vsel %vm4427, %v4424, 0.0
    %4516 = vadd.xlane.f32.xlu0 %v4515
    %v4517 = vpop.xlane.xlu0 %4516
    %v4518 = vsel %vm4427, %v4425, 0.0
    %4519 = vadd.xlane.f32.xlu0 %v4518
    %v4520 = vpop.xlane.xlu0 %4519
    %v4521 = vsel %vm4427, %v4426, 0.0
    %4522 = vadd.xlane.f32.xlu0 %v4521
    %v4523 = vpop.xlane.xlu0 %4522
    %v4524 = vmul.f32 %v4430, 0.33333334
    %v4525 = vmul.f32 %v4433, 0.33333334
    %v4526 = vmul.f32 %v4436, 0.33333334
    %v4527 = vmul.f32 %v4439, 0.33333334
    %v4528 = vmul.f32 %v4442, 0.33333334
    %v4529 = vmul.f32 %v4445, 0.33333334
    %v4530 = vmul.f32 %v4448, 0.33333334
    %v4531 = vmul.f32 %v4451, 0.33333334
    %v4532 = vmul.f32 %v4454, 0.33333334
    %v4533 = vmul.f32 %v4457, 0.33333334
    %v4534 = vmul.f32 %v4460, 0.33333334
    %v4535 = vmul.f32 %v4463, 0.33333334
    %v4536 = vmul.f32 %v4466, 0.33333334
    %v4537 = vmul.f32 %v4469, 0.33333334
    %v4538 = vmul.f32 %v4472, 0.33333334
    %v4539 = vmul.f32 %v4475, 0.33333334
    %v4540 = vmul.f32 %v4478, 0.33333334
    %v4541 = vmul.f32 %v4481, 0.33333334
    %v4542 = vmul.f32 %v4484, 0.33333334
    %v4543 = vmul.f32 %v4487, 0.33333334
    %v4544 = vmul.f32 %v4490, 0.33333334
    %v4545 = vmul.f32 %v4493, 0.33333334
    %v4546 = vmul.f32 %v4496, 0.33333334
    %v4547 = vmul.f32 %v4499, 0.33333334
    %v4548 = vmul.f32 %v4502, 0.33333334
    %v4549 = vmul.f32 %v4505, 0.33333334
    %v4550 = vmul.f32 %v4508, 0.33333334
    %v4551 = vmul.f32 %v4511, 0.33333334
    %v4552 = vmul.f32 %v4514, 0.33333334
    %v4553 = vmul.f32 %v4517, 0.33333334
    %v4554 = vmul.f32 %v4520, 0.33333334
    %v4555 = vmul.f32 %v4523, 0.33333334
    %v4556 = vlaneseq
    %v4557 = vshrl.u32 %v4556, 7
    %v4558 = vadd.s32 %v4557, 8
    %v4559 = vadd.s32 %v4557, 16
    %v4560 = vadd.s32 %v4557, 24
    %v4561 = vadd.s32 %v4557, 32
    %v4562 = vadd.s32 %v4557, 40
    %v4563 = vadd.s32 %v4557, 48
    %v4564 = vadd.s32 %v4557, 56
    %v4565 = vadd.s32 %v4557, 64
    %v4566 = vadd.s32 %v4557, 72
    %v4567 = vadd.s32 %v4557, 80
    %v4568 = vadd.s32 %v4557, 88
    %v4569 = vadd.s32 %v4557, 96
    %v4570 = vadd.s32 %v4557, 104
    %v4571 = vadd.s32 %v4557, 112
    %v4572 = vadd.s32 %v4557, 120
    %v4573 = vadd.s32 %v4557, 128
    %v4574 = vadd.s32 %v4557, 136
    %v4575 = vadd.s32 %v4557, 144
    %v4576 = vadd.s32 %v4557, 152
    %v4577 = vadd.s32 %v4557, 160
    %v4578 = vadd.s32 %v4557, 168
    %v4579 = vadd.s32 %v4557, 176
    %v4580 = vadd.s32 %v4557, 184
    %v4581 = vadd.s32 %v4557, 192
    %v4582 = vadd.s32 %v4557, 200
    %v4583 = vadd.s32 %v4557, 208
    %v4584 = vadd.s32 %v4557, 216
    %v4585 = vadd.s32 %v4557, 224
    %v4586 = vadd.s32 %v4557, 232
    %v4587 = vadd.s32 %v4557, 240
    %v4588 = vadd.s32 %v4557, 248
    %vm4589 = vcmp.lt.s32.totalorder %v4557, 0
    %v4590 = vsub.s32 0, %v4557
    %v4591 = vsel %vm4589, %v4590, %v4557
    %v4592 = vshrl.u32 %v4591, 5
    %v4593 = vand.u32 %v4591, 31
    %v4594 = vsub.s32 0, %v4593
    %v4595 = vsel %vm4589, %v4594, %v4593
    %vm4596 = vcmp.lt.s32.totalorder %v4558, 0
    %v4597 = vsub.s32 0, %v4558
    %v4598 = vsel %vm4596, %v4597, %v4558
    %v4599 = vshrl.u32 %v4598, 5
    %v4600 = vand.u32 %v4598, 31
    %v4601 = vsub.s32 0, %v4600
    %v4602 = vsel %vm4596, %v4601, %v4600
    %vm4603 = vcmp.lt.s32.totalorder %v4559, 0
    %v4604 = vsub.s32 0, %v4559
    %v4605 = vsel %vm4603, %v4604, %v4559
    %v4606 = vshrl.u32 %v4605, 5
    %v4607 = vand.u32 %v4605, 31
    %v4608 = vsub.s32 0, %v4607
    %v4609 = vsel %vm4603, %v4608, %v4607
    %vm4610 = vcmp.lt.s32.totalorder %v4560, 0
    %v4611 = vsub.s32 0, %v4560
    %v4612 = vsel %vm4610, %v4611, %v4560
    %v4613 = vshrl.u32 %v4612, 5
    %v4614 = vand.u32 %v4612, 31
    %v4615 = vsub.s32 0, %v4614
    %v4616 = vsel %vm4610, %v4615, %v4614
    %vm4617 = vcmp.lt.s32.totalorder %v4561, 0
    %v4618 = vsub.s32 0, %v4561
    %v4619 = vsel %vm4617, %v4618, %v4561
    %v4620 = vshrl.u32 %v4619, 5
    %v4621 = vand.u32 %v4619, 31
    %v4622 = vsub.s32 0, %v4621
    %v4623 = vsel %vm4617, %v4622, %v4621
    %vm4624 = vcmp.lt.s32.totalorder %v4562, 0
    %v4625 = vsub.s32 0, %v4562
    %v4626 = vsel %vm4624, %v4625, %v4562
    %v4627 = vshrl.u32 %v4626, 5
    %v4628 = vand.u32 %v4626, 31
    %v4629 = vsub.s32 0, %v4628
    %v4630 = vsel %vm4624, %v4629, %v4628
    %vm4631 = vcmp.lt.s32.totalorder %v4563, 0
    %v4632 = vsub.s32 0, %v4563
    %v4633 = vsel %vm4631, %v4632, %v4563
    %v4634 = vshrl.u32 %v4633, 5
    %v4635 = vand.u32 %v4633, 31
    %v4636 = vsub.s32 0, %v4635
    %v4637 = vsel %vm4631, %v4636, %v4635
    %vm4638 = vcmp.lt.s32.totalorder %v4564, 0
    %v4639 = vsub.s32 0, %v4564
    %v4640 = vsel %vm4638, %v4639, %v4564
    %v4641 = vshrl.u32 %v4640, 5
    %v4642 = vand.u32 %v4640, 31
    %v4643 = vsub.s32 0, %v4642
    %v4644 = vsel %vm4638, %v4643, %v4642
    %vm4645 = vcmp.lt.s32.totalorder %v4565, 0
    %v4646 = vsub.s32 0, %v4565
    %v4647 = vsel %vm4645, %v4646, %v4565
    %v4648 = vshrl.u32 %v4647, 5
    %v4649 = vand.u32 %v4647, 31
    %v4650 = vsub.s32 0, %v4649
    %v4651 = vsel %vm4645, %v4650, %v4649
    %vm4652 = vcmp.lt.s32.totalorder %v4566, 0
    %v4653 = vsub.s32 0, %v4566
    %v4654 = vsel %vm4652, %v4653, %v4566
    %v4655 = vshrl.u32 %v4654, 5
    %v4656 = vand.u32 %v4654, 31
    %v4657 = vsub.s32 0, %v4656
    %v4658 = vsel %vm4652, %v4657, %v4656
    %vm4659 = vcmp.lt.s32.totalorder %v4567, 0
    %v4660 = vsub.s32 0, %v4567
    %v4661 = vsel %vm4659, %v4660, %v4567
    %v4662 = vshrl.u32 %v4661, 5
    %v4663 = vand.u32 %v4661, 31
    %v4664 = vsub.s32 0, %v4663
    %v4665 = vsel %vm4659, %v4664, %v4663
    %vm4666 = vcmp.lt.s32.totalorder %v4568, 0
    %v4667 = vsub.s32 0, %v4568
    %v4668 = vsel %vm4666, %v4667, %v4568
    %v4669 = vshrl.u32 %v4668, 5
    %v4670 = vand.u32 %v4668, 31
    %v4671 = vsub.s32 0, %v4670
    %v4672 = vsel %vm4666, %v4671, %v4670
    %vm4673 = vcmp.lt.s32.totalorder %v4569, 0
    %v4674 = vsub.s32 0, %v4569
    %v4675 = vsel %vm4673, %v4674, %v4569
    %v4676 = vshrl.u32 %v4675, 5
    %v4677 = vand.u32 %v4675, 31
    %v4678 = vsub.s32 0, %v4677
    %v4679 = vsel %vm4673, %v4678, %v4677
    %vm4680 = vcmp.lt.s32.totalorder %v4570, 0
    %v4681 = vsub.s32 0, %v4570
    %v4682 = vsel %vm4680, %v4681, %v4570
    %v4683 = vshrl.u32 %v4682, 5
    %v4684 = vand.u32 %v4682, 31
    %v4685 = vsub.s32 0, %v4684
    %v4686 = vsel %vm4680, %v4685, %v4684
    %vm4687 = vcmp.lt.s32.totalorder %v4571, 0
    %v4688 = vsub.s32 0, %v4571
    %v4689 = vsel %vm4687, %v4688, %v4571
    %v4690 = vshrl.u32 %v4689, 5
    %v4691 = vand.u32 %v4689, 31
    %v4692 = vsub.s32 0, %v4691
    %v4693 = vsel %vm4687, %v4692, %v4691
    %vm4694 = vcmp.lt.s32.totalorder %v4572, 0
    %v4695 = vsub.s32 0, %v4572
    %v4696 = vsel %vm4694, %v4695, %v4572
    %v4697 = vshrl.u32 %v4696, 5
    %v4698 = vand.u32 %v4696, 31
    %v4699 = vsub.s32 0, %v4698
    %v4700 = vsel %vm4694, %v4699, %v4698
    %vm4701 = vcmp.lt.s32.totalorder %v4573, 0
    %v4702 = vsub.s32 0, %v4573
    %v4703 = vsel %vm4701, %v4702, %v4573
    %v4704 = vshrl.u32 %v4703, 5
    %v4705 = vand.u32 %v4703, 31
    %v4706 = vsub.s32 0, %v4705
    %v4707 = vsel %vm4701, %v4706, %v4705
    %vm4708 = vcmp.lt.s32.totalorder %v4574, 0
    %v4709 = vsub.s32 0, %v4574
    %v4710 = vsel %vm4708, %v4709, %v4574
    %v4711 = vshrl.u32 %v4710, 5
    %v4712 = vand.u32 %v4710, 31
    %v4713 = vsub.s32 0, %v4712
    %v4714 = vsel %vm4708, %v4713, %v4712
    %vm4715 = vcmp.lt.s32.totalorder %v4575, 0
    %v4716 = vsub.s32 0, %v4575
    %v4717 = vsel %vm4715, %v4716, %v4575
    %v4718 = vshrl.u32 %v4717, 5
    %v4719 = vand.u32 %v4717, 31
    %v4720 = vsub.s32 0, %v4719
    %v4721 = vsel %vm4715, %v4720, %v4719
    %vm4722 = vcmp.lt.s32.totalorder %v4576, 0
    %v4723 = vsub.s32 0, %v4576
    %v4724 = vsel %vm4722, %v4723, %v4576
    %v4725 = vshrl.u32 %v4724, 5
    %v4726 = vand.u32 %v4724, 31
    %v4727 = vsub.s32 0, %v4726
    %v4728 = vsel %vm4722, %v4727, %v4726
    %vm4729 = vcmp.lt.s32.totalorder %v4577, 0
    %v4730 = vsub.s32 0, %v4577
    %v4731 = vsel %vm4729, %v4730, %v4577
    %v4732 = vshrl.u32 %v4731, 5
    %v4733 = vand.u32 %v4731, 31
    %v4734 = vsub.s32 0, %v4733
    %v4735 = vsel %vm4729, %v4734, %v4733
    %vm4736 = vcmp.lt.s32.totalorder %v4578, 0
    %v4737 = vsub.s32 0, %v4578
    %v4738 = vsel %vm4736, %v4737, %v4578
    %v4739 = vshrl.u32 %v4738, 5
    %v4740 = vand.u32 %v4738, 31
    %v4741 = vsub.s32 0, %v4740
    %v4742 = vsel %vm4736, %v4741, %v4740
    %vm4743 = vcmp.lt.s32.totalorder %v4579, 0
    %v4744 = vsub.s32 0, %v4579
    %v4745 = vsel %vm4743, %v4744, %v4579
    %v4746 = vshrl.u32 %v4745, 5
    %v4747 = vand.u32 %v4745, 31
    %v4748 = vsub.s32 0, %v4747
    %v4749 = vsel %vm4743, %v4748, %v4747
    %vm4750 = vcmp.lt.s32.totalorder %v4580, 0
    %v4751 = vsub.s32 0, %v4580
    %v4752 = vsel %vm4750, %v4751, %v4580
    %v4753 = vshrl.u32 %v4752, 5
    %v4754 = vand.u32 %v4752, 31
    %v4755 = vsub.s32 0, %v4754
    %v4756 = vsel %vm4750, %v4755, %v4754
    %vm4757 = vcmp.lt.s32.totalorder %v4581, 0
    %v4758 = vsub.s32 0, %v4581
    %v4759 = vsel %vm4757, %v4758, %v4581
    %v4760 = vshrl.u32 %v4759, 5
    %v4761 = vand.u32 %v4759, 31
    %v4762 = vsub.s32 0, %v4761
    %v4763 = vsel %vm4757, %v4762, %v4761
    %vm4764 = vcmp.lt.s32.totalorder %v4582, 0
    %v4765 = vsub.s32 0, %v4582
    %v4766 = vsel %vm4764, %v4765, %v4582
    %v4767 = vshrl.u32 %v4766, 5
    %v4768 = vand.u32 %v4766, 31
    %v4769 = vsub.s32 0, %v4768
    %v4770 = vsel %vm4764, %v4769, %v4768
    %vm4771 = vcmp.lt.s32.totalorder %v4583, 0
    %v4772 = vsub.s32 0, %v4583
    %v4773 = vsel %vm4771, %v4772, %v4583
    %v4774 = vshrl.u32 %v4773, 5
    %v4775 = vand.u32 %v4773, 31
    %v4776 = vsub.s32 0, %v4775
    %v4777 = vsel %vm4771, %v4776, %v4775
    %vm4778 = vcmp.lt.s32.totalorder %v4584, 0
    %v4779 = vsub.s32 0, %v4584
    %v4780 = vsel %vm4778, %v4779, %v4584
    %v4781 = vshrl.u32 %v4780, 5
    %v4782 = vand.u32 %v4780, 31
    %v4783 = vsub.s32 0, %v4782
    %v4784 = vsel %vm4778, %v4783, %v4782
    %vm4785 = vcmp.lt.s32.totalorder %v4585, 0
    %v4786 = vsub.s32 0, %v4585
    %v4787 = vsel %vm4785, %v4786, %v4585
    %v4788 = vshrl.u32 %v4787, 5
    %v4789 = vand.u32 %v4787, 31
    %v4790 = vsub.s32 0, %v4789
    %v4791 = vsel %vm4785, %v4790, %v4789
    %vm4792 = vcmp.lt.s32.totalorder %v4586, 0
    %v4793 = vsub.s32 0, %v4586
    %v4794 = vsel %vm4792, %v4793, %v4586
    %v4795 = vshrl.u32 %v4794, 5
    %v4796 = vand.u32 %v4794, 31
    %v4797 = vsub.s32 0, %v4796
    %v4798 = vsel %vm4792, %v4797, %v4796
    %vm4799 = vcmp.lt.s32.totalorder %v4587, 0
    %v4800 = vsub.s32 0, %v4587
    %v4801 = vsel %vm4799, %v4800, %v4587
    %v4802 = vshrl.u32 %v4801, 5
    %v4803 = vand.u32 %v4801, 31
    %v4804 = vsub.s32 0, %v4803
    %v4805 = vsel %vm4799, %v4804, %v4803
    %vm4806 = vcmp.lt.s32.totalorder %v4588, 0
    %v4807 = vsub.s32 0, %v4588
    %v4808 = vsel %vm4806, %v4807, %v4588
    %v4809 = vshrl.u32 %v4808, 5
    %v4810 = vand.u32 %v4808, 31
    %v4811 = vsub.s32 0, %v4810
    %v4812 = vsel %vm4806, %v4811, %v4810
    %vm4813 = vcmp.ne.s32.totalorder %v4595, 0
    %vm4814 = vcmp.ne.s32.totalorder %v4602, 0
    %vm4815 = vcmp.ne.s32.totalorder %v4609, 0
    %vm4816 = vcmp.ne.s32.totalorder %v4616, 0
    %vm4817 = vcmp.ne.s32.totalorder %v4623, 0
    %vm4818 = vcmp.ne.s32.totalorder %v4630, 0
    %vm4819 = vcmp.ne.s32.totalorder %v4637, 0
    %vm4820 = vcmp.ne.s32.totalorder %v4644, 0
    %vm4821 = vcmp.ne.s32.totalorder %v4651, 0
    %vm4822 = vcmp.ne.s32.totalorder %v4658, 0
    %vm4823 = vcmp.ne.s32.totalorder %v4665, 0
    %vm4824 = vcmp.ne.s32.totalorder %v4672, 0
    %vm4825 = vcmp.ne.s32.totalorder %v4679, 0
    %vm4826 = vcmp.ne.s32.totalorder %v4686, 0
    %vm4827 = vcmp.ne.s32.totalorder %v4693, 0
    %vm4828 = vcmp.ne.s32.totalorder %v4700, 0
    %vm4829 = vcmp.ne.s32.totalorder %v4707, 0
    %vm4830 = vcmp.ne.s32.totalorder %v4714, 0
    %vm4831 = vcmp.ne.s32.totalorder %v4721, 0
    %vm4832 = vcmp.ne.s32.totalorder %v4728, 0
    %vm4833 = vcmp.ne.s32.totalorder %v4735, 0
    %vm4834 = vcmp.ne.s32.totalorder %v4742, 0
    %vm4835 = vcmp.ne.s32.totalorder %v4749, 0
    %vm4836 = vcmp.ne.s32.totalorder %v4756, 0
    %vm4837 = vcmp.ne.s32.totalorder %v4763, 0
    %vm4838 = vcmp.ne.s32.totalorder %v4770, 0
    %vm4839 = vcmp.ne.s32.totalorder %v4777, 0
    %vm4840 = vcmp.ne.s32.totalorder %v4784, 0
    %vm4841 = vcmp.ne.s32.totalorder %v4791, 0
    %vm4842 = vcmp.ne.s32.totalorder %v4798, 0
    %vm4843 = vcmp.ne.s32.totalorder %v4805, 0
    %vm4844 = vcmp.ne.s32.totalorder %v4812, 0
    %vm4845 = vcmp.lt.s32.totalorder %v4595, 0
    %vm4846 = vcmp.lt.s32.totalorder %v4602, 0
    %vm4847 = vcmp.lt.s32.totalorder %v4609, 0
    %vm4848 = vcmp.lt.s32.totalorder %v4616, 0
    %vm4849 = vcmp.lt.s32.totalorder %v4623, 0
    %vm4850 = vcmp.lt.s32.totalorder %v4630, 0
    %vm4851 = vcmp.lt.s32.totalorder %v4637, 0
    %vm4852 = vcmp.lt.s32.totalorder %v4644, 0
    %vm4853 = vcmp.lt.s32.totalorder %v4651, 0
    %vm4854 = vcmp.lt.s32.totalorder %v4658, 0
    %vm4855 = vcmp.lt.s32.totalorder %v4665, 0
    %vm4856 = vcmp.lt.s32.totalorder %v4672, 0
    %vm4857 = vcmp.lt.s32.totalorder %v4679, 0
    %vm4858 = vcmp.lt.s32.totalorder %v4686, 0
    %vm4859 = vcmp.lt.s32.totalorder %v4693, 0
    %vm4860 = vcmp.lt.s32.totalorder %v4700, 0
    %vm4861 = vcmp.lt.s32.totalorder %v4707, 0
    %vm4862 = vcmp.lt.s32.totalorder %v4714, 0
    %vm4863 = vcmp.lt.s32.totalorder %v4721, 0
    %vm4864 = vcmp.lt.s32.totalorder %v4728, 0
    %vm4865 = vcmp.lt.s32.totalorder %v4735, 0
    %vm4866 = vcmp.lt.s32.totalorder %v4742, 0
    %vm4867 = vcmp.lt.s32.totalorder %v4749, 0
    %vm4868 = vcmp.lt.s32.totalorder %v4756, 0
    %vm4869 = vcmp.lt.s32.totalorder %v4763, 0
    %vm4870 = vcmp.lt.s32.totalorder %v4770, 0
    %vm4871 = vcmp.lt.s32.totalorder %v4777, 0
    %vm4872 = vcmp.lt.s32.totalorder %v4784, 0
    %vm4873 = vcmp.lt.s32.totalorder %v4791, 0
    %vm4874 = vcmp.lt.s32.totalorder %v4798, 0
    %vm4875 = vcmp.lt.s32.totalorder %v4805, 0
    %vm4876 = vcmp.lt.s32.totalorder %v4812, 0
    %vm4877 = vmand %vm4845, %vm4813
    %vm4878 = vmand %vm4846, %vm4814
    %vm4879 = vmand %vm4847, %vm4815
    %vm4880 = vmand %vm4848, %vm4816
    %vm4881 = vmand %vm4849, %vm4817
    %vm4882 = vmand %vm4850, %vm4818
    %vm4883 = vmand %vm4851, %vm4819
    %vm4884 = vmand %vm4852, %vm4820
    %vm4885 = vmand %vm4853, %vm4821
    %vm4886 = vmand %vm4854, %vm4822
    %vm4887 = vmand %vm4855, %vm4823
    %vm4888 = vmand %vm4856, %vm4824
    %vm4889 = vmand %vm4857, %vm4825
    %vm4890 = vmand %vm4858, %vm4826
    %vm4891 = vmand %vm4859, %vm4827
    %vm4892 = vmand %vm4860, %vm4828
    %vm4893 = vmand %vm4861, %vm4829
    %vm4894 = vmand %vm4862, %vm4830
    %vm4895 = vmand %vm4863, %vm4831
    %vm4896 = vmand %vm4864, %vm4832
    %vm4897 = vmand %vm4865, %vm4833
    %vm4898 = vmand %vm4866, %vm4834
    %vm4899 = vmand %vm4867, %vm4835
    %vm4900 = vmand %vm4868, %vm4836
    %vm4901 = vmand %vm4869, %vm4837
    %vm4902 = vmand %vm4870, %vm4838
    %vm4903 = vmand %vm4871, %vm4839
    %vm4904 = vmand %vm4872, %vm4840
    %vm4905 = vmand %vm4873, %vm4841
    %vm4906 = vmand %vm4874, %vm4842
    %vm4907 = vmand %vm4875, %vm4843
    %vm4908 = vmand %vm4876, %vm4844
    %v4909 = vadd.s32 %v4595, 32
    %v4910 = vadd.s32 %v4602, 32
    %v4911 = vadd.s32 %v4609, 32
    %v4912 = vadd.s32 %v4616, 32
    %v4913 = vadd.s32 %v4623, 32
    %v4914 = vadd.s32 %v4630, 32
    %v4915 = vadd.s32 %v4637, 32
    %v4916 = vadd.s32 %v4644, 32
    %v4917 = vadd.s32 %v4651, 32
    %v4918 = vadd.s32 %v4658, 32
    %v4919 = vadd.s32 %v4665, 32
    %v4920 = vadd.s32 %v4672, 32
    %v4921 = vadd.s32 %v4679, 32
    %v4922 = vadd.s32 %v4686, 32
    %v4923 = vadd.s32 %v4693, 32
    %v4924 = vadd.s32 %v4700, 32
    %v4925 = vadd.s32 %v4707, 32
    %v4926 = vadd.s32 %v4714, 32
    %v4927 = vadd.s32 %v4721, 32
    %v4928 = vadd.s32 %v4728, 32
    %v4929 = vadd.s32 %v4735, 32
    %v4930 = vadd.s32 %v4742, 32
    %v4931 = vadd.s32 %v4749, 32
    %v4932 = vadd.s32 %v4756, 32
    %v4933 = vadd.s32 %v4763, 32
    %v4934 = vadd.s32 %v4770, 32
    %v4935 = vadd.s32 %v4777, 32
    %v4936 = vadd.s32 %v4784, 32
    %v4937 = vadd.s32 %v4791, 32
    %v4938 = vadd.s32 %v4798, 32
    %v4939 = vadd.s32 %v4805, 32
    %v4940 = vadd.s32 %v4812, 32
    %v4941 = vsel %vm4877, %v4909, %v4595
    %v4942 = vsel %vm4878, %v4910, %v4602
    %v4943 = vsel %vm4879, %v4911, %v4609
    %v4944 = vsel %vm4880, %v4912, %v4616
    %v4945 = vsel %vm4881, %v4913, %v4623
    %v4946 = vsel %vm4882, %v4914, %v4630
    %v4947 = vsel %vm4883, %v4915, %v4637
    %v4948 = vsel %vm4884, %v4916, %v4644
    %v4949 = vsel %vm4885, %v4917, %v4651
    %v4950 = vsel %vm4886, %v4918, %v4658
    %v4951 = vsel %vm4887, %v4919, %v4665
    %v4952 = vsel %vm4888, %v4920, %v4672
    %v4953 = vsel %vm4889, %v4921, %v4679
    %v4954 = vsel %vm4890, %v4922, %v4686
    %v4955 = vsel %vm4891, %v4923, %v4693
    %v4956 = vsel %vm4892, %v4924, %v4700
    %v4957 = vsel %vm4893, %v4925, %v4707
    %v4958 = vsel %vm4894, %v4926, %v4714
    %v4959 = vsel %vm4895, %v4927, %v4721
    %v4960 = vsel %vm4896, %v4928, %v4728
    %v4961 = vsel %vm4897, %v4929, %v4735
    %v4962 = vsel %vm4898, %v4930, %v4742
    %v4963 = vsel %vm4899, %v4931, %v4749
    %v4964 = vsel %vm4900, %v4932, %v4756
    %v4965 = vsel %vm4901, %v4933, %v4763
    %v4966 = vsel %vm4902, %v4934, %v4770
    %v4967 = vsel %vm4903, %v4935, %v4777
    %v4968 = vsel %vm4904, %v4936, %v4784
    %v4969 = vsel %vm4905, %v4937, %v4791
    %v4970 = vsel %vm4906, %v4938, %v4798
    %v4971 = vsel %vm4907, %v4939, %v4805
    %v4972 = vsel %vm4908, %v4940, %v4812
    %vm4973 = vcmp.lt.s32.totalorder %v4941, 3
    %vm4974 = vcmp.lt.s32.totalorder %v4942, 3
    %vm4975 = vcmp.lt.s32.totalorder %v4943, 3
    %vm4976 = vcmp.lt.s32.totalorder %v4944, 3
    %vm4977 = vcmp.lt.s32.totalorder %v4945, 3
    %vm4978 = vcmp.lt.s32.totalorder %v4946, 3
    %vm4979 = vcmp.lt.s32.totalorder %v4947, 3
    %vm4980 = vcmp.lt.s32.totalorder %v4948, 3
    %vm4981 = vcmp.lt.s32.totalorder %v4949, 3
    %vm4982 = vcmp.lt.s32.totalorder %v4950, 3
    %vm4983 = vcmp.lt.s32.totalorder %v4951, 3
    %vm4984 = vcmp.lt.s32.totalorder %v4952, 3
    %vm4985 = vcmp.lt.s32.totalorder %v4953, 3
    %vm4986 = vcmp.lt.s32.totalorder %v4954, 3
    %vm4987 = vcmp.lt.s32.totalorder %v4955, 3
    %vm4988 = vcmp.lt.s32.totalorder %v4956, 3
    %vm4989 = vcmp.lt.s32.totalorder %v4957, 3
    %vm4990 = vcmp.lt.s32.totalorder %v4958, 3
    %vm4991 = vcmp.lt.s32.totalorder %v4959, 3
    %vm4992 = vcmp.lt.s32.totalorder %v4960, 3
    %vm4993 = vcmp.lt.s32.totalorder %v4961, 3
    %vm4994 = vcmp.lt.s32.totalorder %v4962, 3
    %vm4995 = vcmp.lt.s32.totalorder %v4963, 3
    %vm4996 = vcmp.lt.s32.totalorder %v4964, 3
    %vm4997 = vcmp.lt.s32.totalorder %v4965, 3
    %vm4998 = vcmp.lt.s32.totalorder %v4966, 3
    %vm4999 = vcmp.lt.s32.totalorder %v4967, 3
    %vm5000 = vcmp.lt.s32.totalorder %v4968, 3
    %vm5001 = vcmp.lt.s32.totalorder %v4969, 3
    %vm5002 = vcmp.lt.s32.totalorder %v4970, 3
    %vm5003 = vcmp.lt.s32.totalorder %v4971, 3
    %vm5004 = vcmp.lt.s32.totalorder %v4972, 3
    %v5005 = vsel %vm4973, 1, 0
    %v5006 = vsel %vm4974, 1, 0
    %v5007 = vsel %vm4975, 1, 0
    %v5008 = vsel %vm4976, 1, 0
    %v5009 = vsel %vm4977, 1, 0
    %v5010 = vsel %vm4978, 1, 0
    %v5011 = vsel %vm4979, 1, 0
    %v5012 = vsel %vm4980, 1, 0
    %v5013 = vsel %vm4981, 1, 0
    %v5014 = vsel %vm4982, 1, 0
    %v5015 = vsel %vm4983, 1, 0
    %v5016 = vsel %vm4984, 1, 0
    %v5017 = vsel %vm4985, 1, 0
    %v5018 = vsel %vm4986, 1, 0
    %v5019 = vsel %vm4987, 1, 0
    %v5020 = vsel %vm4988, 1, 0
    %v5021 = vsel %vm4989, 1, 0
    %v5022 = vsel %vm4990, 1, 0
    %v5023 = vsel %vm4991, 1, 0
    %v5024 = vsel %vm4992, 1, 0
    %v5025 = vsel %vm4993, 1, 0
    %v5026 = vsel %vm4994, 1, 0
    %v5027 = vsel %vm4995, 1, 0
    %v5028 = vsel %vm4996, 1, 0
    %v5029 = vsel %vm4997, 1, 0
    %v5030 = vsel %vm4998, 1, 0
    %v5031 = vsel %vm4999, 1, 0
    %v5032 = vsel %vm5000, 1, 0
    %v5033 = vsel %vm5001, 1, 0
    %v5034 = vsel %vm5002, 1, 0
    %v5035 = vsel %vm5003, 1, 0
    %v5036 = vsel %vm5004, 1, 0
    %v5037 = vcvt.s32.f32 %v5005
    %v5038 = vcvt.s32.f32 %v5006
    %v5039 = vcvt.s32.f32 %v5007
    %v5040 = vcvt.s32.f32 %v5008
    %v5041 = vcvt.s32.f32 %v5009
    %v5042 = vcvt.s32.f32 %v5010
    %v5043 = vcvt.s32.f32 %v5011
    %v5044 = vcvt.s32.f32 %v5012
    %v5045 = vcvt.s32.f32 %v5013
    %v5046 = vcvt.s32.f32 %v5014
    %v5047 = vcvt.s32.f32 %v5015
    %v5048 = vcvt.s32.f32 %v5016
    %v5049 = vcvt.s32.f32 %v5017
    %v5050 = vcvt.s32.f32 %v5018
    %v5051 = vcvt.s32.f32 %v5019
    %v5052 = vcvt.s32.f32 %v5020
    %v5053 = vcvt.s32.f32 %v5021
    %v5054 = vcvt.s32.f32 %v5022
    %v5055 = vcvt.s32.f32 %v5023
    %v5056 = vcvt.s32.f32 %v5024
    %v5057 = vcvt.s32.f32 %v5025
    %v5058 = vcvt.s32.f32 %v5026
    %v5059 = vcvt.s32.f32 %v5027
    %v5060 = vcvt.s32.f32 %v5028
    %v5061 = vcvt.s32.f32 %v5029
    %v5062 = vcvt.s32.f32 %v5030
    %v5063 = vcvt.s32.f32 %v5031
    %v5064 = vcvt.s32.f32 %v5032
    %v5065 = vcvt.s32.f32 %v5033
    %v5066 = vcvt.s32.f32 %v5034
    %v5067 = vcvt.s32.f32 %v5035
    %v5068 = vcvt.s32.f32 %v5036
    %vm5069 = vcmp.lt.s32.totalorder %v4941, 28
    %vm5070 = vcmp.lt.s32.totalorder %v4942, 28
    %vm5071 = vcmp.lt.s32.totalorder %v4943, 28
    %vm5072 = vcmp.lt.s32.totalorder %v4944, 28
    %vm5073 = vcmp.lt.s32.totalorder %v4945, 28
    %vm5074 = vcmp.lt.s32.totalorder %v4946, 28
    %vm5075 = vcmp.lt.s32.totalorder %v4947, 28
    %vm5076 = vcmp.lt.s32.totalorder %v4948, 28
    %vm5077 = vcmp.lt.s32.totalorder %v4949, 28
    %vm5078 = vcmp.lt.s32.totalorder %v4950, 28
    %vm5079 = vcmp.lt.s32.totalorder %v4951, 28
    %vm5080 = vcmp.lt.s32.totalorder %v4952, 28
    %vm5081 = vcmp.lt.s32.totalorder %v4953, 28
    %vm5082 = vcmp.lt.s32.totalorder %v4954, 28
    %vm5083 = vcmp.lt.s32.totalorder %v4955, 28
    %vm5084 = vcmp.lt.s32.totalorder %v4956, 28
    %vm5085 = vcmp.lt.s32.totalorder %v4957, 28
    %vm5086 = vcmp.lt.s32.totalorder %v4958, 28
    %vm5087 = vcmp.lt.s32.totalorder %v4959, 28
    %vm5088 = vcmp.lt.s32.totalorder %v4960, 28
    %vm5089 = vcmp.lt.s32.totalorder %v4961, 28
    %vm5090 = vcmp.lt.s32.totalorder %v4962, 28
    %vm5091 = vcmp.lt.s32.totalorder %v4963, 28
    %vm5092 = vcmp.lt.s32.totalorder %v4964, 28
    %vm5093 = vcmp.lt.s32.totalorder %v4965, 28
    %vm5094 = vcmp.lt.s32.totalorder %v4966, 28
    %vm5095 = vcmp.lt.s32.totalorder %v4967, 28
    %vm5096 = vcmp.lt.s32.totalorder %v4968, 28
    %vm5097 = vcmp.lt.s32.totalorder %v4969, 28
    %vm5098 = vcmp.lt.s32.totalorder %v4970, 28
    %vm5099 = vcmp.lt.s32.totalorder %v4971, 28
    %vm5100 = vcmp.lt.s32.totalorder %v4972, 28
    %v5101 = vsel %vm5069, 1, 0
    %v5102 = vsel %vm5070, 1, 0
    %v5103 = vsel %vm5071, 1, 0
    %v5104 = vsel %vm5072, 1, 0
    %v5105 = vsel %vm5073, 1, 0
    %v5106 = vsel %vm5074, 1, 0
    %v5107 = vsel %vm5075, 1, 0
    %v5108 = vsel %vm5076, 1, 0
    %v5109 = vsel %vm5077, 1, 0
    %v5110 = vsel %vm5078, 1, 0
    %v5111 = vsel %vm5079, 1, 0
    %v5112 = vsel %vm5080, 1, 0
    %v5113 = vsel %vm5081, 1, 0
    %v5114 = vsel %vm5082, 1, 0
    %v5115 = vsel %vm5083, 1, 0
    %v5116 = vsel %vm5084, 1, 0
    %v5117 = vsel %vm5085, 1, 0
    %v5118 = vsel %vm5086, 1, 0
    %v5119 = vsel %vm5087, 1, 0
    %v5120 = vsel %vm5088, 1, 0
    %v5121 = vsel %vm5089, 1, 0
    %v5122 = vsel %vm5090, 1, 0
    %v5123 = vsel %vm5091, 1, 0
    %v5124 = vsel %vm5092, 1, 0
    %v5125 = vsel %vm5093, 1, 0
    %v5126 = vsel %vm5094, 1, 0
    %v5127 = vsel %vm5095, 1, 0
    %v5128 = vsel %vm5096, 1, 0
    %v5129 = vsel %vm5097, 1, 0
    %v5130 = vsel %vm5098, 1, 0
    %v5131 = vsel %vm5099, 1, 0
    %v5132 = vsel %vm5100, 1, 0
    %v5133 = vcvt.s32.f32 %v5101
    %v5134 = vcvt.s32.f32 %v5102
    %v5135 = vcvt.s32.f32 %v5103
    %v5136 = vcvt.s32.f32 %v5104
    %v5137 = vcvt.s32.f32 %v5105
    %v5138 = vcvt.s32.f32 %v5106
    %v5139 = vcvt.s32.f32 %v5107
    %v5140 = vcvt.s32.f32 %v5108
    %v5141 = vcvt.s32.f32 %v5109
    %v5142 = vcvt.s32.f32 %v5110
    %v5143 = vcvt.s32.f32 %v5111
    %v5144 = vcvt.s32.f32 %v5112
    %v5145 = vcvt.s32.f32 %v5113
    %v5146 = vcvt.s32.f32 %v5114
    %v5147 = vcvt.s32.f32 %v5115
    %v5148 = vcvt.s32.f32 %v5116
    %v5149 = vcvt.s32.f32 %v5117
    %v5150 = vcvt.s32.f32 %v5118
    %v5151 = vcvt.s32.f32 %v5119
    %v5152 = vcvt.s32.f32 %v5120
    %v5153 = vcvt.s32.f32 %v5121
    %v5154 = vcvt.s32.f32 %v5122
    %v5155 = vcvt.s32.f32 %v5123
    %v5156 = vcvt.s32.f32 %v5124
    %v5157 = vcvt.s32.f32 %v5125
    %v5158 = vcvt.s32.f32 %v5126
    %v5159 = vcvt.s32.f32 %v5127
    %v5160 = vcvt.s32.f32 %v5128
    %v5161 = vcvt.s32.f32 %v5129
    %v5162 = vcvt.s32.f32 %v5130
    %v5163 = vcvt.s32.f32 %v5131
    %v5164 = vcvt.s32.f32 %v5132
    %v5165 = vxor.u32 %v4524, 2147483648
    %v5166 = vxor.u32 %v4525, 2147483648
    %v5167 = vxor.u32 %v4526, 2147483648
    %v5168 = vxor.u32 %v4527, 2147483648
    %v5169 = vxor.u32 %v4528, 2147483648
    %v5170 = vxor.u32 %v4529, 2147483648
    %v5171 = vxor.u32 %v4530, 2147483648
    %v5172 = vxor.u32 %v4531, 2147483648
    %v5173 = vxor.u32 %v4532, 2147483648
    %v5174 = vxor.u32 %v4533, 2147483648
    %v5175 = vxor.u32 %v4534, 2147483648
    %v5176 = vxor.u32 %v4535, 2147483648
    %v5177 = vxor.u32 %v4536, 2147483648
    %v5178 = vxor.u32 %v4537, 2147483648
    %v5179 = vxor.u32 %v4538, 2147483648
    %v5180 = vxor.u32 %v4539, 2147483648
    %v5181 = vxor.u32 %v4540, 2147483648
    %v5182 = vxor.u32 %v4541, 2147483648
    %v5183 = vxor.u32 %v4542, 2147483648
    %v5184 = vxor.u32 %v4543, 2147483648
    %v5185 = vxor.u32 %v4544, 2147483648
    %v5186 = vxor.u32 %v4545, 2147483648
    %v5187 = vxor.u32 %v4546, 2147483648
    %v5188 = vxor.u32 %v4547, 2147483648
    %v5189 = vxor.u32 %v4548, 2147483648
    %v5190 = vxor.u32 %v4549, 2147483648
    %v5191 = vxor.u32 %v4550, 2147483648
    %v5192 = vxor.u32 %v4551, 2147483648
    %v5193 = vxor.u32 %v4552, 2147483648
    %v5194 = vxor.u32 %v4553, 2147483648
    %v5195 = vxor.u32 %v4554, 2147483648
    %v5196 = vxor.u32 %v4555, 2147483648
    %v5197 = vmul.f32 %v5165, 1.442695
    %v5198 = vpow.pop %v5197
    %v5199 = vmul.f32 %v5166, 1.442695
    %v5200 = vpow.pop %v5199
    %v5201 = vmul.f32 %v5167, 1.442695
    %v5202 = vpow.pop %v5201
    %v5203 = vmul.f32 %v5168, 1.442695
    %v5204 = vpow.pop %v5203
    %v5205 = vmul.f32 %v5169, 1.442695
    %v5206 = vpow.pop %v5205
    %v5207 = vmul.f32 %v5170, 1.442695
    %v5208 = vpow.pop %v5207
    %v5209 = vmul.f32 %v5171, 1.442695
    %v5210 = vpow.pop %v5209
    %v5211 = vmul.f32 %v5172, 1.442695
    %v5212 = vpow.pop %v5211
    %v5213 = vmul.f32 %v5173, 1.442695
    %v5214 = vpow.pop %v5213
    %v5215 = vmul.f32 %v5174, 1.442695
    %v5216 = vpow.pop %v5215
    %v5217 = vmul.f32 %v5175, 1.442695
    %v5218 = vpow.pop %v5217
    %v5219 = vmul.f32 %v5176, 1.442695
    %v5220 = vpow.pop %v5219
    %v5221 = vmul.f32 %v5177, 1.442695
    %v5222 = vpow.pop %v5221
    %v5223 = vmul.f32 %v5178, 1.442695
    %v5224 = vpow.pop %v5223
    %v5225 = vmul.f32 %v5179, 1.442695
    %v5226 = vpow.pop %v5225
    %v5227 = vmul.f32 %v5180, 1.442695
    %v5228 = vpow.pop %v5227
    %v5229 = vmul.f32 %v5181, 1.442695
    %v5230 = vpow.pop %v5229
    %v5231 = vmul.f32 %v5182, 1.442695
    %v5232 = vpow.pop %v5231
    %v5233 = vmul.f32 %v5183, 1.442695
    %v5234 = vpow.pop %v5233
    %v5235 = vmul.f32 %v5184, 1.442695
    %v5236 = vpow.pop %v5235
    %v5237 = vmul.f32 %v5185, 1.442695
    %v5238 = vpow.pop %v5237
    %v5239 = vmul.f32 %v5186, 1.442695
    %v5240 = vpow.pop %v5239
    %v5241 = vmul.f32 %v5187, 1.442695
    %v5242 = vpow.pop %v5241
    %v5243 = vmul.f32 %v5188, 1.442695
    %v5244 = vpow.pop %v5243
    %v5245 = vmul.f32 %v5189, 1.442695
    %v5246 = vpow.pop %v5245
    %v5247 = vmul.f32 %v5190, 1.442695
    %v5248 = vpow.pop %v5247
    %v5249 = vmul.f32 %v5191, 1.442695
    %v5250 = vpow.pop %v5249
    %v5251 = vmul.f32 %v5192, 1.442695
    %v5252 = vpow.pop %v5251
    %v5253 = vmul.f32 %v5193, 1.442695
    %v5254 = vpow.pop %v5253
    %v5255 = vmul.f32 %v5194, 1.442695
    %v5256 = vpow.pop %v5255
    %v5257 = vmul.f32 %v5195, 1.442695
    %v5258 = vpow.pop %v5257
    %v5259 = vmul.f32 %v5196, 1.442695
    %v5260 = vpow.pop %v5259
    %v5261 = vadd.f32 %v5198, 1.0
    %v5262 = vadd.f32 %v5200, 1.0
    %v5263 = vadd.f32 %v5202, 1.0
    %v5264 = vadd.f32 %v5204, 1.0
    %v5265 = vadd.f32 %v5206, 1.0
    %v5266 = vadd.f32 %v5208, 1.0
    %v5267 = vadd.f32 %v5210, 1.0
    %v5268 = vadd.f32 %v5212, 1.0
    %v5269 = vadd.f32 %v5214, 1.0
    %v5270 = vadd.f32 %v5216, 1.0
    %v5271 = vadd.f32 %v5218, 1.0
    %v5272 = vadd.f32 %v5220, 1.0
    %v5273 = vadd.f32 %v5222, 1.0
    %v5274 = vadd.f32 %v5224, 1.0
    %v5275 = vadd.f32 %v5226, 1.0
    %v5276 = vadd.f32 %v5228, 1.0
    %v5277 = vadd.f32 %v5230, 1.0
    %v5278 = vadd.f32 %v5232, 1.0
    %v5279 = vadd.f32 %v5234, 1.0
    %v5280 = vadd.f32 %v5236, 1.0
    %v5281 = vadd.f32 %v5238, 1.0
    %v5282 = vadd.f32 %v5240, 1.0
    %v5283 = vadd.f32 %v5242, 1.0
    %v5284 = vadd.f32 %v5244, 1.0
    %v5285 = vadd.f32 %v5246, 1.0
    %v5286 = vadd.f32 %v5248, 1.0
    %v5287 = vadd.f32 %v5250, 1.0
    %v5288 = vadd.f32 %v5252, 1.0
    %v5289 = vadd.f32 %v5254, 1.0
    %v5290 = vadd.f32 %v5256, 1.0
    %v5291 = vadd.f32 %v5258, 1.0
    %v5292 = vadd.f32 %v5260, 1.0
    %v5293 = vrcp.pop %v5261
    %v5294 = vmul.f32 1.0, %v5293
    %v5295 = vrcp.pop %v5262
    %v5296 = vmul.f32 1.0, %v5295
    %v5297 = vrcp.pop %v5263
    %v5298 = vmul.f32 1.0, %v5297
    %v5299 = vrcp.pop %v5264
    %v5300 = vmul.f32 1.0, %v5299
    %v5301 = vrcp.pop %v5265
    %v5302 = vmul.f32 1.0, %v5301
    %v5303 = vrcp.pop %v5266
    %v5304 = vmul.f32 1.0, %v5303
    %v5305 = vrcp.pop %v5267
    %v5306 = vmul.f32 1.0, %v5305
    %v5307 = vrcp.pop %v5268
    %v5308 = vmul.f32 1.0, %v5307
    %v5309 = vrcp.pop %v5269
    %v5310 = vmul.f32 1.0, %v5309
    %v5311 = vrcp.pop %v5270
    %v5312 = vmul.f32 1.0, %v5311
    %v5313 = vrcp.pop %v5271
    %v5314 = vmul.f32 1.0, %v5313
    %v5315 = vrcp.pop %v5272
    %v5316 = vmul.f32 1.0, %v5315
    %v5317 = vrcp.pop %v5273
    %v5318 = vmul.f32 1.0, %v5317
    %v5319 = vrcp.pop %v5274
    %v5320 = vmul.f32 1.0, %v5319
    %v5321 = vrcp.pop %v5275
    %v5322 = vmul.f32 1.0, %v5321
    %v5323 = vrcp.pop %v5276
    %v5324 = vmul.f32 1.0, %v5323
    %v5325 = vrcp.pop %v5277
    %v5326 = vmul.f32 1.0, %v5325
    %v5327 = vrcp.pop %v5278
    %v5328 = vmul.f32 1.0, %v5327
    %v5329 = vrcp.pop %v5279
    %v5330 = vmul.f32 1.0, %v5329
    %v5331 = vrcp.pop %v5280
    %v5332 = vmul.f32 1.0, %v5331
    %v5333 = vrcp.pop %v5281
    %v5334 = vmul.f32 1.0, %v5333
    %v5335 = vrcp.pop %v5282
    %v5336 = vmul.f32 1.0, %v5335
    %v5337 = vrcp.pop %v5283
    %v5338 = vmul.f32 1.0, %v5337
    %v5339 = vrcp.pop %v5284
    %v5340 = vmul.f32 1.0, %v5339
    %v5341 = vrcp.pop %v5285
    %v5342 = vmul.f32 1.0, %v5341
    %v5343 = vrcp.pop %v5286
    %v5344 = vmul.f32 1.0, %v5343
    %v5345 = vrcp.pop %v5287
    %v5346 = vmul.f32 1.0, %v5345
    %v5347 = vrcp.pop %v5288
    %v5348 = vmul.f32 1.0, %v5347
    %v5349 = vrcp.pop %v5289
    %v5350 = vmul.f32 1.0, %v5349
    %v5351 = vrcp.pop %v5290
    %v5352 = vmul.f32 1.0, %v5351
    %v5353 = vrcp.pop %v5291
    %v5354 = vmul.f32 1.0, %v5353
    %v5355 = vrcp.pop %v5292
    %v5356 = vmul.f32 1.0, %v5355
    %v5357 = vlog2.pop %v5294
    %v5358 = vmul.f32 %v5357, 0.6931472
    %v5359 = vlog2.pop %v5296
    %v5360 = vmul.f32 %v5359, 0.6931472
    %v5361 = vlog2.pop %v5298
    %v5362 = vmul.f32 %v5361, 0.6931472
    %v5363 = vlog2.pop %v5300
    %v5364 = vmul.f32 %v5363, 0.6931472
    %v5365 = vlog2.pop %v5302
    %v5366 = vmul.f32 %v5365, 0.6931472
    %v5367 = vlog2.pop %v5304
    %v5368 = vmul.f32 %v5367, 0.6931472
    %v5369 = vlog2.pop %v5306
    %v5370 = vmul.f32 %v5369, 0.6931472
    %v5371 = vlog2.pop %v5308
    %v5372 = vmul.f32 %v5371, 0.6931472
    %v5373 = vlog2.pop %v5310
    %v5374 = vmul.f32 %v5373, 0.6931472
    %v5375 = vlog2.pop %v5312
    %v5376 = vmul.f32 %v5375, 0.6931472
    %v5377 = vlog2.pop %v5314
    %v5378 = vmul.f32 %v5377, 0.6931472
    %v5379 = vlog2.pop %v5316
    %v5380 = vmul.f32 %v5379, 0.6931472
    %v5381 = vlog2.pop %v5318
    %v5382 = vmul.f32 %v5381, 0.6931472
    %v5383 = vlog2.pop %v5320
    %v5384 = vmul.f32 %v5383, 0.6931472
    %v5385 = vlog2.pop %v5322
    %v5386 = vmul.f32 %v5385, 0.6931472
    %v5387 = vlog2.pop %v5324
    %v5388 = vmul.f32 %v5387, 0.6931472
    %v5389 = vlog2.pop %v5326
    %v5390 = vmul.f32 %v5389, 0.6931472
    %v5391 = vlog2.pop %v5328
    %v5392 = vmul.f32 %v5391, 0.6931472
    %v5393 = vlog2.pop %v5330
    %v5394 = vmul.f32 %v5393, 0.6931472
    %v5395 = vlog2.pop %v5332
    %v5396 = vmul.f32 %v5395, 0.6931472
    %v5397 = vlog2.pop %v5334
    %v5398 = vmul.f32 %v5397, 0.6931472
    %v5399 = vlog2.pop %v5336
    %v5400 = vmul.f32 %v5399, 0.6931472
    %v5401 = vlog2.pop %v5338
    %v5402 = vmul.f32 %v5401, 0.6931472
    %v5403 = vlog2.pop %v5340
    %v5404 = vmul.f32 %v5403, 0.6931472
    %v5405 = vlog2.pop %v5342
    %v5406 = vmul.f32 %v5405, 0.6931472
    %v5407 = vlog2.pop %v5344
    %v5408 = vmul.f32 %v5407, 0.6931472
    %v5409 = vlog2.pop %v5346
    %v5410 = vmul.f32 %v5409, 0.6931472
    %v5411 = vlog2.pop %v5348
    %v5412 = vmul.f32 %v5411, 0.6931472
    %v5413 = vlog2.pop %v5350
    %v5414 = vmul.f32 %v5413, 0.6931472
    %v5415 = vlog2.pop %v5352
    %v5416 = vmul.f32 %v5415, 0.6931472
    %v5417 = vlog2.pop %v5354
    %v5418 = vmul.f32 %v5417, 0.6931472
    %v5419 = vlog2.pop %v5356
    %v5420 = vmul.f32 %v5419, 0.6931472
    %v5421 = vmax.f32 %v5358, -100.0
    %v5422 = vmax.f32 %v5360, -100.0
    %v5423 = vmax.f32 %v5362, -100.0
    %v5424 = vmax.f32 %v5364, -100.0
    %v5425 = vmax.f32 %v5366, -100.0
    %v5426 = vmax.f32 %v5368, -100.0
    %v5427 = vmax.f32 %v5370, -100.0
    %v5428 = vmax.f32 %v5372, -100.0
    %v5429 = vmax.f32 %v5374, -100.0
    %v5430 = vmax.f32 %v5376, -100.0
    %v5431 = vmax.f32 %v5378, -100.0
    %v5432 = vmax.f32 %v5380, -100.0
    %v5433 = vmax.f32 %v5382, -100.0
    %v5434 = vmax.f32 %v5384, -100.0
    %v5435 = vmax.f32 %v5386, -100.0
    %v5436 = vmax.f32 %v5388, -100.0
    %v5437 = vmax.f32 %v5390, -100.0
    %v5438 = vmax.f32 %v5392, -100.0
    %v5439 = vmax.f32 %v5394, -100.0
    %v5440 = vmax.f32 %v5396, -100.0
    %v5441 = vmax.f32 %v5398, -100.0
    %v5442 = vmax.f32 %v5400, -100.0
    %v5443 = vmax.f32 %v5402, -100.0
    %v5444 = vmax.f32 %v5404, -100.0
    %v5445 = vmax.f32 %v5406, -100.0
    %v5446 = vmax.f32 %v5408, -100.0
    %v5447 = vmax.f32 %v5410, -100.0
    %v5448 = vmax.f32 %v5412, -100.0
    %v5449 = vmax.f32 %v5414, -100.0
    %v5450 = vmax.f32 %v5416, -100.0
    %v5451 = vmax.f32 %v5418, -100.0
    %v5452 = vmax.f32 %v5420, -100.0
    %v5453 = vsub.f32 1.0, %v5294
    %v5454 = vsub.f32 1.0, %v5296
    %v5455 = vsub.f32 1.0, %v5298
    %v5456 = vsub.f32 1.0, %v5300
    %v5457 = vsub.f32 1.0, %v5302
    %v5458 = vsub.f32 1.0, %v5304
    %v5459 = vsub.f32 1.0, %v5306
    %v5460 = vsub.f32 1.0, %v5308
    %v5461 = vsub.f32 1.0, %v5310
    %v5462 = vsub.f32 1.0, %v5312
    %v5463 = vsub.f32 1.0, %v5314
    %v5464 = vsub.f32 1.0, %v5316
    %v5465 = vsub.f32 1.0, %v5318
    %v5466 = vsub.f32 1.0, %v5320
    %v5467 = vsub.f32 1.0, %v5322
    %v5468 = vsub.f32 1.0, %v5324
    %v5469 = vsub.f32 1.0, %v5326
    %v5470 = vsub.f32 1.0, %v5328
    %v5471 = vsub.f32 1.0, %v5330
    %v5472 = vsub.f32 1.0, %v5332
    %v5473 = vsub.f32 1.0, %v5334
    %v5474 = vsub.f32 1.0, %v5336
    %v5475 = vsub.f32 1.0, %v5338
    %v5476 = vsub.f32 1.0, %v5340
    %v5477 = vsub.f32 1.0, %v5342
    %v5478 = vsub.f32 1.0, %v5344
    %v5479 = vsub.f32 1.0, %v5346
    %v5480 = vsub.f32 1.0, %v5348
    %v5481 = vsub.f32 1.0, %v5350
    %v5482 = vsub.f32 1.0, %v5352
    %v5483 = vsub.f32 1.0, %v5354
    %v5484 = vsub.f32 1.0, %v5356
    %v5485 = vlog2.pop %v5453
    %v5486 = vmul.f32 %v5485, 0.6931472
    %v5487 = vlog2.pop %v5454
    %v5488 = vmul.f32 %v5487, 0.6931472
    %v5489 = vlog2.pop %v5455
    %v5490 = vmul.f32 %v5489, 0.6931472
    %v5491 = vlog2.pop %v5456
    %v5492 = vmul.f32 %v5491, 0.6931472
    %v5493 = vlog2.pop %v5457
    %v5494 = vmul.f32 %v5493, 0.6931472
    %v5495 = vlog2.pop %v5458
    %v5496 = vmul.f32 %v5495, 0.6931472
    %v5497 = vlog2.pop %v5459
    %v5498 = vmul.f32 %v5497, 0.6931472
    %v5499 = vlog2.pop %v5460
    %v5500 = vmul.f32 %v5499, 0.6931472
    %v5501 = vlog2.pop %v5461
    %v5502 = vmul.f32 %v5501, 0.6931472
    %v5503 = vlog2.pop %v5462
    %v5504 = vmul.f32 %v5503, 0.6931472
    %v5505 = vlog2.pop %v5463
    %v5506 = vmul.f32 %v5505, 0.6931472
    %v5507 = vlog2.pop %v5464
    %v5508 = vmul.f32 %v5507, 0.6931472
    %v5509 = vlog2.pop %v5465
    %v5510 = vmul.f32 %v5509, 0.6931472
    %v5511 = vlog2.pop %v5466
    %v5512 = vmul.f32 %v5511, 0.6931472
    %v5513 = vlog2.pop %v5467
    %v5514 = vmul.f32 %v5513, 0.6931472
    %v5515 = vlog2.pop %v5468
    %v5516 = vmul.f32 %v5515, 0.6931472
    %v5517 = vlog2.pop %v5469
    %v5518 = vmul.f32 %v5517, 0.6931472
    %v5519 = vlog2.pop %v5470
    %v5520 = vmul.f32 %v5519, 0.6931472
    %v5521 = vlog2.pop %v5471
    %v5522 = vmul.f32 %v5521, 0.6931472
    %v5523 = vlog2.pop %v5472
    %v5524 = vmul.f32 %v5523, 0.6931472
    %v5525 = vlog2.pop %v5473
    %v5526 = vmul.f32 %v5525, 0.6931472
    %v5527 = vlog2.pop %v5474
    %v5528 = vmul.f32 %v5527, 0.6931472
    %v5529 = vlog2.pop %v5475
    %v5530 = vmul.f32 %v5529, 0.6931472
    %v5531 = vlog2.pop %v5476
    %v5532 = vmul.f32 %v5531, 0.6931472
    %v5533 = vlog2.pop %v5477
    %v5534 = vmul.f32 %v5533, 0.6931472
    %v5535 = vlog2.pop %v5478
    %v5536 = vmul.f32 %v5535, 0.6931472
    %v5537 = vlog2.pop %v5479
    %v5538 = vmul.f32 %v5537, 0.6931472
    %v5539 = vlog2.pop %v5480
    %v5540 = vmul.f32 %v5539, 0.6931472
    %v5541 = vlog2.pop %v5481
    %v5542 = vmul.f32 %v5541, 0.6931472
    %v5543 = vlog2.pop %v5482
    %v5544 = vmul.f32 %v5543, 0.6931472
    %v5545 = vlog2.pop %v5483
    %v5546 = vmul.f32 %v5545, 0.6931472
    %v5547 = vlog2.pop %v5484
    %v5548 = vmul.f32 %v5547, 0.6931472
    %v5549 = vmax.f32 %v5486, -100.0
    %v5550 = vmax.f32 %v5488, -100.0
    %v5551 = vmax.f32 %v5490, -100.0
    %v5552 = vmax.f32 %v5492, -100.0
    %v5553 = vmax.f32 %v5494, -100.0
    %v5554 = vmax.f32 %v5496, -100.0
    %v5555 = vmax.f32 %v5498, -100.0
    %v5556 = vmax.f32 %v5500, -100.0
    %v5557 = vmax.f32 %v5502, -100.0
    %v5558 = vmax.f32 %v5504, -100.0
    %v5559 = vmax.f32 %v5506, -100.0
    %v5560 = vmax.f32 %v5508, -100.0
    %v5561 = vmax.f32 %v5510, -100.0
    %v5562 = vmax.f32 %v5512, -100.0
    %v5563 = vmax.f32 %v5514, -100.0
    %v5564 = vmax.f32 %v5516, -100.0
    %v5565 = vmax.f32 %v5518, -100.0
    %v5566 = vmax.f32 %v5520, -100.0
    %v5567 = vmax.f32 %v5522, -100.0
    %v5568 = vmax.f32 %v5524, -100.0
    %v5569 = vmax.f32 %v5526, -100.0
    %v5570 = vmax.f32 %v5528, -100.0
    %v5571 = vmax.f32 %v5530, -100.0
    %v5572 = vmax.f32 %v5532, -100.0
    %v5573 = vmax.f32 %v5534, -100.0
    %v5574 = vmax.f32 %v5536, -100.0
    %v5575 = vmax.f32 %v5538, -100.0
    %v5576 = vmax.f32 %v5540, -100.0
    %v5577 = vmax.f32 %v5542, -100.0
    %v5578 = vmax.f32 %v5544, -100.0
    %v5579 = vmax.f32 %v5546, -100.0
    %v5580 = vmax.f32 %v5548, -100.0
    %v5581 = vmul.f32 %v5037, %v5421
    %v5582 = vmul.f32 %v5038, %v5422
    %v5583 = vmul.f32 %v5039, %v5423
    %v5584 = vmul.f32 %v5040, %v5424
    %v5585 = vmul.f32 %v5041, %v5425
    %v5586 = vmul.f32 %v5042, %v5426
    %v5587 = vmul.f32 %v5043, %v5427
    %v5588 = vmul.f32 %v5044, %v5428
    %v5589 = vmul.f32 %v5045, %v5429
    %v5590 = vmul.f32 %v5046, %v5430
    %v5591 = vmul.f32 %v5047, %v5431
    %v5592 = vmul.f32 %v5048, %v5432
    %v5593 = vmul.f32 %v5049, %v5433
    %v5594 = vmul.f32 %v5050, %v5434
    %v5595 = vmul.f32 %v5051, %v5435
    %v5596 = vmul.f32 %v5052, %v5436
    %v5597 = vmul.f32 %v5053, %v5437
    %v5598 = vmul.f32 %v5054, %v5438
    %v5599 = vmul.f32 %v5055, %v5439
    %v5600 = vmul.f32 %v5056, %v5440
    %v5601 = vmul.f32 %v5057, %v5441
    %v5602 = vmul.f32 %v5058, %v5442
    %v5603 = vmul.f32 %v5059, %v5443
    %v5604 = vmul.f32 %v5060, %v5444
    %v5605 = vmul.f32 %v5061, %v5445
    %v5606 = vmul.f32 %v5062, %v5446
    %v5607 = vmul.f32 %v5063, %v5447
    %v5608 = vmul.f32 %v5064, %v5448
    %v5609 = vmul.f32 %v5065, %v5449
    %v5610 = vmul.f32 %v5066, %v5450
    %v5611 = vmul.f32 %v5067, %v5451
    %v5612 = vmul.f32 %v5068, %v5452
    %v5613 = vsub.f32 1.0, %v5037
    %v5614 = vsub.f32 1.0, %v5038
    %v5615 = vsub.f32 1.0, %v5039
    %v5616 = vsub.f32 1.0, %v5040
    %v5617 = vsub.f32 1.0, %v5041
    %v5618 = vsub.f32 1.0, %v5042
    %v5619 = vsub.f32 1.0, %v5043
    %v5620 = vsub.f32 1.0, %v5044
    %v5621 = vsub.f32 1.0, %v5045
    %v5622 = vsub.f32 1.0, %v5046
    %v5623 = vsub.f32 1.0, %v5047
    %v5624 = vsub.f32 1.0, %v5048
    %v5625 = vsub.f32 1.0, %v5049
    %v5626 = vsub.f32 1.0, %v5050
    %v5627 = vsub.f32 1.0, %v5051
    %v5628 = vsub.f32 1.0, %v5052
    %v5629 = vsub.f32 1.0, %v5053
    %v5630 = vsub.f32 1.0, %v5054
    %v5631 = vsub.f32 1.0, %v5055
    %v5632 = vsub.f32 1.0, %v5056
    %v5633 = vsub.f32 1.0, %v5057
    %v5634 = vsub.f32 1.0, %v5058
    %v5635 = vsub.f32 1.0, %v5059
    %v5636 = vsub.f32 1.0, %v5060
    %v5637 = vsub.f32 1.0, %v5061
    %v5638 = vsub.f32 1.0, %v5062
    %v5639 = vsub.f32 1.0, %v5063
    %v5640 = vsub.f32 1.0, %v5064
    %v5641 = vsub.f32 1.0, %v5065
    %v5642 = vsub.f32 1.0, %v5066
    %v5643 = vsub.f32 1.0, %v5067
    %v5644 = vsub.f32 1.0, %v5068
    %v5645 = vmul.f32 %v5613, %v5549
    %v5646 = vmul.f32 %v5614, %v5550
    %v5647 = vmul.f32 %v5615, %v5551
    %v5648 = vmul.f32 %v5616, %v5552
    %v5649 = vmul.f32 %v5617, %v5553
    %v5650 = vmul.f32 %v5618, %v5554
    %v5651 = vmul.f32 %v5619, %v5555
    %v5652 = vmul.f32 %v5620, %v5556
    %v5653 = vmul.f32 %v5621, %v5557
    %v5654 = vmul.f32 %v5622, %v5558
    %v5655 = vmul.f32 %v5623, %v5559
    %v5656 = vmul.f32 %v5624, %v5560
    %v5657 = vmul.f32 %v5625, %v5561
    %v5658 = vmul.f32 %v5626, %v5562
    %v5659 = vmul.f32 %v5627, %v5563
    %v5660 = vmul.f32 %v5628, %v5564
    %v5661 = vmul.f32 %v5629, %v5565
    %v5662 = vmul.f32 %v5630, %v5566
    %v5663 = vmul.f32 %v5631, %v5567
    %v5664 = vmul.f32 %v5632, %v5568
    %v5665 = vmul.f32 %v5633, %v5569
    %v5666 = vmul.f32 %v5634, %v5570
    %v5667 = vmul.f32 %v5635, %v5571
    %v5668 = vmul.f32 %v5636, %v5572
    %v5669 = vmul.f32 %v5637, %v5573
    %v5670 = vmul.f32 %v5638, %v5574
    %v5671 = vmul.f32 %v5639, %v5575
    %v5672 = vmul.f32 %v5640, %v5576
    %v5673 = vmul.f32 %v5641, %v5577
    %v5674 = vmul.f32 %v5642, %v5578
    %v5675 = vmul.f32 %v5643, %v5579
    %v5676 = vmul.f32 %v5644, %v5580
    %v5677 = vadd.f32 %v5581, %v5645
    %v5678 = vadd.f32 %v5582, %v5646
    %v5679 = vadd.f32 %v5583, %v5647
    %v5680 = vadd.f32 %v5584, %v5648
    %v5681 = vadd.f32 %v5585, %v5649
    %v5682 = vadd.f32 %v5586, %v5650
    %v5683 = vadd.f32 %v5587, %v5651
    %v5684 = vadd.f32 %v5588, %v5652
    %v5685 = vadd.f32 %v5589, %v5653
    %v5686 = vadd.f32 %v5590, %v5654
    %v5687 = vadd.f32 %v5591, %v5655
    %v5688 = vadd.f32 %v5592, %v5656
    %v5689 = vadd.f32 %v5593, %v5657
    %v5690 = vadd.f32 %v5594, %v5658
    %v5691 = vadd.f32 %v5595, %v5659
    %v5692 = vadd.f32 %v5596, %v5660
    %v5693 = vadd.f32 %v5597, %v5661
    %v5694 = vadd.f32 %v5598, %v5662
    %v5695 = vadd.f32 %v5599, %v5663
    %v5696 = vadd.f32 %v5600, %v5664
    %v5697 = vadd.f32 %v5601, %v5665
    %v5698 = vadd.f32 %v5602, %v5666
    %v5699 = vadd.f32 %v5603, %v5667
    %v5700 = vadd.f32 %v5604, %v5668
    %v5701 = vadd.f32 %v5605, %v5669
    %v5702 = vadd.f32 %v5606, %v5670
    %v5703 = vadd.f32 %v5607, %v5671
    %v5704 = vadd.f32 %v5608, %v5672
    %v5705 = vadd.f32 %v5609, %v5673
    %v5706 = vadd.f32 %v5610, %v5674
    %v5707 = vadd.f32 %v5611, %v5675
    %v5708 = vadd.f32 %v5612, %v5676
    %v5709 = vmul.f32 %v5133, %v5677
    %v5710 = vmul.f32 %v5134, %v5678
    %v5711 = vmul.f32 %v5135, %v5679
    %v5712 = vmul.f32 %v5136, %v5680
    %v5713 = vmul.f32 %v5137, %v5681
    %v5714 = vmul.f32 %v5138, %v5682
    %v5715 = vmul.f32 %v5139, %v5683
    %v5716 = vmul.f32 %v5140, %v5684
    %v5717 = vmul.f32 %v5141, %v5685
    %v5718 = vmul.f32 %v5142, %v5686
    %v5719 = vmul.f32 %v5143, %v5687
    %v5720 = vmul.f32 %v5144, %v5688
    %v5721 = vmul.f32 %v5145, %v5689
    %v5722 = vmul.f32 %v5146, %v5690
    %v5723 = vmul.f32 %v5147, %v5691
    %v5724 = vmul.f32 %v5148, %v5692
    %v5725 = vmul.f32 %v5149, %v5693
    %v5726 = vmul.f32 %v5150, %v5694
    %v5727 = vmul.f32 %v5151, %v5695
    %v5728 = vmul.f32 %v5152, %v5696
    %v5729 = vmul.f32 %v5153, %v5697
    %v5730 = vmul.f32 %v5154, %v5698
    %v5731 = vmul.f32 %v5155, %v5699
    %v5732 = vmul.f32 %v5156, %v5700
    %v5733 = vmul.f32 %v5157, %v5701
    %v5734 = vmul.f32 %v5158, %v5702
    %v5735 = vmul.f32 %v5159, %v5703
    %v5736 = vmul.f32 %v5160, %v5704
    %v5737 = vmul.f32 %v5161, %v5705
    %v5738 = vmul.f32 %v5162, %v5706
    %v5739 = vmul.f32 %v5163, %v5707
    %v5740 = vmul.f32 %v5164, %v5708
    %vm5741 = vcmask 7168
    %v5742 = vsel %vm5741, %v5709, 0.0
    %v5743 = vsel %vm5741, %v5710, 0.0
    %v5744 = vadd.f32 %v5742, %v5743
    %v5745 = vsel %vm5741, %v5711, 0.0
    %v5746 = vadd.f32 %v5744, %v5745
    %v5747 = vsel %vm5741, %v5712, 0.0
    %v5748 = vadd.f32 %v5746, %v5747
    %v5749 = vsel %vm5741, %v5713, 0.0
    %v5750 = vadd.f32 %v5748, %v5749
    %v5751 = vsel %vm5741, %v5714, 0.0
    %v5752 = vadd.f32 %v5750, %v5751
    %v5753 = vsel %vm5741, %v5715, 0.0
    %v5754 = vadd.f32 %v5752, %v5753
    %v5755 = vsel %vm5741, %v5716, 0.0
    %v5756 = vadd.f32 %v5754, %v5755
    %v5757 = vsel %vm5741, %v5717, 0.0
    %v5758 = vadd.f32 %v5756, %v5757
    %v5759 = vsel %vm5741, %v5718, 0.0
    %v5760 = vadd.f32 %v5758, %v5759
    %v5761 = vsel %vm5741, %v5719, 0.0
    %v5762 = vadd.f32 %v5760, %v5761
    %v5763 = vsel %vm5741, %v5720, 0.0
    %v5764 = vadd.f32 %v5762, %v5763
    %v5765 = vsel %vm5741, %v5721, 0.0
    %v5766 = vadd.f32 %v5764, %v5765
    %v5767 = vsel %vm5741, %v5722, 0.0
    %v5768 = vadd.f32 %v5766, %v5767
    %v5769 = vsel %vm5741, %v5723, 0.0
    %v5770 = vadd.f32 %v5768, %v5769
    %v5771 = vsel %vm5741, %v5724, 0.0
    %v5772 = vadd.f32 %v5770, %v5771
    %v5773 = vsel %vm5741, %v5725, 0.0
    %v5774 = vadd.f32 %v5772, %v5773
    %v5775 = vsel %vm5741, %v5726, 0.0
    %v5776 = vadd.f32 %v5774, %v5775
    %v5777 = vsel %vm5741, %v5727, 0.0
    %v5778 = vadd.f32 %v5776, %v5777
    %v5779 = vsel %vm5741, %v5728, 0.0
    %v5780 = vadd.f32 %v5778, %v5779
    %v5781 = vsel %vm5741, %v5729, 0.0
    %v5782 = vadd.f32 %v5780, %v5781
    %v5783 = vsel %vm5741, %v5730, 0.0
    %v5784 = vadd.f32 %v5782, %v5783
    %v5785 = vsel %vm5741, %v5731, 0.0
    %v5786 = vadd.f32 %v5784, %v5785
    %v5787 = vsel %vm5741, %v5732, 0.0
    %v5788 = vadd.f32 %v5786, %v5787
    %v5789 = vsel %vm5741, %v5733, 0.0
    %v5790 = vadd.f32 %v5788, %v5789
    %v5791 = vsel %vm5741, %v5734, 0.0
    %v5792 = vadd.f32 %v5790, %v5791
    %v5793 = vsel %vm5741, %v5735, 0.0
    %v5794 = vadd.f32 %v5792, %v5793
    %v5795 = vsel %vm5741, %v5736, 0.0
    %v5796 = vadd.f32 %v5794, %v5795
    %v5797 = vsel %vm5741, %v5737, 0.0
    %v5798 = vadd.f32 %v5796, %v5797
    %v5799 = vsel %vm5741, %v5738, 0.0
    %v5800 = vadd.f32 %v5798, %v5799
    %v5801 = vsel %vm5741, %v5739, 0.0
    %v5802 = vadd.f32 %v5800, %v5801
    %v5803 = vsel %vm5741, %v5740, 0.0
    %v5804 = vadd.f32 %v5802, %v5803
    %5805 = vadd.xlane.f32.xlu0 %v5804
    %v5806 = vpop.xlane.xlu0 %5805
    %v5807 = vrot.slane %v5806, 4
    %v5808 = vadd.f32 %v5806, %v5807
    %v5809 = vrot.slane %v5808, 2
    %v5810 = vadd.f32 %v5808, %v5809
    %v5811 = vrot.slane %v5810, 1
    %v5812 = vadd.f32 %v5810, %v5811
    %s5813 = vtos %v5812
    %s5814 = ssub.f32 0.0, %s5813
    %v5815 = vrcp.pop 224.0
    %s5816 = vtos %v5815
    %s5817 = smul.f32 %s5814, %s5816
    %s5818 = scalar_lea.smem [#allocation2], 0
    %5819 = sst [smem:[%s5818]] %s5817
    // Predicated region
    $region18: #{asm2vec_forward.1} parent=1 // pred_check
      _
    $region19: #{asm2vec_forward.1} parent=1 // pred_check_branch
      %5821 = sbr.rel (0) target = $region21
    $region20: #{asm2vec_forward.1} parent=1 // pred_region
      %s5823 = ssub.s32 16, 16
      %5824 = vsyncadd [#allocation3], %s5823
      %5827 = dma.smem_to_hbm [#allocation2], 16, %s4, [#allocation3]
    $region21: #{asm2vec_forward.1} parent=1 // pred_fallthru
      _
    // Predicated region
    $region22: #{asm2vec_forward.1} parent=1 // pred_check
      _
    $region23: #{asm2vec_forward.1} parent=1 // pred_check_branch
      %5829 = sbr.rel (0) target = $region25
    $region24: #{asm2vec_forward.1} parent=1 // pred_region
      %5830 = dma.done [#allocation3], 16
    $region25: #{asm2vec_forward.1} parent=1 // pred_fallthru
      _
    %5831 = sfence
    %5832 = vsyncpa [#allocation3], 1

</llo_original>
